<compile_context>
chip_gen: v6e
topology: v6e:2x2x1
jax: 0.10.0
libtpu: 0.0.40
codegen_flags: <defaults>
</compile_context>

<pallas_src>
import math

import jax
import jax.numpy as jnp
from jax.experimental import pallas as pl
from jax.experimental.pallas import tpu as pltpu


NEG_SLOPE = 0.2       # nn.LeakyReLU(0.2)
IN_CHANNEL = 300      # word-embedding width in the torch module
C_IN_PAD = 384        # 300 padded to a lane multiple (128) for aligned W1 / x tiles
HIDDEN = 1024         # gc1 output width == (W2 @ Wfc1) fused inner width
OUT_DIM = 512         # fc2 output width
P_SPLITS = 2          # leading "parallel" grid axis (both TensorCores on v7x)
J_BLOCKS = 2          # double-buffered weight-stream steps per split
BJ = HIDDEN // (P_SPLITS * J_BLOCKS)   # 256-wide blocks of the fused 1024-dim


def _leaky_relu(v):
    return jnp.where(v > 0, v, NEG_SLOPE * v)


def label_gcn_kernel(adj_ref, x_ref, w1_ref, wf_ref, wfc2_ref, bfc1_ref,
                     out_ref, h1_ref):
    """Grid = (P_SPLITS, J_BLOCKS).

    p (parallel)  : disjoint halves of the fused 1024-dim -> disjoint partial outputs.
    j (arbitrary) : streams 256-wide blocks of (W2@Wfc1), Wfc2 and bfc1, overlapping
                    their DMA with the MXU work of the previous block.
    """
    j = pl.program_id(1)

    # gc1 (and the accumulator init) only once per core slice; h1 cached in VMEM.
    @pl.when(j == 0)
    def _():
        h = jnp.dot(x_ref[...], w1_ref[...], preferred_element_type=jnp.float32)
        h = jnp.dot(adj_ref[...], h.astype(jnp.bfloat16),
                    preferred_element_type=jnp.float32)
        h1_ref[...] = _leaky_relu(h).astype(jnp.bfloat16)
        out_ref[...] = jnp.zeros_like(out_ref)

    # gc2 + fc1 folded:  t = leaky(adj @ (h1 @ (W2@Wfc1)[:, blk]) + bfc1[:, blk])
    t = jnp.dot(h1_ref[...], wf_ref[...], preferred_element_type=jnp.float32)
    t = jnp.dot(adj_ref[...], t.astype(jnp.bfloat16),
                preferred_element_type=jnp.float32)
    t = _leaky_relu(t + bfc1_ref[...])

    # fc2: partial contraction of this block of the 1024-wide intermediate.
    out_ref[...] += jnp.dot(t.astype(jnp.bfloat16), wfc2_ref[...],
                            preferred_element_type=jnp.float32)


def prepare_weights(A, w1, w2, wfc1, bfc1, wfc2, bfc2):
    """One-time prep (A and all weights are parameters):
       * gen_adj(A) = D . A^T . D precomputed and cast to bf16,
       * W2 @ Wfc1 folded (f32) into one (1024, 1024) weight, cast to bf16,
       * W1 zero-padded 300 -> 384 rows and cast to bf16."""
    d = jax.lax.rsqrt(jnp.sum(A, axis=1, keepdims=True))              # (N, 1)
    adj = A.T * d * d.T                                               # adj[i,j] = A[j,i]*d[i]*d[j]
    w_fused = jnp.dot(w2, wfc1, preferred_element_type=jnp.float32)   # (1024, 1024)
    w1_pad = jnp.pad(w1, ((0, C_IN_PAD - w1.shape[0]), (0, 0)))
    return (adj.astype(jnp.bfloat16),
            w1_pad.astype(jnp.bfloat16),
            w_fused.astype(jnp.bfloat16),
            wfc2.astype(jnp.bfloat16),
            bfc1.astype(jnp.float32),
            bfc2.astype(jnp.float32))


def label_gcn_forward(word_embeddings, adj_b, w1_b, wf_b, wfc2_b, bfc1, bfc2):
    n, c_in = word_embeddings.shape
    x_b = jnp.pad(word_embeddings, ((0, 0), (0, C_IN_PAD - c_in))).astype(jnp.bfloat16)

    resident = lambda p, j: (0, 0)   # constant block index -> DMA'd once, stays in VMEM

    # TODO(synk): in the full ML-GCN model, start the w1/wf/wfc2 HBM->VMEM copies in a
    # preceding side-effecting pallas_call (cross-call prefetch) so the weight stream
    # hides behind the image backbone instead of this kernel's first grid step.
    # TODO(synk): stream wf/wfc2 as int8 (v5e/v6e) / fp8 (v7x) with per-channel scales
    # to halve the remaining HBM bytes; needs a tolerance re-check.
    partials = pl.pallas_call(
        label_gcn_kernel,
        out_shape=jax.ShapeDtypeStruct((P_SPLITS, n, OUT_DIM), jnp.float32),
        grid=(P_SPLITS, J_BLOCKS),
        in_specs=[
            pl.BlockSpec((n, n), resident),                                   # adj (bf16)
            pl.BlockSpec((n, C_IN_PAD), resident),                            # x   (bf16, padded)
            pl.BlockSpec((C_IN_PAD, HIDDEN), resident),                       # W1  (bf16, padded)
            pl.BlockSpec((HIDDEN, BJ), lambda p, j: (0, p * J_BLOCKS + j)),   # W2@Wfc1 block
            pl.BlockSpec((BJ, OUT_DIM), lambda p, j: (p * J_BLOCKS + j, 0)),  # Wfc2 block
            pl.BlockSpec((1, BJ), lambda p, j: (0, p * J_BLOCKS + j)),        # bfc1 block
        ],
        out_specs=pl.BlockSpec((None, n, OUT_DIM), lambda p, j: (p, 0, 0)),
        scratch_shapes=[pltpu.VMEM((n, HIDDEN), jnp.bfloat16)],               # cached gc1 output
        compiler_params=pltpu.CompilerParams(
            dimension_semantics=("parallel", "arbitrary")),
    )(adj_b, x_b, w1_b, wf_b, wfc2_b, bfc1)

    # The two core slices are partial sums over the fused 1024-dim; add them (32 KB)
    # and the fc2 bias here, then match torch's x.transpose(0, 1).
    out = partials[0] + partials[1] + bfc2                                    # (N, 512)
    return out.T                                                              # (512, N)


def make_params(key, num_classes, in_channel):
    """Deterministic synthetic parameters matching LabelGCN.__init__ shapes."""
    ks = jax.random.split(key, 8)

    # --- gen_A replacement (adj_file pickle is synthesized in-script) ---
    t = 0.4
    raw = jax.random.uniform(ks[0], (num_classes, num_classes), jnp.float32)
    bin_adj = (raw >= t).astype(jnp.float32)
    _adj = bin_adj * 2.0 / (bin_adj.sum(0, keepdims=True) + 1e-6)
    A = _adj + jnp.eye(num_classes, dtype=jnp.float32)

    def gcn_w(k, fin, fout):
        stdv = 1.0 / math.sqrt(fout)
        return jax.random.uniform(k, (fin, fout), jnp.float32, -stdv, stdv)

    def fc(kw, kb, fin, fout):
        bound = 1.0 / math.sqrt(fin)
        # stored as (in, out) so the kernel computes x @ W + b (== torch x @ W.T + b)
        w = jax.random.uniform(kw, (fin, fout), jnp.float32, -bound, bound)
        b = jax.random.uniform(kb, (1, fout), jnp.float32, -bound, bound)
        return w, b

    w1 = gcn_w(ks[1], in_channel, 1024)   # gc1 (bias=False)
    w2 = gcn_w(ks[2], 1024, 2048)         # gc2 (bias=False)
    wfc1, bfc1 = fc(ks[3], ks[4], 2048, 1024)
    wfc2, bfc2 = fc(ks[5], ks[6], 1024, 512)
    return A, w1, w2, wfc1, bfc1, wfc2, bfc2, ks[7]


def label_gcn_reference(word_embeddings, A, w1, w2, wfc1, bfc1, wfc2, bfc2):
    """Pure-JAX f32 reference mirroring the PyTorch forward (unfolded weights)."""
    d = jnp.power(A.sum(1), -0.5)
    D = jnp.diag(d)
    adj = jnp.matmul(jnp.matmul(A, D).T, D)
    x = jnp.matmul(adj, jnp.matmul(word_embeddings, w1))
    x = _leaky_relu(x)
    x = jnp.matmul(adj, jnp.matmul(x, w2))
    x = jnp.matmul(x, wfc1) + bfc1
    x = _leaky_relu(x)
    x = jnp.matmul(x, wfc2) + bfc2
    return x.T


if __name__ == "__main__":
    num_classes = 16
    in_channel = IN_CHANNEL

    key = jax.random.PRNGKey(0)
    A, w1, w2, wfc1, bfc1, wfc2, bfc2, k_emb = make_params(key, num_classes, in_channel)

    # word_embeddings: (num_classes, in_channel) f32 (torch.from_numpy(...).float())
    word_embeddings = jax.random.normal(k_emb, (num_classes, in_channel), jnp.float32)

    # One-time weight prep: precompute adj, fold W2@Wfc1, pad W1, cast streams to bf16.
    adj_b, w1_b, wf_b, wfc2_b, bfc1_f, bfc2_f = prepare_weights(
        A, w1, w2, wfc1, bfc1, wfc2, bfc2)

    out = label_gcn_forward(word_embeddings, adj_b, w1_b, wf_b, wfc2_b, bfc1_f, bfc2_f)
    out = jax.block_until_ready(out)

    assert out.shape == (512, num_classes), out.shape
    ref = label_gcn_reference(word_embeddings, A, w1, w2, wfc1, bfc1, wfc2, bfc2)
    max_err = float(jnp.max(jnp.abs(out - ref)))
    assert jnp.allclose(out, ref, rtol=2e-2, atol=2e-2), max_err

    print("KERNEL_OK")
</pallas_src>

<mosaic_0001>
module attributes {stable_mosaic.version = 11 : i64} {
  func.func @label_gcn_kernel(%arg0: i32, %arg1: i32, %arg2: memref<16x16xbf16, #tpu.memory_space<vmem>>, %arg3: memref<16x384xbf16, #tpu.memory_space<vmem>>, %arg4: memref<384x1024xbf16, #tpu.memory_space<vmem>>, %arg5: memref<1024x256xbf16, #tpu.memory_space<vmem>>, %arg6: memref<256x512xbf16, #tpu.memory_space<vmem>>, %arg7: memref<1x256xf32, #tpu.memory_space<vmem>>, %arg8: memref<1x16x512xf32, #tpu.memory_space<vmem>>, %arg9: memref<16x1024xbf16, #tpu.memory_space<vmem>>) attributes {dimension_semantics = [#tpu.dimension_semantics<parallel>, #tpu.dimension_semantics<arbitrary>], iteration_bounds = array<i64: 2, 2>, scalar_prefetch = 0 : i64, scratch_operands = 1 : i64, tpu.core_type = #tpu.core_type<tc>, window_params = [{pipeline_mode = #tpu.pipeline_mode<synchronous>, transform_indices = @transform_0, window_bounds = array<i64: 16, 16>}, {pipeline_mode = #tpu.pipeline_mode<synchronous>, transform_indices = @transform_1, window_bounds = array<i64: 16, 384>}, {pipeline_mode = #tpu.pipeline_mode<synchronous>, transform_indices = @transform_2, window_bounds = array<i64: 384, 1024>}, {transform_indices = @transform_3, window_bounds = array<i64: 1024, 256>}, {transform_indices = @transform_4, window_bounds = array<i64: 256, 512>}, {transform_indices = @transform_5, window_bounds = array<i64: 1, 256>}, {transform_indices = @transform_6, window_bounds = array<i64: 1, 16, 512>}]} {
    %c0_i32 = arith.constant 0 : i32
    %0 = arith.cmpi eq, %arg1, %c0_i32 : i32
    %1 = arith.extui %0 : i1 to i32
    %c0_i32_0 = arith.constant 0 : i32
    %2 = arith.cmpi ne, %1, %c0_i32_0 : i32
    scf.if %2 {
      %c0_20 = arith.constant 0 : index
      %c0_21 = arith.constant 0 : index
      %26 = vector.load %arg3[%c0_20, %c0_21] : memref<16x384xbf16, #tpu.memory_space<vmem>>, vector<16x384xbf16>
      %c0_22 = arith.constant 0 : index
      %c0_23 = arith.constant 0 : index
      %27 = vector.load %arg4[%c0_22, %c0_23] : memref<384x1024xbf16, #tpu.memory_space<vmem>>, vector<384x1024xbf16>
      %cst_24 = arith.constant dense<0.000000e+00> : vector<16x1024xf32>
      %28 = tpu.matmul %26, %27, %cst_24 {dimension_numbers = #tpu.dot_dimension_numbers<[1], [0], [0], [1], [0, 0, 1, 1], [], []>} : vector<16x384xbf16>, vector<384x1024xbf16>, vector<16x1024xf32> -> vector<16x1024xf32>
      %c0_25 = arith.constant 0 : index
      %c0_26 = arith.constant 0 : index
      %29 = vector.load %arg2[%c0_25, %c0_26] : memref<16x16xbf16, #tpu.memory_space<vmem>>, vector<16x16xbf16>
      %30 = arith.truncf %28 : vector<16x1024xf32> to vector<16x1024xbf16>
      %cst_27 = arith.constant dense<0.000000e+00> : vector<16x1024xf32>
      %31 = tpu.matmul %29, %30, %cst_27 {dimension_numbers = #tpu.dot_dimension_numbers<[1], [0], [0], [1], [0, 0, 1, 1], [], []>} : vector<16x16xbf16>, vector<16x1024xbf16>, vector<16x1024xf32> -> vector<16x1024xf32>
      %cst_28 = arith.constant 0.000000e+00 : f32
      %32 = vector.broadcast %cst_28 : f32 to vector<16x1024xf32>
      %33 = arith.cmpf ogt, %31, %32 : vector<16x1024xf32>
      %cst_29 = arith.constant 2.000000e-01 : f32
      %34 = vector.broadcast %cst_29 : f32 to vector<16x1024xf32>
      %35 = arith.mulf %34, %31 : vector<16x1024xf32>
      %36 = arith.select %33, %31, %35 : vector<16x1024xi1>, vector<16x1024xf32>
      %37 = arith.truncf %36 : vector<16x1024xf32> to vector<16x1024xbf16>
      %c0_30 = arith.constant 0 : index
      %c0_31 = arith.constant 0 : index
      %38 = vector.load %arg9[%c0_30, %c0_31] : memref<16x1024xbf16, #tpu.memory_space<vmem>>, vector<16x1024xbf16>
      tpu.vector_store %arg9[%c0_30, %c0_31], %37 {strides = array<i32>} : memref<16x1024xbf16, #tpu.memory_space<vmem>>, vector<16x1024xbf16>,
      %cst_32 = arith.constant 0.000000e+00 : f32
      %39 = vector.broadcast %cst_32 : f32 to vector<16x512xf32>
      %c0_33 = arith.constant 0 : index
      %c0_34 = arith.constant 0 : index
      %c0_35 = arith.constant 0 : index
      %40 = vector.load %arg8[%c0_33, %c0_34, %c0_35] : memref<1x16x512xf32, #tpu.memory_space<vmem>>, vector<1x16x512xf32>
      %41 = vector.shape_cast %40 : vector<1x16x512xf32> to vector<16x512xf32>
      %42 = vector.shape_cast %39 : vector<16x512xf32> to vector<1x16x512xf32>
      tpu.vector_store %arg8[%c0_33, %c0_34, %c0_35], %42 {strides = array<i32>} : memref<1x16x512xf32, #tpu.memory_space<vmem>>, vector<1x16x512xf32>,
    } else {
    }
    %c0 = arith.constant 0 : index
    %c0_1 = arith.constant 0 : index
    %3 = vector.load %arg9[%c0, %c0_1] : memref<16x1024xbf16, #tpu.memory_space<vmem>>, vector<16x1024xbf16>
    %c0_2 = arith.constant 0 : index
    %c0_3 = arith.constant 0 : index
    %4 = vector.load %arg5[%c0_2, %c0_3] : memref<1024x256xbf16, #tpu.memory_space<vmem>>, vector<1024x256xbf16>
    %cst = arith.constant dense<0.000000e+00> : vector<16x256xf32>
    %5 = tpu.matmul %3, %4, %cst {dimension_numbers = #tpu.dot_dimension_numbers<[1], [0], [0], [1], [0, 0, 1, 1], [], []>} : vector<16x1024xbf16>, vector<1024x256xbf16>, vector<16x256xf32> -> vector<16x256xf32>
    %c0_4 = arith.constant 0 : index
    %c0_5 = arith.constant 0 : index
    %6 = vector.load %arg2[%c0_4, %c0_5] : memref<16x16xbf16, #tpu.memory_space<vmem>>, vector<16x16xbf16>
    %7 = arith.truncf %5 : vector<16x256xf32> to vector<16x256xbf16>
    %cst_6 = arith.constant dense<0.000000e+00> : vector<16x256xf32>
    %8 = tpu.matmul %6, %7, %cst_6 {dimension_numbers = #tpu.dot_dimension_numbers<[1], [0], [0], [1], [0, 0, 1, 1], [], []>} : vector<16x16xbf16>, vector<16x256xbf16>, vector<16x256xf32> -> vector<16x256xf32>
    %c0_7 = arith.constant 0 : index
    %c0_8 = arith.constant 0 : index
    %9 = vector.load %arg7[%c0_7, %c0_8] : memref<1x256xf32, #tpu.memory_space<vmem>>, vector<1x256xf32>
    %10 = vector.broadcast %9 : vector<1x256xf32> to vector<16x256xf32>
    %11 = arith.addf %8, %10 : vector<16x256xf32>
    %cst_9 = arith.constant 0.000000e+00 : f32
    %12 = vector.broadcast %cst_9 : f32 to vector<16x256xf32>
    %13 = arith.cmpf ogt, %11, %12 : vector<16x256xf32>
    %cst_10 = arith.constant 2.000000e-01 : f32
    %14 = vector.broadcast %cst_10 : f32 to vector<16x256xf32>
    %15 = arith.mulf %14, %11 : vector<16x256xf32>
    %16 = arith.select %13, %11, %15 : vector<16x256xi1>, vector<16x256xf32>
    %c0_11 = arith.constant 0 : index
    %c0_12 = arith.constant 0 : index
    %c0_13 = arith.constant 0 : index
    %17 = vector.load %arg8[%c0_11, %c0_12, %c0_13] : memref<1x16x512xf32, #tpu.memory_space<vmem>>, vector<1x16x512xf32>
    %18 = vector.shape_cast %17 : vector<1x16x512xf32> to vector<16x512xf32>
    %19 = arith.truncf %16 : vector<16x256xf32> to vector<16x256xbf16>
    %c0_14 = arith.constant 0 : index
    %c0_15 = arith.constant 0 : index
    %20 = vector.load %arg6[%c0_14, %c0_15] : memref<256x512xbf16, #tpu.memory_space<vmem>>, vector<256x512xbf16>
    %cst_16 = arith.constant dense<0.000000e+00> : vector<16x512xf32>
    %21 = tpu.matmul %19, %20, %cst_16 {dimension_numbers = #tpu.dot_dimension_numbers<[1], [0], [0], [1], [0, 0, 1, 1], [], []>} : vector<16x256xbf16>, vector<256x512xbf16>, vector<16x512xf32> -> vector<16x512xf32>
    %22 = arith.addf %18, %21 : vector<16x512xf32>
    %c0_17 = arith.constant 0 : index
    %c0_18 = arith.constant 0 : index
    %c0_19 = arith.constant 0 : index
    %23 = vector.load %arg8[%c0_17, %c0_18, %c0_19] : memref<1x16x512xf32, #tpu.memory_space<vmem>>, vector<1x16x512xf32>
    %24 = vector.shape_cast %23 : vector<1x16x512xf32> to vector<16x512xf32>
    %25 = vector.shape_cast %22 : vector<16x512xf32> to vector<1x16x512xf32>
    tpu.vector_store %arg8[%c0_17, %c0_18, %c0_19], %25 {strides = array<i32>} : memref<1x16x512xf32, #tpu.memory_space<vmem>>, vector<1x16x512xf32>,
    return
  }
  func.func @transform_0(%arg0: i32, %arg1: i32) -> (i32, i32) {
    %c0_i32 = arith.constant 0 : i32
    %c0_i32_0 = arith.constant 0 : i32
    %c0_i32_1 = arith.constant 0 : i32
    return %c0_i32, %c0_i32_0 : i32, i32
  }
  func.func @transform_1(%arg0: i32, %arg1: i32) -> (i32, i32) {
    %c0_i32 = arith.constant 0 : i32
    %c0_i32_0 = arith.constant 0 : i32
    %c0_i32_1 = arith.constant 0 : i32
    return %c0_i32, %c0_i32_0 : i32, i32
  }
  func.func @transform_2(%arg0: i32, %arg1: i32) -> (i32, i32) {
    %c0_i32 = arith.constant 0 : i32
    %c0_i32_0 = arith.constant 0 : i32
    %c0_i32_1 = arith.constant 0 : i32
    return %c0_i32, %c0_i32_0 : i32, i32
  }
  func.func @transform_3(%arg0: i32, %arg1: i32) -> (i32, i32) {
    %c2_i32 = arith.constant 2 : i32
    %0 = arith.muli %arg0, %c2_i32 : i32
    %1 = arith.addi %0, %arg1 : i32
    %c0_i32 = arith.constant 0 : i32
    %c0_i32_0 = arith.constant 0 : i32
    return %c0_i32, %1 : i32, i32
  }
  func.func @transform_4(%arg0: i32, %arg1: i32) -> (i32, i32) {
    %c2_i32 = arith.constant 2 : i32
    %0 = arith.muli %arg0, %c2_i32 : i32
    %1 = arith.addi %0, %arg1 : i32
    %c0_i32 = arith.constant 0 : i32
    %c0_i32_0 = arith.constant 0 : i32
    return %1, %c0_i32 : i32, i32
  }
  func.func @transform_5(%arg0: i32, %arg1: i32) -> (i32, i32) {
    %c2_i32 = arith.constant 2 : i32
    %0 = arith.muli %arg0, %c2_i32 : i32
    %1 = arith.addi %0, %arg1 : i32
    %c0_i32 = arith.constant 0 : i32
    %c0_i32_0 = arith.constant 0 : i32
    return %c0_i32, %1 : i32, i32
  }
  func.func @transform_6(%arg0: i32, %arg1: i32) -> (i32, i32, i32) {
    %c0_i32 = arith.constant 0 : i32
    %c0_i32_0 = arith.constant 0 : i32
    %c0_i32_1 = arith.constant 0 : i32
    return %arg0, %c0_i32, %c0_i32_0 : i32, i32, i32
  }
}

</mosaic_0001>

<llo_original>
// kernel: tpu_custom_call.1
$region0: #{tpu_custom_call.1}
  #allocation0 [shape = 'u32[]', space=smem, size = 0x4, offset = 0x4, fixed_abs, tag = 'smem constant byte address 0x4 - core index']
  #allocation1 [shape = 'u32[144,128]{1,0:T(1,128)}', space=vmem, size = 0x12000, scoped, tag = 'internal scratch']
  #allocation2 [shape = 'bf16[16,1024]{1,0:T(8,128)(2,1)}', space=vmem, size = 0x8000, scoped, tag = 'scratch operand']
  %s0 = inlined_call_operand.hbm [shape: bf16[16,16], index: 0, kind: input, shape index: {}]
  %s1 = inlined_call_operand.hbm [shape: bf16[16,384], index: 1, kind: input, shape index: {}]
  %s2 = inlined_call_operand.hbm [shape: bf16[384,1024], index: 2, kind: input, shape index: {}]
  %s3 = inlined_call_operand.hbm [shape: bf16[1024,1024], index: 3, kind: input, shape index: {}]
  %s4 = inlined_call_operand.hbm [shape: bf16[1024,512], index: 4, kind: input, shape index: {}]
  %s5 = inlined_call_operand.hbm [shape: f32[1,1024], index: 5, kind: input, shape index: {}]
  %s6 = inlined_call_operand.hbm [shape: f32[2,16,512], index: 6, kind: output, shape index: {}]
  %s7 = sld [smem:[#allocation0]]
  $region85: #{tpu_custom_call.1} parent=0
    _
  %s9 = ssub.s32 1, %s7
  %s10 = scalar_select 0, %s9, %s7
  $region1: #{tpu_custom_call.1} parent=0
    #allocation3 [shape = 'u8[4096]{0}', space=vmem, size = 0x1000, scoped, tag = 'input window, operand 0, single buffered']
    #allocation4 [shape = 's32[2]{0}', space=sflag, size = 0x8, scoped, tag = 'scoped memory for tpu_custom_call.1']
    #allocation5 [shape = 's32[2]{0}', space=sflag, size = 0x8, scoped, tag = 'scoped memory for tpu_custom_call.1']
    #allocation6 [shape = 'u8[12288]{0}', space=vmem, size = 0x3000, scoped, tag = 'input window, operand 1, single buffered']
    #allocation7 [shape = 's32[1]{0}', space=sflag, size = 0x4, scoped, tag = 'scoped memory for tpu_custom_call.1']
    #allocation8 [shape = 'u8[786432]{0}', space=vmem, size = 0xc0000, scoped, tag = 'input window, operand 2, single buffered']
    #allocation9 [shape = 'u8[1048576]{0}', space=vmem, size = 0x100000, scoped, tag = 'input window, operand 3']
    #allocation10 [shape = 's32[2]{0}', space=sflag, size = 0x8, scoped, tag = 'scoped memory for tpu_custom_call.1']
    #allocation11 [shape = 'u8[524288]{0}', space=vmem, size = 0x80000, scoped, tag = 'input window, operand 4']
    #allocation12 [shape = 'u8[2048]{0}', space=vmem, size = 0x800, scoped, tag = 'input window, operand 5']
    #allocation13 [shape = 's32[2]{0}', space=sflag, size = 0x8, scoped, tag = 'scoped memory for tpu_custom_call.1']
    #allocation14 [shape = 'u8[65536]{0}', space=vmem, size = 0x10000, scoped, tag = 'output window, operand 0']
    %11 = vsyncpa [#allocation4], 0
    %12 = vsyncpa [#allocation7], 0
    %13 = vsyncpa [#allocation10], 0
    %s14 = scalar_lea.sflag [#allocation10], 1
    %15 = vsyncpa %s14, 0
    %16 = vsyncpa [#allocation13], 0
    %s17 = scalar_lea.sflag [#allocation13], 1
    %18 = vsyncpa %s17, 0
    %19 = vsyncpa [#allocation5], 0
    %s20 = scalar_lea.sflag [#allocation5], 1
    %21 = vsyncpa %s20, 0
    loop: start=0, step=1, limit=6
    $region2: #{tpu_custom_call.1} parent=1 // loop_pre_header
      _
    $region3: #{tpu_custom_call.1} parent=1 // loop_header
      %s23 = sphi 0, %s27
      %p24 = scmp.ge.s32.totalorder %s23, 6
      %s30 = sphi 0, %s42
      %s31 = sphi 0, %s38
      %s32 = sphi 0, %s30
      %s33 = sphi 0, %s31
      %s34 = sphi 0, %s32
      %s35 = sphi 0, %s33
      %s43 = sphi 0, %s43
      %s45 = sphi 0, %s43
      %s46 = sphi 0, %s45
      %s60 = sphi 0, %s46
      %s64 = sphi 0, %s64
      %s66 = sphi 0, %s64
      %s67 = sphi 0, %s66
      %s81 = sphi 0, %s67
      %s85 = sphi 0, %s85
      %s87 = sphi 0, %s85
      %s88 = sphi 0, %s87
      %s102 = sphi 0, %s88
      %s112 = sphi 0, %s114
      %s115 = sphi 0, %s112
      %s116 = sphi 0, %s115
      %s132 = sphi 0, %s116
      %s142 = sphi 0, %s144
      %s145 = sphi 0, %s142
      %s146 = sphi 0, %s145
      %s162 = sphi 0, %s146
      %s172 = sphi 0, %s174
      %s175 = sphi 0, %s172
      %s176 = sphi 0, %s175
      %s192 = sphi 0, %s176
      %s198 = sphi 0, %s200
      %s201 = sphi 0, %s198
      %s202 = sphi 0, %s201
      %s218 = sphi 0, %s202
    $region4: #{tpu_custom_call.1} parent=1 // loop_header_branch
      %26 = sbr.rel (%p24) target = $region8
    $region5: #{tpu_custom_call.1} parent=1 // loop_body
      %s28 = ssub.s32 %s23, 1
      %s29 = ssub.s32 %s23, 2
      %s36 = sadd.s32 1, %s31
      %p37 = scmp.ge.s32.totalorder %s36, 2
      %s38 = scalar_select %p37, 0, %s36
      %s39 = sadd.s32 1, %s30
      %s40 = scalar_select %p37, %s39, %s30
      %p41 = scmp.ge.s32.totalorder %s40, 2
      %s42 = scalar_select %p41, 0, %s40
      %s44 = sadd.s32 %s43, 1
      %p47 = scmp.eq.s32.totalorder %s23, 3
      %p48 = scmp.ne.s32.totalorder %s43, %s45
      %p49 = scmp.eq.s32.totalorder %s23, 0
      %p50 = por %p48, %p49
      %p51 = scmp.ne.s32.totalorder %s43, %s45
      %p52 = scmp.eq.s32.totalorder %s28, 3
      %p53 = por %p51, %p52
      %p54 = scmp.ne.s32.totalorder %s45, %s46
      %p55 = scmp.eq.s32.totalorder %s28, 0
      %p56 = por %p54, %p55
      %p57 = scmp.ne.s32.totalorder %s45, %s46
      %p58 = scmp.eq.s32.totalorder %s29, 3
      %p59 = por %p57, %p58
      %p61 = scmp.ne.s32.totalorder %s46, %s60
      %p62 = scmp.eq.s32.totalorder %s29, 0
      %p63 = por %p61, %p62
      %s65 = sadd.s32 %s64, 1
      %p68 = scmp.eq.s32.totalorder %s23, 3
      %p69 = scmp.ne.s32.totalorder %s64, %s66
      %p70 = scmp.eq.s32.totalorder %s23, 0
      %p71 = por %p69, %p70
      %p72 = scmp.ne.s32.totalorder %s64, %s66
      %p73 = scmp.eq.s32.totalorder %s28, 3
      %p74 = por %p72, %p73
      %p75 = scmp.ne.s32.totalorder %s66, %s67
      %p76 = scmp.eq.s32.totalorder %s28, 0
      %p77 = por %p75, %p76
      %p78 = scmp.ne.s32.totalorder %s66, %s67
      %p79 = scmp.eq.s32.totalorder %s29, 3
      %p80 = por %p78, %p79
      %p82 = scmp.ne.s32.totalorder %s67, %s81
      %p83 = scmp.eq.s32.totalorder %s29, 0
      %p84 = por %p82, %p83
      %s86 = sadd.s32 %s85, 1
      %p89 = scmp.eq.s32.totalorder %s23, 3
      %p90 = scmp.ne.s32.totalorder %s85, %s87
      %p91 = scmp.eq.s32.totalorder %s23, 0
      %p92 = por %p90, %p91
      %p93 = scmp.ne.s32.totalorder %s85, %s87
      %p94 = scmp.eq.s32.totalorder %s28, 3
      %p95 = por %p93, %p94
      %p96 = scmp.ne.s32.totalorder %s87, %s88
      %p97 = scmp.eq.s32.totalorder %s28, 0
      %p98 = por %p96, %p97
      %p99 = scmp.ne.s32.totalorder %s87, %s88
      %p100 = scmp.eq.s32.totalorder %s29, 3
      %p101 = por %p99, %p100
      %p103 = scmp.ne.s32.totalorder %s88, %s102
      %p104 = scmp.eq.s32.totalorder %s29, 0
      %p105 = por %p103, %p104
      %s106 = smul.u32 %s30, 2
      %s107 = sadd.s32 %s106, %s31
      %s108 = smul.u32 %s42, 2
      %s109 = sadd.s32 %s108, %s38
      %s110 = ssub.s32 %s107, %s109
      %p111 = scmp.eq.s32.totalorder %s110, 0
      %s113 = sadd.s32 %s112, 1
      %s114 = scalar_select %p111, %s112, %s113
      %p117 = pneg %p111
      %p118 = scmp.eq.s32.totalorder %s23, 3
      %p119 = por %p117, %p118
      %p120 = scmp.ne.s32.totalorder %s112, %s115
      %p121 = scmp.eq.s32.totalorder %s23, 0
      %p122 = por %p120, %p121
      %p123 = scmp.ne.s32.totalorder %s112, %s115
      %p124 = scmp.eq.s32.totalorder %s28, 3
      %p125 = por %p123, %p124
      %p126 = scmp.ne.s32.totalorder %s115, %s116
      %p127 = scmp.eq.s32.totalorder %s28, 0
      %p128 = por %p126, %p127
      %p129 = scmp.ne.s32.totalorder %s115, %s116
      %p130 = scmp.eq.s32.totalorder %s29, 3
      %p131 = por %p129, %p130
      %p133 = scmp.ne.s32.totalorder %s116, %s132
      %p134 = scmp.eq.s32.totalorder %s29, 0
      %p135 = por %p133, %p134
      %s136 = smul.u32 %s30, 2
      %s137 = sadd.s32 %s136, %s31
      %s138 = smul.u32 %s42, 2
      %s139 = sadd.s32 %s138, %s38
      %s140 = ssub.s32 %s137, %s139
      %p141 = scmp.eq.s32.totalorder %s140, 0
      %s143 = sadd.s32 %s142, 1
      %s144 = scalar_select %p141, %s142, %s143
      %p147 = pneg %p141
      %p148 = scmp.eq.s32.totalorder %s23, 3
      %p149 = por %p147, %p148
      %p150 = scmp.ne.s32.totalorder %s142, %s145
      %p151 = scmp.eq.s32.totalorder %s23, 0
      %p152 = por %p150, %p151
      %p153 = scmp.ne.s32.totalorder %s142, %s145
      %p154 = scmp.eq.s32.totalorder %s28, 3
      %p155 = por %p153, %p154
      %p156 = scmp.ne.s32.totalorder %s145, %s146
      %p157 = scmp.eq.s32.totalorder %s28, 0
      %p158 = por %p156, %p157
      %p159 = scmp.ne.s32.totalorder %s145, %s146
      %p160 = scmp.eq.s32.totalorder %s29, 3
      %p161 = por %p159, %p160
      %p163 = scmp.ne.s32.totalorder %s146, %s162
      %p164 = scmp.eq.s32.totalorder %s29, 0
      %p165 = por %p163, %p164
      %s166 = smul.u32 %s30, 2
      %s167 = sadd.s32 %s166, %s31
      %s168 = smul.u32 %s42, 2
      %s169 = sadd.s32 %s168, %s38
      %s170 = ssub.s32 %s167, %s169
      %p171 = scmp.eq.s32.totalorder %s170, 0
      %s173 = sadd.s32 %s172, 1
      %s174 = scalar_select %p171, %s172, %s173
      %p177 = pneg %p171
      %p178 = scmp.eq.s32.totalorder %s23, 3
      %p179 = por %p177, %p178
      %p180 = scmp.ne.s32.totalorder %s172, %s175
      %p181 = scmp.eq.s32.totalorder %s23, 0
      %p182 = por %p180, %p181
      %p183 = scmp.ne.s32.totalorder %s172, %s175
      %p184 = scmp.eq.s32.totalorder %s28, 3
      %p185 = por %p183, %p184
      %p186 = scmp.ne.s32.totalorder %s175, %s176
      %p187 = scmp.eq.s32.totalorder %s28, 0
      %p188 = por %p186, %p187
      %p189 = scmp.ne.s32.totalorder %s175, %s176
      %p190 = scmp.eq.s32.totalorder %s29, 3
      %p191 = por %p189, %p190
      %p193 = scmp.ne.s32.totalorder %s176, %s192
      %p194 = scmp.eq.s32.totalorder %s29, 0
      %p195 = por %p193, %p194
      %s196 = ssub.s32 %s30, %s42
      %p197 = scmp.eq.s32.totalorder %s196, 0
      %s199 = sadd.s32 %s198, 1
      %s200 = scalar_select %p197, %s198, %s199
      %p203 = pneg %p197
      %p204 = scmp.eq.s32.totalorder %s23, 3
      %p205 = por %p203, %p204
      %p206 = scmp.ne.s32.totalorder %s198, %s201
      %p207 = scmp.eq.s32.totalorder %s23, 0
      %p208 = por %p206, %p207
      %p209 = scmp.ne.s32.totalorder %s198, %s201
      %p210 = scmp.eq.s32.totalorder %s28, 3
      %p211 = por %p209, %p210
      %p212 = scmp.ne.s32.totalorder %s201, %s202
      %p213 = scmp.eq.s32.totalorder %s28, 0
      %p214 = por %p212, %p213
      %p215 = scmp.ne.s32.totalorder %s201, %s202
      %p216 = scmp.eq.s32.totalorder %s29, 3
      %p217 = por %p215, %p216
      %p219 = scmp.ne.s32.totalorder %s202, %s218
      %p220 = scmp.eq.s32.totalorder %s29, 0
      %p221 = por %p219, %p220
      %p222 = scmp.le.s32.totalorder 1, %s23
      %p223 = scmp.lt.s32.totalorder %s23, 5
      %p224 = pnand %p222, %p223
      %p225 = pneg %p224
      // Predicated region
      $region9: #{tpu_custom_call.1} parent=5 // pred_check
        _
      $region10: #{tpu_custom_call.1} parent=5 // pred_check_branch
        %227 = sbr.rel (%p224) target = $region12
      $region11: #{tpu_custom_call.1} parent=5 // pred_region
        %s228 = ssub.s32 %s23, 1
        // Predicated region
        $region13: #{tpu_custom_call.1} parent=11 // pred_check
          %p229 = pneg %p56
        $region14: #{tpu_custom_call.1} parent=11 // pred_check_branch
          %231 = sbr.rel (%p229) target = $region16
        $region15: #{tpu_custom_call.1} parent=11 // pred_region
          %s233 = ssub.s32 128, 128
          %234 = vsyncadd [#allocation4], %s233
          %s235 = sshll.u32 [#allocation3], 4
          %s236 = int_to_ptr.vmem [resolvable:$true] %s235
          %241 = dma.hbm_to_vmem [thread:$0]  %s0, 128, %s236, [#allocation4], 64, 64, 4
        $region16: #{tpu_custom_call.1} parent=11 // pred_fallthru
          _
        // Predicated region
        $region17: #{tpu_custom_call.1} parent=11 // pred_check
          %p242 = pneg %p77
        $region18: #{tpu_custom_call.1} parent=11 // pred_check_branch
          %244 = sbr.rel (%p242) target = $region20
        $region19: #{tpu_custom_call.1} parent=11 // pred_region
          %s246 = ssub.s32 384, 384
          %247 = vsyncadd [#allocation7], %s246
          %s248 = sshll.u32 [#allocation6], 4
          %s249 = int_to_ptr.vmem [resolvable:$true] %s248
          %254 = dma.hbm_to_vmem [thread:$0]  %s1, 384, %s249, [#allocation7], 192, 192, 12
        $region20: #{tpu_custom_call.1} parent=11 // pred_fallthru
          _
        // Predicated region
        $region21: #{tpu_custom_call.1} parent=11 // pred_check
          %p255 = pneg %p98
        $region22: #{tpu_custom_call.1} parent=11 // pred_check_branch
          %257 = sbr.rel (%p255) target = $region24
        $region23: #{tpu_custom_call.1} parent=11 // pred_region
          %s259 = ssub.s32 24576, 24576
          %260 = vsyncadd [#allocation7], %s259
          %s261 = sshll.u32 [#allocation8], 4
          %s262 = int_to_ptr.vmem [resolvable:$true] %s261
          %267 = dma.hbm_to_vmem [thread:$0]  %s2, 24576, %s262, [#allocation7], 512, 512, 32
        $region24: #{tpu_custom_call.1} parent=11 // pred_fallthru
          _
      $region12: #{tpu_custom_call.1} parent=5 // pred_fallthru
        _
      %p268 = scmp.lt.s32.totalorder %s23, 4
      // Predicated region
      $region25: #{tpu_custom_call.1} parent=5 // pred_check
        %p269 = pneg %p268
      $region26: #{tpu_custom_call.1} parent=5 // pred_check_branch
        %271 = sbr.rel (%p269) target = $region28
      $region27: #{tpu_custom_call.1} parent=5 // pred_region
        // Predicated region
        $region29: #{tpu_custom_call.1} parent=27 // pred_check
          %p272 = pneg %p122
        $region30: #{tpu_custom_call.1} parent=27 // pred_check_branch
          %274 = sbr.rel (%p272) target = $region32
        $region31: #{tpu_custom_call.1} parent=27 // pred_region
          %s275 = sand.u32 %s23, 1
          %s276 = scalar_lea.sflag [#allocation10], %s275
          %s277 = sand.u32 %s112, 1
          %s278 = smul.addr %s277, 1024
          %s279 = scalar_lea.vmem [#allocation9], %s278
          %s280 = smul.u32 %s30, 2
          %s281 = sadd.s32 %s280, %s31
          %s282 = smul.u32 2, %s281
          %s284 = ssub.s32 16384, 16384
          %285 = vsyncadd %s276, %s284
          %s286 = smul.addr %s282, 64
          %s287 = scalar_lea.hbm %s3, %s286
          %s288 = sshll.u32 %s279, 4
          %s289 = int_to_ptr.vmem [resolvable:$true] %s288
          %294 = dma.hbm_to_vmem [thread:$0]  %s287, 16384, %s289, %s276, 512, 128, 8
        $region32: #{tpu_custom_call.1} parent=27 // pred_fallthru
          _
        // Predicated region
        $region33: #{tpu_custom_call.1} parent=27 // pred_check
          %p295 = pneg %p152
        $region34: #{tpu_custom_call.1} parent=27 // pred_check_branch
          %297 = sbr.rel (%p295) target = $region36
        $region35: #{tpu_custom_call.1} parent=27 // pred_region
          %s298 = sand.u32 %s23, 1
          %s299 = scalar_lea.sflag [#allocation10], %s298
          %s300 = sand.u32 %s142, 1
          %s301 = smul.addr %s300, 512
          %s302 = scalar_lea.vmem [#allocation11], %s301
          %s303 = smul.u32 %s30, 2
          %s304 = sadd.s32 %s303, %s31
          %s305 = smul.u32 32, %s304
          %s307 = ssub.s32 8192, 8192
          %308 = vsyncadd %s299, %s307
          %s309 = smul.addr %s305, 4
          %s310 = smul.addr %s309, 64
          %s311 = scalar_lea.hbm %s4, %s310
          %s312 = sshll.u32 %s302, 4
          %s313 = int_to_ptr.vmem [resolvable:$true] %s312
          %318 = dma.hbm_to_vmem [thread:$0]  %s311, 8192, %s313, %s299, 256, 256, 16
        $region36: #{tpu_custom_call.1} parent=27 // pred_fallthru
          _
        // Predicated region
        $region37: #{tpu_custom_call.1} parent=27 // pred_check
          %p319 = pneg %p182
        $region38: #{tpu_custom_call.1} parent=27 // pred_check_branch
          %321 = sbr.rel (%p319) target = $region40
        $region39: #{tpu_custom_call.1} parent=27 // pred_region
          %s322 = sand.u32 %s172, 1
          %s323 = scalar_lea.sflag [#allocation13], %s322
          %s324 = sand.u32 %s172, 1
          %s325 = smul.addr %s324, 2
          %s326 = scalar_lea.vmem [#allocation12], %s325
          %s327 = smul.u32 %s30, 2
          %s328 = sadd.s32 %s327, %s31
          %s329 = smul.u32 2, %s328
          %s331 = ssub.s32 32, 32
          %332 = vsyncadd %s323, %s331
          %s333 = smul.addr %s329, 16
          %s334 = scalar_lea.hbm %s5, %s333
          %s336 = sshll.u32 %s326, 4
          %s337 = int_to_ptr.vmem [resolvable:$true] %s336
          %339 = dma.hbm_to_vmem [thread:$0]  %s334, 32, %s337, %s323
        $region40: #{tpu_custom_call.1} parent=27 // pred_fallthru
          _
      $region28: #{tpu_custom_call.1} parent=5 // pred_fallthru
        _
      %p340 = scmp.le.s32.totalorder 1, %s23
      %p341 = scmp.lt.s32.totalorder %s23, 5
      %p342 = pnand %p340, %p341
      %p343 = pneg %p342
      // Predicated region
      $region41: #{tpu_custom_call.1} parent=5 // pred_check
        _
      $region42: #{tpu_custom_call.1} parent=5 // pred_check_branch
        %345 = sbr.rel (%p342) target = $region44
      $region43: #{tpu_custom_call.1} parent=5 // pred_region
        %s346 = ssub.s32 %s23, 1
        // Predicated region
        $region45: #{tpu_custom_call.1} parent=43 // pred_check
          %p347 = pneg %p56
        $region46: #{tpu_custom_call.1} parent=43 // pred_check_branch
          %349 = sbr.rel (%p347) target = $region48
        $region47: #{tpu_custom_call.1} parent=43 // pred_region
          %350 = dma.done [#allocation4], 128
        $region48: #{tpu_custom_call.1} parent=43 // pred_fallthru
          _
        // Predicated region
        $region49: #{tpu_custom_call.1} parent=43 // pred_check
          %p351 = pneg %p77
        $region50: #{tpu_custom_call.1} parent=43 // pred_check_branch
          %353 = sbr.rel (%p351) target = $region52
        $region51: #{tpu_custom_call.1} parent=43 // pred_region
          %354 = dma.done [#allocation7], 384
        $region52: #{tpu_custom_call.1} parent=43 // pred_fallthru
          _
        // Predicated region
        $region53: #{tpu_custom_call.1} parent=43 // pred_check
          %p355 = pneg %p98
        $region54: #{tpu_custom_call.1} parent=43 // pred_check_branch
          %357 = sbr.rel (%p355) target = $region56
        $region55: #{tpu_custom_call.1} parent=43 // pred_region
          %358 = dma.done [#allocation7], 24576
        $region56: #{tpu_custom_call.1} parent=43 // pred_fallthru
          _
        %s359 = sand.u32 %s28, 1
        %s360 = scalar_lea.sflag [#allocation10], %s359
        %s361 = sand.u32 %s115, 1
        %s362 = smul.addr %s361, 1024
        %s363 = scalar_lea.vmem [#allocation9], %s362
        // Predicated region
        $region57: #{tpu_custom_call.1} parent=43 // pred_check
          %p364 = pneg %p128
        $region58: #{tpu_custom_call.1} parent=43 // pred_check_branch
          %366 = sbr.rel (%p364) target = $region60
        $region59: #{tpu_custom_call.1} parent=43 // pred_region
          %367 = dma.done %s360, 16384
        $region60: #{tpu_custom_call.1} parent=43 // pred_fallthru
          _
        %s368 = sand.u32 %s28, 1
        %s369 = scalar_lea.sflag [#allocation10], %s368
        %s370 = sand.u32 %s145, 1
        %s371 = smul.addr %s370, 512
        %s372 = scalar_lea.vmem [#allocation11], %s371
        // Predicated region
        $region61: #{tpu_custom_call.1} parent=43 // pred_check
          %p373 = pneg %p158
        $region62: #{tpu_custom_call.1} parent=43 // pred_check_branch
          %375 = sbr.rel (%p373) target = $region64
        $region63: #{tpu_custom_call.1} parent=43 // pred_region
          %376 = dma.done %s369, 8192
        $region64: #{tpu_custom_call.1} parent=43 // pred_fallthru
          _
        %s377 = sand.u32 %s175, 1
        %s378 = scalar_lea.sflag [#allocation13], %s377
        %s379 = sand.u32 %s175, 1
        %s380 = smul.addr %s379, 2
        %s381 = scalar_lea.vmem [#allocation12], %s380
        // Predicated region
        $region65: #{tpu_custom_call.1} parent=43 // pred_check
          %p382 = pneg %p188
        $region66: #{tpu_custom_call.1} parent=43 // pred_check_branch
          %384 = sbr.rel (%p382) target = $region68
        $region67: #{tpu_custom_call.1} parent=43 // pred_region
          %385 = dma.done %s378, 32
        $region68: #{tpu_custom_call.1} parent=43 // pred_fallthru
          _
        %p386 = pneg %p56
        %p387 = pneg %p53
        %p388 = pneg %p77
        %p389 = pneg %p74
        %p390 = pneg %p98
        %p391 = pneg %p95
        %s392 = sand.u32 %s28, 1
        %s393 = scalar_lea.sflag [#allocation10], %s392
        %s394 = sand.u32 %s115, 1
        %s395 = smul.addr %s394, 1024
        %s396 = scalar_lea.vmem [#allocation9], %s395
        %p397 = pneg %p128
        %p398 = pneg %p125
        %s399 = sand.u32 %s28, 1
        %s400 = scalar_lea.sflag [#allocation10], %s399
        %s401 = sand.u32 %s145, 1
        %s402 = smul.addr %s401, 512
        %s403 = scalar_lea.vmem [#allocation11], %s402
        %p404 = pneg %p158
        %p405 = pneg %p155
        %s406 = sand.u32 %s175, 1
        %s407 = scalar_lea.sflag [#allocation13], %s406
        %s408 = sand.u32 %s175, 1
        %s409 = smul.addr %s408, 2
        %s410 = scalar_lea.vmem [#allocation12], %s409
        %p411 = pneg %p188
        %p412 = pneg %p185
        %p413 = pneg %p214
        %p414 = pneg %p211
        %s415 = sand.u32 %s201, 1
        %s416 = scalar_lea.sflag [#allocation5], %s415
        %s417 = sand.u32 %s201, 1
        %s418 = smul.addr %s417, 64
        %s419 = scalar_lea.vmem [#allocation14], %s418
        %s420 = smul.u32 %s32, 2
        %s421 = sadd.s32 %s420, %s33
        %s422 = smul.u32 2, %s421
        %s423 = smul.u32 %s32, 2
        %s424 = sadd.s32 %s423, %s33
        %s425 = smul.u32 32, %s424
        %s426 = smul.u32 %s32, 2
        %s427 = sadd.s32 %s426, %s33
        %s428 = smul.u32 2, %s427
        %p430 = scmp.eq.s32.totalorder %s33, 0
        // Predicated region
        $region69: #{tpu_custom_call.1} parent=43 // pred_check
          %p431 = pneg %p430
        $region70: #{tpu_custom_call.1} parent=43 // pred_check_branch
          %433 = sbr.rel (%p431) target = $region72
        $region71: #{tpu_custom_call.1} parent=43 // pred_region
          %v434 = vld [vmem:[#allocation6] sm:$0xff]
          %v435 = vld [vmem:[#allocation6 + $0x8] sm:$0xf]
          %v436 = vld [vmem:[#allocation6 + $0xc] sm:$0xff]
          %v437 = vld [vmem:[#allocation6 + $0x14] sm:$0xf]
          %v438 = vld [vmem:[#allocation8] sm:$0xff]
          %v439 = vld [vmem:[#allocation8 + $0x8] sm:$0xff]
          %v440 = vld [vmem:[#allocation8 + $0x10] sm:$0xff]
          %v441 = vld [vmem:[#allocation8 + $0x18] sm:$0xff]
          %v442 = vld [vmem:[#allocation8 + $0x20] sm:$0xff]
          %v443 = vld [vmem:[#allocation8 + $0x28] sm:$0xff]
          %v444 = vld [vmem:[#allocation8 + $0x30] sm:$0xff]
          %v445 = vld [vmem:[#allocation8 + $0x38] sm:$0xff]
          %v446 = vld [vmem:[#allocation8 + $0x40] sm:$0xff]
          %v447 = vld [vmem:[#allocation8 + $0x48] sm:$0xff]
          %v448 = vld [vmem:[#allocation8 + $0x50] sm:$0xff]
          %v449 = vld [vmem:[#allocation8 + $0x58] sm:$0xff]
          %v450 = vld [vmem:[#allocation8 + $0x60] sm:$0xff]
          %v451 = vld [vmem:[#allocation8 + $0x68] sm:$0xff]
          %v452 = vld [vmem:[#allocation8 + $0x70] sm:$0xff]
          %v453 = vld [vmem:[#allocation8 + $0x78] sm:$0xff]
          %v454 = vld [vmem:[#allocation8 + $0x80] sm:$0xff]
          %v455 = vld [vmem:[#allocation8 + $0x88] sm:$0xff]
          %v456 = vld [vmem:[#allocation8 + $0x90] sm:$0xff]
          %v457 = vld [vmem:[#allocation8 + $0x98] sm:$0xff]
          %v458 = vld [vmem:[#allocation8 + $0xa0] sm:$0xff]
          %v459 = vld [vmem:[#allocation8 + $0xa8] sm:$0xff]
          %v460 = vld [vmem:[#allocation8 + $0xb0] sm:$0xff]
          %v461 = vld [vmem:[#allocation8 + $0xb8] sm:$0xff]
          %v462 = vld [vmem:[#allocation8 + $0xc0] sm:$0xff]
          %v463 = vld [vmem:[#allocation8 + $0xc8] sm:$0xff]
          %v464 = vld [vmem:[#allocation8 + $0xd0] sm:$0xff]
          %v465 = vld [vmem:[#allocation8 + $0xd8] sm:$0xff]
          %v466 = vld [vmem:[#allocation8 + $0xe0] sm:$0xff]
          %v467 = vld [vmem:[#allocation8 + $0xe8] sm:$0xff]
          %v468 = vld [vmem:[#allocation8 + $0xf0] sm:$0xff]
          %v469 = vld [vmem:[#allocation8 + $0xf8] sm:$0xff]
          %v470 = vld [vmem:[#allocation8 + $0x100] sm:$0xff]
          %v471 = vld [vmem:[#allocation8 + $0x108] sm:$0xff]
          %v472 = vld [vmem:[#allocation8 + $0x110] sm:$0xff]
          %v473 = vld [vmem:[#allocation8 + $0x118] sm:$0xff]
          %v474 = vld [vmem:[#allocation8 + $0x120] sm:$0xff]
          %v475 = vld [vmem:[#allocation8 + $0x128] sm:$0xff]
          %v476 = vld [vmem:[#allocation8 + $0x130] sm:$0xff]
          %v477 = vld [vmem:[#allocation8 + $0x138] sm:$0xff]
          %v478 = vld [vmem:[#allocation8 + $0x140] sm:$0xff]
          %v479 = vld [vmem:[#allocation8 + $0x148] sm:$0xff]
          %v480 = vld [vmem:[#allocation8 + $0x150] sm:$0xff]
          %v481 = vld [vmem:[#allocation8 + $0x158] sm:$0xff]
          %v482 = vld [vmem:[#allocation8 + $0x160] sm:$0xff]
          %v483 = vld [vmem:[#allocation8 + $0x168] sm:$0xff]
          %v484 = vld [vmem:[#allocation8 + $0x170] sm:$0xff]
          %v485 = vld [vmem:[#allocation8 + $0x178] sm:$0xff]
          %v486 = vld [vmem:[#allocation8 + $0x180] sm:$0xff]
          %v487 = vld [vmem:[#allocation8 + $0x188] sm:$0xff]
          %v488 = vld [vmem:[#allocation8 + $0x190] sm:$0xff]
          %v489 = vld [vmem:[#allocation8 + $0x198] sm:$0xff]
          %v490 = vld [vmem:[#allocation8 + $0x1a0] sm:$0xff]
          %v491 = vld [vmem:[#allocation8 + $0x1a8] sm:$0xff]
          %v492 = vld [vmem:[#allocation8 + $0x1b0] sm:$0xff]
          %v493 = vld [vmem:[#allocation8 + $0x1b8] sm:$0xff]
          %v494 = vld [vmem:[#allocation8 + $0x1c0] sm:$0xff]
          %v495 = vld [vmem:[#allocation8 + $0x1c8] sm:$0xff]
          %v496 = vld [vmem:[#allocation8 + $0x1d0] sm:$0xff]
          %v497 = vld [vmem:[#allocation8 + $0x1d8] sm:$0xff]
          %v498 = vld [vmem:[#allocation8 + $0x1e0] sm:$0xff]
          %v499 = vld [vmem:[#allocation8 + $0x1e8] sm:$0xff]
          %v500 = vld [vmem:[#allocation8 + $0x1f0] sm:$0xff]
          %v501 = vld [vmem:[#allocation8 + $0x1f8] sm:$0xff]
          %v502 = vld [vmem:[#allocation8 + $0x200] sm:$0xff]
          %v503 = vld [vmem:[#allocation8 + $0x208] sm:$0xff]
          %v504 = vld [vmem:[#allocation8 + $0x210] sm:$0xff]
          %v505 = vld [vmem:[#allocation8 + $0x218] sm:$0xff]
          %v506 = vld [vmem:[#allocation8 + $0x220] sm:$0xff]
          %v507 = vld [vmem:[#allocation8 + $0x228] sm:$0xff]
          %v508 = vld [vmem:[#allocation8 + $0x230] sm:$0xff]
          %v509 = vld [vmem:[#allocation8 + $0x238] sm:$0xff]
          %v510 = vld [vmem:[#allocation8 + $0x240] sm:$0xff]
          %v511 = vld [vmem:[#allocation8 + $0x248] sm:$0xff]
          %v512 = vld [vmem:[#allocation8 + $0x250] sm:$0xff]
          %v513 = vld [vmem:[#allocation8 + $0x258] sm:$0xff]
          %v514 = vld [vmem:[#allocation8 + $0x260] sm:$0xff]
          %v515 = vld [vmem:[#allocation8 + $0x268] sm:$0xff]
          %v516 = vld [vmem:[#allocation8 + $0x270] sm:$0xff]
          %v517 = vld [vmem:[#allocation8 + $0x278] sm:$0xff]
          %v518 = vld [vmem:[#allocation8 + $0x280] sm:$0xff]
          %v519 = vld [vmem:[#allocation8 + $0x288] sm:$0xff]
          %v520 = vld [vmem:[#allocation8 + $0x290] sm:$0xff]
          %v521 = vld [vmem:[#allocation8 + $0x298] sm:$0xff]
          %v522 = vld [vmem:[#allocation8 + $0x2a0] sm:$0xff]
          %v523 = vld [vmem:[#allocation8 + $0x2a8] sm:$0xff]
          %v524 = vld [vmem:[#allocation8 + $0x2b0] sm:$0xff]
          %v525 = vld [vmem:[#allocation8 + $0x2b8] sm:$0xff]
          %v526 = vld [vmem:[#allocation8 + $0x2c0] sm:$0xff]
          %v527 = vld [vmem:[#allocation8 + $0x2c8] sm:$0xff]
          %v528 = vld [vmem:[#allocation8 + $0x2d0] sm:$0xff]
          %v529 = vld [vmem:[#allocation8 + $0x2d8] sm:$0xff]
          %v530 = vld [vmem:[#allocation8 + $0x2e0] sm:$0xff]
          %v531 = vld [vmem:[#allocation8 + $0x2e8] sm:$0xff]
          %v532 = vld [vmem:[#allocation8 + $0x2f0] sm:$0xff]
          %v533 = vld [vmem:[#allocation8 + $0x2f8] sm:$0xff]
          %v534 = vld [vmem:[#allocation8 + $0x300] sm:$0xff]
          %v535 = vld [vmem:[#allocation8 + $0x308] sm:$0xff]
          %v536 = vld [vmem:[#allocation8 + $0x310] sm:$0xff]
          %v537 = vld [vmem:[#allocation8 + $0x318] sm:$0xff]
          %v538 = vld [vmem:[#allocation8 + $0x320] sm:$0xff]
          %v539 = vld [vmem:[#allocation8 + $0x328] sm:$0xff]
          %v540 = vld [vmem:[#allocation8 + $0x330] sm:$0xff]
          %v541 = vld [vmem:[#allocation8 + $0x338] sm:$0xff]
          %v542 = vld [vmem:[#allocation8 + $0x340] sm:$0xff]
          %v543 = vld [vmem:[#allocation8 + $0x348] sm:$0xff]
          %v544 = vld [vmem:[#allocation8 + $0x350] sm:$0xff]
          %v545 = vld [vmem:[#allocation8 + $0x358] sm:$0xff]
          %v546 = vld [vmem:[#allocation8 + $0x360] sm:$0xff]
          %v547 = vld [vmem:[#allocation8 + $0x368] sm:$0xff]
          %v548 = vld [vmem:[#allocation8 + $0x370] sm:$0xff]
          %v549 = vld [vmem:[#allocation8 + $0x378] sm:$0xff]
          %v550 = vld [vmem:[#allocation8 + $0x380] sm:$0xff]
          %v551 = vld [vmem:[#allocation8 + $0x388] sm:$0xff]
          %v552 = vld [vmem:[#allocation8 + $0x390] sm:$0xff]
          %v553 = vld [vmem:[#allocation8 + $0x398] sm:$0xff]
          %v554 = vld [vmem:[#allocation8 + $0x3a0] sm:$0xff]
          %v555 = vld [vmem:[#allocation8 + $0x3a8] sm:$0xff]
          %v556 = vld [vmem:[#allocation8 + $0x3b0] sm:$0xff]
          %v557 = vld [vmem:[#allocation8 + $0x3b8] sm:$0xff]
          %v558 = vld [vmem:[#allocation8 + $0x3c0] sm:$0xff]
          %v559 = vld [vmem:[#allocation8 + $0x3c8] sm:$0xff]
          %v560 = vld [vmem:[#allocation8 + $0x3d0] sm:$0xff]
          %v561 = vld [vmem:[#allocation8 + $0x3d8] sm:$0xff]
          %v562 = vld [vmem:[#allocation8 + $0x3e0] sm:$0xff]
          %v563 = vld [vmem:[#allocation8 + $0x3e8] sm:$0xff]
          %v564 = vld [vmem:[#allocation8 + $0x3f0] sm:$0xff]
          %v565 = vld [vmem:[#allocation8 + $0x3f8] sm:$0xff]
          %v566 = vld [vmem:[#allocation8 + $0x400] sm:$0xff]
          %v567 = vld [vmem:[#allocation8 + $0x408] sm:$0xff]
          %v568 = vld [vmem:[#allocation8 + $0x410] sm:$0xff]
          %v569 = vld [vmem:[#allocation8 + $0x418] sm:$0xff]
          %v570 = vld [vmem:[#allocation8 + $0x420] sm:$0xff]
          %v571 = vld [vmem:[#allocation8 + $0x428] sm:$0xff]
          %v572 = vld [vmem:[#allocation8 + $0x430] sm:$0xff]
          %v573 = vld [vmem:[#allocation8 + $0x438] sm:$0xff]
          %v574 = vld [vmem:[#allocation8 + $0x440] sm:$0xff]
          %v575 = vld [vmem:[#allocation8 + $0x448] sm:$0xff]
          %v576 = vld [vmem:[#allocation8 + $0x450] sm:$0xff]
          %v577 = vld [vmem:[#allocation8 + $0x458] sm:$0xff]
          %v578 = vld [vmem:[#allocation8 + $0x460] sm:$0xff]
          %v579 = vld [vmem:[#allocation8 + $0x468] sm:$0xff]
          %v580 = vld [vmem:[#allocation8 + $0x470] sm:$0xff]
          %v581 = vld [vmem:[#allocation8 + $0x478] sm:$0xff]
          %v582 = vld [vmem:[#allocation8 + $0x480] sm:$0xff]
          %v583 = vld [vmem:[#allocation8 + $0x488] sm:$0xff]
          %v584 = vld [vmem:[#allocation8 + $0x490] sm:$0xff]
          %v585 = vld [vmem:[#allocation8 + $0x498] sm:$0xff]
          %v586 = vld [vmem:[#allocation8 + $0x4a0] sm:$0xff]
          %v587 = vld [vmem:[#allocation8 + $0x4a8] sm:$0xff]
          %v588 = vld [vmem:[#allocation8 + $0x4b0] sm:$0xff]
          %v589 = vld [vmem:[#allocation8 + $0x4b8] sm:$0xff]
          %v590 = vld [vmem:[#allocation8 + $0x4c0] sm:$0xff]
          %v591 = vld [vmem:[#allocation8 + $0x4c8] sm:$0xff]
          %v592 = vld [vmem:[#allocation8 + $0x4d0] sm:$0xff]
          %v593 = vld [vmem:[#allocation8 + $0x4d8] sm:$0xff]
          %v594 = vld [vmem:[#allocation8 + $0x4e0] sm:$0xff]
          %v595 = vld [vmem:[#allocation8 + $0x4e8] sm:$0xff]
          %v596 = vld [vmem:[#allocation8 + $0x4f0] sm:$0xff]
          %v597 = vld [vmem:[#allocation8 + $0x4f8] sm:$0xff]
          %v598 = vld [vmem:[#allocation8 + $0x500] sm:$0xff]
          %v599 = vld [vmem:[#allocation8 + $0x508] sm:$0xff]
          %v600 = vld [vmem:[#allocation8 + $0x510] sm:$0xff]
          %v601 = vld [vmem:[#allocation8 + $0x518] sm:$0xff]
          %v602 = vld [vmem:[#allocation8 + $0x520] sm:$0xff]
          %v603 = vld [vmem:[#allocation8 + $0x528] sm:$0xff]
          %v604 = vld [vmem:[#allocation8 + $0x530] sm:$0xff]
          %v605 = vld [vmem:[#allocation8 + $0x538] sm:$0xff]
          %v606 = vld [vmem:[#allocation8 + $0x540] sm:$0xff]
          %v607 = vld [vmem:[#allocation8 + $0x548] sm:$0xff]
          %v608 = vld [vmem:[#allocation8 + $0x550] sm:$0xff]
          %v609 = vld [vmem:[#allocation8 + $0x558] sm:$0xff]
          %v610 = vld [vmem:[#allocation8 + $0x560] sm:$0xff]
          %v611 = vld [vmem:[#allocation8 + $0x568] sm:$0xff]
          %v612 = vld [vmem:[#allocation8 + $0x570] sm:$0xff]
          %v613 = vld [vmem:[#allocation8 + $0x578] sm:$0xff]
          %v614 = vld [vmem:[#allocation8 + $0x580] sm:$0xff]
          %v615 = vld [vmem:[#allocation8 + $0x588] sm:$0xff]
          %v616 = vld [vmem:[#allocation8 + $0x590] sm:$0xff]
          %v617 = vld [vmem:[#allocation8 + $0x598] sm:$0xff]
          %v618 = vld [vmem:[#allocation8 + $0x5a0] sm:$0xff]
          %v619 = vld [vmem:[#allocation8 + $0x5a8] sm:$0xff]
          %v620 = vld [vmem:[#allocation8 + $0x5b0] sm:$0xff]
          %v621 = vld [vmem:[#allocation8 + $0x5b8] sm:$0xff]
          %v622 = vld [vmem:[#allocation8 + $0x5c0] sm:$0xff]
          %v623 = vld [vmem:[#allocation8 + $0x5c8] sm:$0xff]
          %v624 = vld [vmem:[#allocation8 + $0x5d0] sm:$0xff]
          %v625 = vld [vmem:[#allocation8 + $0x5d8] sm:$0xff]
          %v626 = vld [vmem:[#allocation8 + $0x5e0] sm:$0xff]
          %v627 = vld [vmem:[#allocation8 + $0x5e8] sm:$0xff]
          %v628 = vld [vmem:[#allocation8 + $0x5f0] sm:$0xff]
          %v629 = vld [vmem:[#allocation8 + $0x5f8] sm:$0xff]
          %v634 = vunpack.c.l.b16 %v434
          %v635 = vunpack.c.h.b16 %v434
          %v636 = vunpack.c.l.b16 %v435
          %v637 = vunpack.c.l.b16 %v436
          %v638 = vunpack.c.h.b16 %v436
          %v639 = vunpack.c.l.b16 %v437
          %v640 = vpack.c.b16 %v637, %v634
          %v641 = vpack.c.b16 %v638, %v635
          %v642 = vpack.c.b16 %v639, %v636
          %v838 = vunpack.c.l.b16 %v438
          %v839 = vunpack.c.h.b16 %v438
          %v840 = vunpack.c.l.b16 %v439
          %v841 = vunpack.c.h.b16 %v439
          %v842 = vunpack.c.l.b16 %v440
          %v843 = vunpack.c.h.b16 %v440
          %v844 = vunpack.c.l.b16 %v441
          %v845 = vunpack.c.h.b16 %v441
          %v846 = vunpack.c.l.b16 %v442
          %v847 = vunpack.c.h.b16 %v442
          %v848 = vunpack.c.l.b16 %v443
          %v849 = vunpack.c.h.b16 %v443
          %v850 = vunpack.c.l.b16 %v444
          %v851 = vunpack.c.h.b16 %v444
          %v852 = vunpack.c.l.b16 %v445
          %v853 = vunpack.c.h.b16 %v445
          %v854 = vunpack.c.l.b16 %v446
          %v855 = vunpack.c.h.b16 %v446
          %v856 = vunpack.c.l.b16 %v447
          %v857 = vunpack.c.h.b16 %v447
          %v858 = vunpack.c.l.b16 %v448
          %v859 = vunpack.c.h.b16 %v448
          %v860 = vunpack.c.l.b16 %v449
          %v861 = vunpack.c.h.b16 %v449
          %v862 = vunpack.c.l.b16 %v450
          %v863 = vunpack.c.h.b16 %v450
          %v864 = vunpack.c.l.b16 %v451
          %v865 = vunpack.c.h.b16 %v451
          %v866 = vunpack.c.l.b16 %v452
          %v867 = vunpack.c.h.b16 %v452
          %v868 = vunpack.c.l.b16 %v453
          %v869 = vunpack.c.h.b16 %v453
          %v870 = vunpack.c.l.b16 %v454
          %v871 = vunpack.c.h.b16 %v454
          %v872 = vunpack.c.l.b16 %v455
          %v873 = vunpack.c.h.b16 %v455
          %v874 = vunpack.c.l.b16 %v456
          %v875 = vunpack.c.h.b16 %v456
          %v876 = vunpack.c.l.b16 %v457
          %v877 = vunpack.c.h.b16 %v457
          %v878 = vunpack.c.l.b16 %v458
          %v879 = vunpack.c.h.b16 %v458
          %v880 = vunpack.c.l.b16 %v459
          %v881 = vunpack.c.h.b16 %v459
          %v882 = vunpack.c.l.b16 %v460
          %v883 = vunpack.c.h.b16 %v460
          %v884 = vunpack.c.l.b16 %v461
          %v885 = vunpack.c.h.b16 %v461
          %v886 = vunpack.c.l.b16 %v462
          %v887 = vunpack.c.h.b16 %v462
          %v888 = vunpack.c.l.b16 %v463
          %v889 = vunpack.c.h.b16 %v463
          %v890 = vunpack.c.l.b16 %v464
          %v891 = vunpack.c.h.b16 %v464
          %v892 = vunpack.c.l.b16 %v465
          %v893 = vunpack.c.h.b16 %v465
          %v894 = vunpack.c.l.b16 %v466
          %v895 = vunpack.c.h.b16 %v466
          %v896 = vunpack.c.l.b16 %v467
          %v897 = vunpack.c.h.b16 %v467
          %v898 = vunpack.c.l.b16 %v468
          %v899 = vunpack.c.h.b16 %v468
          %v900 = vunpack.c.l.b16 %v469
          %v901 = vunpack.c.h.b16 %v469
          %v902 = vunpack.c.l.b16 %v470
          %v903 = vunpack.c.h.b16 %v470
          %v904 = vunpack.c.l.b16 %v471
          %v905 = vunpack.c.h.b16 %v471
          %v906 = vunpack.c.l.b16 %v472
          %v907 = vunpack.c.h.b16 %v472
          %v908 = vunpack.c.l.b16 %v473
          %v909 = vunpack.c.h.b16 %v473
          %v910 = vunpack.c.l.b16 %v474
          %v911 = vunpack.c.h.b16 %v474
          %v912 = vunpack.c.l.b16 %v475
          %v913 = vunpack.c.h.b16 %v475
          %v914 = vunpack.c.l.b16 %v476
          %v915 = vunpack.c.h.b16 %v476
          %v916 = vunpack.c.l.b16 %v477
          %v917 = vunpack.c.h.b16 %v477
          %v918 = vunpack.c.l.b16 %v478
          %v919 = vunpack.c.h.b16 %v478
          %v920 = vunpack.c.l.b16 %v479
          %v921 = vunpack.c.h.b16 %v479
          %v922 = vunpack.c.l.b16 %v480
          %v923 = vunpack.c.h.b16 %v480
          %v924 = vunpack.c.l.b16 %v481
          %v925 = vunpack.c.h.b16 %v481
          %v926 = vunpack.c.l.b16 %v482
          %v927 = vunpack.c.h.b16 %v482
          %v928 = vunpack.c.l.b16 %v483
          %v929 = vunpack.c.h.b16 %v483
          %v930 = vunpack.c.l.b16 %v484
          %v931 = vunpack.c.h.b16 %v484
          %v932 = vunpack.c.l.b16 %v485
          %v933 = vunpack.c.h.b16 %v485
          %v934 = vunpack.c.l.b16 %v486
          %v935 = vunpack.c.h.b16 %v486
          %v936 = vunpack.c.l.b16 %v487
          %v937 = vunpack.c.h.b16 %v487
          %v938 = vunpack.c.l.b16 %v488
          %v939 = vunpack.c.h.b16 %v488
          %v940 = vunpack.c.l.b16 %v489
          %v941 = vunpack.c.h.b16 %v489
          %v942 = vunpack.c.l.b16 %v490
          %v943 = vunpack.c.h.b16 %v490
          %v944 = vunpack.c.l.b16 %v491
          %v945 = vunpack.c.h.b16 %v491
          %v946 = vunpack.c.l.b16 %v492
          %v947 = vunpack.c.h.b16 %v492
          %v948 = vunpack.c.l.b16 %v493
          %v949 = vunpack.c.h.b16 %v493
          %v950 = vunpack.c.l.b16 %v494
          %v951 = vunpack.c.h.b16 %v494
          %v952 = vunpack.c.l.b16 %v495
          %v953 = vunpack.c.h.b16 %v495
          %v954 = vunpack.c.l.b16 %v496
          %v955 = vunpack.c.h.b16 %v496
          %v956 = vunpack.c.l.b16 %v497
          %v957 = vunpack.c.h.b16 %v497
          %v958 = vunpack.c.l.b16 %v498
          %v959 = vunpack.c.h.b16 %v498
          %v960 = vunpack.c.l.b16 %v499
          %v961 = vunpack.c.h.b16 %v499
          %v962 = vunpack.c.l.b16 %v500
          %v963 = vunpack.c.h.b16 %v500
          %v964 = vunpack.c.l.b16 %v501
          %v965 = vunpack.c.h.b16 %v501
          %v966 = vunpack.c.l.b16 %v502
          %v967 = vunpack.c.h.b16 %v502
          %v968 = vunpack.c.l.b16 %v503
          %v969 = vunpack.c.h.b16 %v503
          %v970 = vunpack.c.l.b16 %v504
          %v971 = vunpack.c.h.b16 %v504
          %v972 = vunpack.c.l.b16 %v505
          %v973 = vunpack.c.h.b16 %v505
          %v974 = vunpack.c.l.b16 %v506
          %v975 = vunpack.c.h.b16 %v506
          %v976 = vunpack.c.l.b16 %v507
          %v977 = vunpack.c.h.b16 %v507
          %v978 = vunpack.c.l.b16 %v508
          %v979 = vunpack.c.h.b16 %v508
          %v980 = vunpack.c.l.b16 %v509
          %v981 = vunpack.c.h.b16 %v509
          %v982 = vunpack.c.l.b16 %v510
          %v983 = vunpack.c.h.b16 %v510
          %v984 = vunpack.c.l.b16 %v511
          %v985 = vunpack.c.h.b16 %v511
          %v986 = vunpack.c.l.b16 %v512
          %v987 = vunpack.c.h.b16 %v512
          %v988 = vunpack.c.l.b16 %v513
          %v989 = vunpack.c.h.b16 %v513
          %v990 = vunpack.c.l.b16 %v514
          %v991 = vunpack.c.h.b16 %v514
          %v992 = vunpack.c.l.b16 %v515
          %v993 = vunpack.c.h.b16 %v515
          %v994 = vunpack.c.l.b16 %v516
          %v995 = vunpack.c.h.b16 %v516
          %v996 = vunpack.c.l.b16 %v517
          %v997 = vunpack.c.h.b16 %v517
          %v998 = vunpack.c.l.b16 %v518
          %v999 = vunpack.c.h.b16 %v518
          %v1000 = vunpack.c.l.b16 %v519
          %v1001 = vunpack.c.h.b16 %v519
          %v1002 = vunpack.c.l.b16 %v520
          %v1003 = vunpack.c.h.b16 %v520
          %v1004 = vunpack.c.l.b16 %v521
          %v1005 = vunpack.c.h.b16 %v521
          %v1006 = vunpack.c.l.b16 %v522
          %v1007 = vunpack.c.h.b16 %v522
          %v1008 = vunpack.c.l.b16 %v523
          %v1009 = vunpack.c.h.b16 %v523
          %v1010 = vunpack.c.l.b16 %v524
          %v1011 = vunpack.c.h.b16 %v524
          %v1012 = vunpack.c.l.b16 %v525
          %v1013 = vunpack.c.h.b16 %v525
          %v1014 = vunpack.c.l.b16 %v526
          %v1015 = vunpack.c.h.b16 %v526
          %v1016 = vunpack.c.l.b16 %v527
          %v1017 = vunpack.c.h.b16 %v527
          %v1018 = vunpack.c.l.b16 %v528
          %v1019 = vunpack.c.h.b16 %v528
          %v1020 = vunpack.c.l.b16 %v529
          %v1021 = vunpack.c.h.b16 %v529
          %v1022 = vunpack.c.l.b16 %v530
          %v1023 = vunpack.c.h.b16 %v530
          %v1024 = vunpack.c.l.b16 %v531
          %v1025 = vunpack.c.h.b16 %v531
          %v1026 = vunpack.c.l.b16 %v532
          %v1027 = vunpack.c.h.b16 %v532
          %v1028 = vunpack.c.l.b16 %v533
          %v1029 = vunpack.c.h.b16 %v533
          %v1030 = vunpack.c.l.b16 %v534
          %v1031 = vunpack.c.h.b16 %v534
          %v1032 = vunpack.c.l.b16 %v535
          %v1033 = vunpack.c.h.b16 %v535
          %v1034 = vunpack.c.l.b16 %v536
          %v1035 = vunpack.c.h.b16 %v536
          %v1036 = vunpack.c.l.b16 %v537
          %v1037 = vunpack.c.h.b16 %v537
          %v1038 = vunpack.c.l.b16 %v538
          %v1039 = vunpack.c.h.b16 %v538
          %v1040 = vunpack.c.l.b16 %v539
          %v1041 = vunpack.c.h.b16 %v539
          %v1042 = vunpack.c.l.b16 %v540
          %v1043 = vunpack.c.h.b16 %v540
          %v1044 = vunpack.c.l.b16 %v541
          %v1045 = vunpack.c.h.b16 %v541
          %v1046 = vunpack.c.l.b16 %v542
          %v1047 = vunpack.c.h.b16 %v542
          %v1048 = vunpack.c.l.b16 %v543
          %v1049 = vunpack.c.h.b16 %v543
          %v1050 = vunpack.c.l.b16 %v544
          %v1051 = vunpack.c.h.b16 %v544
          %v1052 = vunpack.c.l.b16 %v545
          %v1053 = vunpack.c.h.b16 %v545
          %v1054 = vunpack.c.l.b16 %v546
          %v1055 = vunpack.c.h.b16 %v546
          %v1056 = vunpack.c.l.b16 %v547
          %v1057 = vunpack.c.h.b16 %v547
          %v1058 = vunpack.c.l.b16 %v548
          %v1059 = vunpack.c.h.b16 %v548
          %v1060 = vunpack.c.l.b16 %v549
          %v1061 = vunpack.c.h.b16 %v549
          %v1062 = vunpack.c.l.b16 %v550
          %v1063 = vunpack.c.h.b16 %v550
          %v1064 = vunpack.c.l.b16 %v551
          %v1065 = vunpack.c.h.b16 %v551
          %v1066 = vunpack.c.l.b16 %v552
          %v1067 = vunpack.c.h.b16 %v552
          %v1068 = vunpack.c.l.b16 %v553
          %v1069 = vunpack.c.h.b16 %v553
          %v1070 = vunpack.c.l.b16 %v554
          %v1071 = vunpack.c.h.b16 %v554
          %v1072 = vunpack.c.l.b16 %v555
          %v1073 = vunpack.c.h.b16 %v555
          %v1074 = vunpack.c.l.b16 %v556
          %v1075 = vunpack.c.h.b16 %v556
          %v1076 = vunpack.c.l.b16 %v557
          %v1077 = vunpack.c.h.b16 %v557
          %v1078 = vunpack.c.l.b16 %v558
          %v1079 = vunpack.c.h.b16 %v558
          %v1080 = vunpack.c.l.b16 %v559
          %v1081 = vunpack.c.h.b16 %v559
          %v1082 = vunpack.c.l.b16 %v560
          %v1083 = vunpack.c.h.b16 %v560
          %v1084 = vunpack.c.l.b16 %v561
          %v1085 = vunpack.c.h.b16 %v561
          %v1086 = vunpack.c.l.b16 %v562
          %v1087 = vunpack.c.h.b16 %v562
          %v1088 = vunpack.c.l.b16 %v563
          %v1089 = vunpack.c.h.b16 %v563
          %v1090 = vunpack.c.l.b16 %v564
          %v1091 = vunpack.c.h.b16 %v564
          %v1092 = vunpack.c.l.b16 %v565
          %v1093 = vunpack.c.h.b16 %v565
          %v1094 = vunpack.c.l.b16 %v566
          %v1095 = vunpack.c.h.b16 %v566
          %v1096 = vunpack.c.l.b16 %v567
          %v1097 = vunpack.c.h.b16 %v567
          %v1098 = vunpack.c.l.b16 %v568
          %v1099 = vunpack.c.h.b16 %v568
          %v1100 = vunpack.c.l.b16 %v569
          %v1101 = vunpack.c.h.b16 %v569
          %v1102 = vunpack.c.l.b16 %v570
          %v1103 = vunpack.c.h.b16 %v570
          %v1104 = vunpack.c.l.b16 %v571
          %v1105 = vunpack.c.h.b16 %v571
          %v1106 = vunpack.c.l.b16 %v572
          %v1107 = vunpack.c.h.b16 %v572
          %v1108 = vunpack.c.l.b16 %v573
          %v1109 = vunpack.c.h.b16 %v573
          %v1110 = vunpack.c.l.b16 %v574
          %v1111 = vunpack.c.h.b16 %v574
          %v1112 = vunpack.c.l.b16 %v575
          %v1113 = vunpack.c.h.b16 %v575
          %v1114 = vunpack.c.l.b16 %v576
          %v1115 = vunpack.c.h.b16 %v576
          %v1116 = vunpack.c.l.b16 %v577
          %v1117 = vunpack.c.h.b16 %v577
          %v1118 = vunpack.c.l.b16 %v578
          %v1119 = vunpack.c.h.b16 %v578
          %v1120 = vunpack.c.l.b16 %v579
          %v1121 = vunpack.c.h.b16 %v579
          %v1122 = vunpack.c.l.b16 %v580
          %v1123 = vunpack.c.h.b16 %v580
          %v1124 = vunpack.c.l.b16 %v581
          %v1125 = vunpack.c.h.b16 %v581
          %v1126 = vunpack.c.l.b16 %v582
          %v1127 = vunpack.c.h.b16 %v582
          %v1128 = vunpack.c.l.b16 %v583
          %v1129 = vunpack.c.h.b16 %v583
          %v1130 = vunpack.c.l.b16 %v584
          %v1131 = vunpack.c.h.b16 %v584
          %v1132 = vunpack.c.l.b16 %v585
          %v1133 = vunpack.c.h.b16 %v585
          %v1134 = vunpack.c.l.b16 %v586
          %v1135 = vunpack.c.h.b16 %v586
          %v1136 = vunpack.c.l.b16 %v587
          %v1137 = vunpack.c.h.b16 %v587
          %v1138 = vunpack.c.l.b16 %v588
          %v1139 = vunpack.c.h.b16 %v588
          %v1140 = vunpack.c.l.b16 %v589
          %v1141 = vunpack.c.h.b16 %v589
          %v1142 = vunpack.c.l.b16 %v590
          %v1143 = vunpack.c.h.b16 %v590
          %v1144 = vunpack.c.l.b16 %v591
          %v1145 = vunpack.c.h.b16 %v591
          %v1146 = vunpack.c.l.b16 %v592
          %v1147 = vunpack.c.h.b16 %v592
          %v1148 = vunpack.c.l.b16 %v593
          %v1149 = vunpack.c.h.b16 %v593
          %v1150 = vunpack.c.l.b16 %v594
          %v1151 = vunpack.c.h.b16 %v594
          %v1152 = vunpack.c.l.b16 %v595
          %v1153 = vunpack.c.h.b16 %v595
          %v1154 = vunpack.c.l.b16 %v596
          %v1155 = vunpack.c.h.b16 %v596
          %v1156 = vunpack.c.l.b16 %v597
          %v1157 = vunpack.c.h.b16 %v597
          %v1158 = vunpack.c.l.b16 %v598
          %v1159 = vunpack.c.h.b16 %v598
          %v1160 = vunpack.c.l.b16 %v599
          %v1161 = vunpack.c.h.b16 %v599
          %v1162 = vunpack.c.l.b16 %v600
          %v1163 = vunpack.c.h.b16 %v600
          %v1164 = vunpack.c.l.b16 %v601
          %v1165 = vunpack.c.h.b16 %v601
          %v1166 = vunpack.c.l.b16 %v602
          %v1167 = vunpack.c.h.b16 %v602
          %v1168 = vunpack.c.l.b16 %v603
          %v1169 = vunpack.c.h.b16 %v603
          %v1170 = vunpack.c.l.b16 %v604
          %v1171 = vunpack.c.h.b16 %v604
          %v1172 = vunpack.c.l.b16 %v605
          %v1173 = vunpack.c.h.b16 %v605
          %v1174 = vunpack.c.l.b16 %v606
          %v1175 = vunpack.c.h.b16 %v606
          %v1176 = vunpack.c.l.b16 %v607
          %v1177 = vunpack.c.h.b16 %v607
          %v1178 = vunpack.c.l.b16 %v608
          %v1179 = vunpack.c.h.b16 %v608
          %v1180 = vunpack.c.l.b16 %v609
          %v1181 = vunpack.c.h.b16 %v609
          %v1182 = vunpack.c.l.b16 %v610
          %v1183 = vunpack.c.h.b16 %v610
          %v1184 = vunpack.c.l.b16 %v611
          %v1185 = vunpack.c.h.b16 %v611
          %v1186 = vunpack.c.l.b16 %v612
          %v1187 = vunpack.c.h.b16 %v612
          %v1188 = vunpack.c.l.b16 %v613
          %v1189 = vunpack.c.h.b16 %v613
          %v1190 = vunpack.c.l.b16 %v614
          %v1191 = vunpack.c.h.b16 %v614
          %v1192 = vunpack.c.l.b16 %v615
          %v1193 = vunpack.c.h.b16 %v615
          %v1194 = vunpack.c.l.b16 %v616
          %v1195 = vunpack.c.h.b16 %v616
          %v1196 = vunpack.c.l.b16 %v617
          %v1197 = vunpack.c.h.b16 %v617
          %v1198 = vunpack.c.l.b16 %v618
          %v1199 = vunpack.c.h.b16 %v618
          %v1200 = vunpack.c.l.b16 %v619
          %v1201 = vunpack.c.h.b16 %v619
          %v1202 = vunpack.c.l.b16 %v620
          %v1203 = vunpack.c.h.b16 %v620
          %v1204 = vunpack.c.l.b16 %v621
          %v1205 = vunpack.c.h.b16 %v621
          %v1206 = vunpack.c.l.b16 %v622
          %v1207 = vunpack.c.h.b16 %v622
          %v1208 = vunpack.c.l.b16 %v623
          %v1209 = vunpack.c.h.b16 %v623
          %v1210 = vunpack.c.l.b16 %v624
          %v1211 = vunpack.c.h.b16 %v624
          %v1212 = vunpack.c.l.b16 %v625
          %v1213 = vunpack.c.h.b16 %v625
          %v1214 = vunpack.c.l.b16 %v626
          %v1215 = vunpack.c.h.b16 %v626
          %v1216 = vunpack.c.l.b16 %v627
          %v1217 = vunpack.c.h.b16 %v627
          %v1218 = vunpack.c.l.b16 %v628
          %v1219 = vunpack.c.h.b16 %v628
          %v1220 = vunpack.c.l.b16 %v629
          %v1221 = vunpack.c.h.b16 %v629
          %v1222 = vpack.c.b16 %v846, %v838
          %v1223 = vpack.c.b16 %v847, %v839
          %v1224 = vpack.c.b16 %v848, %v840
          %v1225 = vpack.c.b16 %v849, %v841
          %v1226 = vpack.c.b16 %v850, %v842
          %v1227 = vpack.c.b16 %v851, %v843
          %v1228 = vpack.c.b16 %v852, %v844
          %v1229 = vpack.c.b16 %v853, %v845
          %v1230 = vpack.c.b16 %v862, %v854
          %v1231 = vpack.c.b16 %v863, %v855
          %v1232 = vpack.c.b16 %v864, %v856
          %v1233 = vpack.c.b16 %v865, %v857
          %v1234 = vpack.c.b16 %v866, %v858
          %v1235 = vpack.c.b16 %v867, %v859
          %v1236 = vpack.c.b16 %v868, %v860
          %v1237 = vpack.c.b16 %v869, %v861
          %v1238 = vpack.c.b16 %v878, %v870
          %v1239 = vpack.c.b16 %v879, %v871
          %v1240 = vpack.c.b16 %v880, %v872
          %v1241 = vpack.c.b16 %v881, %v873
          %v1242 = vpack.c.b16 %v882, %v874
          %v1243 = vpack.c.b16 %v883, %v875
          %v1244 = vpack.c.b16 %v884, %v876
          %v1245 = vpack.c.b16 %v885, %v877
          %v1246 = vpack.c.b16 %v894, %v886
          %v1247 = vpack.c.b16 %v895, %v887
          %v1248 = vpack.c.b16 %v896, %v888
          %v1249 = vpack.c.b16 %v897, %v889
          %v1250 = vpack.c.b16 %v898, %v890
          %v1251 = vpack.c.b16 %v899, %v891
          %v1252 = vpack.c.b16 %v900, %v892
          %v1253 = vpack.c.b16 %v901, %v893
          %v1254 = vpack.c.b16 %v910, %v902
          %v1255 = vpack.c.b16 %v911, %v903
          %v1256 = vpack.c.b16 %v912, %v904
          %v1257 = vpack.c.b16 %v913, %v905
          %v1258 = vpack.c.b16 %v914, %v906
          %v1259 = vpack.c.b16 %v915, %v907
          %v1260 = vpack.c.b16 %v916, %v908
          %v1261 = vpack.c.b16 %v917, %v909
          %v1262 = vpack.c.b16 %v926, %v918
          %v1263 = vpack.c.b16 %v927, %v919
          %v1264 = vpack.c.b16 %v928, %v920
          %v1265 = vpack.c.b16 %v929, %v921
          %v1266 = vpack.c.b16 %v930, %v922
          %v1267 = vpack.c.b16 %v931, %v923
          %v1268 = vpack.c.b16 %v932, %v924
          %v1269 = vpack.c.b16 %v933, %v925
          %v1270 = vpack.c.b16 %v942, %v934
          %v1271 = vpack.c.b16 %v943, %v935
          %v1272 = vpack.c.b16 %v944, %v936
          %v1273 = vpack.c.b16 %v945, %v937
          %v1274 = vpack.c.b16 %v946, %v938
          %v1275 = vpack.c.b16 %v947, %v939
          %v1276 = vpack.c.b16 %v948, %v940
          %v1277 = vpack.c.b16 %v949, %v941
          %v1278 = vpack.c.b16 %v958, %v950
          %v1279 = vpack.c.b16 %v959, %v951
          %v1280 = vpack.c.b16 %v960, %v952
          %v1281 = vpack.c.b16 %v961, %v953
          %v1282 = vpack.c.b16 %v962, %v954
          %v1283 = vpack.c.b16 %v963, %v955
          %v1284 = vpack.c.b16 %v964, %v956
          %v1285 = vpack.c.b16 %v965, %v957
          %v1286 = vpack.c.b16 %v974, %v966
          %v1287 = vpack.c.b16 %v975, %v967
          %v1288 = vpack.c.b16 %v976, %v968
          %v1289 = vpack.c.b16 %v977, %v969
          %v1290 = vpack.c.b16 %v978, %v970
          %v1291 = vpack.c.b16 %v979, %v971
          %v1292 = vpack.c.b16 %v980, %v972
          %v1293 = vpack.c.b16 %v981, %v973
          %v1294 = vpack.c.b16 %v990, %v982
          %v1295 = vpack.c.b16 %v991, %v983
          %v1296 = vpack.c.b16 %v992, %v984
          %v1297 = vpack.c.b16 %v993, %v985
          %v1298 = vpack.c.b16 %v994, %v986
          %v1299 = vpack.c.b16 %v995, %v987
          %v1300 = vpack.c.b16 %v996, %v988
          %v1301 = vpack.c.b16 %v997, %v989
          %v1302 = vpack.c.b16 %v1006, %v998
          %v1303 = vpack.c.b16 %v1007, %v999
          %v1304 = vpack.c.b16 %v1008, %v1000
          %v1305 = vpack.c.b16 %v1009, %v1001
          %v1306 = vpack.c.b16 %v1010, %v1002
          %v1307 = vpack.c.b16 %v1011, %v1003
          %v1308 = vpack.c.b16 %v1012, %v1004
          %v1309 = vpack.c.b16 %v1013, %v1005
          %v1310 = vpack.c.b16 %v1022, %v1014
          %v1311 = vpack.c.b16 %v1023, %v1015
          %v1312 = vpack.c.b16 %v1024, %v1016
          %v1313 = vpack.c.b16 %v1025, %v1017
          %v1314 = vpack.c.b16 %v1026, %v1018
          %v1315 = vpack.c.b16 %v1027, %v1019
          %v1316 = vpack.c.b16 %v1028, %v1020
          %v1317 = vpack.c.b16 %v1029, %v1021
          %v1318 = vpack.c.b16 %v1038, %v1030
          %v1319 = vpack.c.b16 %v1039, %v1031
          %v1320 = vpack.c.b16 %v1040, %v1032
          %v1321 = vpack.c.b16 %v1041, %v1033
          %v1322 = vpack.c.b16 %v1042, %v1034
          %v1323 = vpack.c.b16 %v1043, %v1035
          %v1324 = vpack.c.b16 %v1044, %v1036
          %v1325 = vpack.c.b16 %v1045, %v1037
          %v1326 = vpack.c.b16 %v1054, %v1046
          %v1327 = vpack.c.b16 %v1055, %v1047
          %v1328 = vpack.c.b16 %v1056, %v1048
          %v1329 = vpack.c.b16 %v1057, %v1049
          %v1330 = vpack.c.b16 %v1058, %v1050
          %v1331 = vpack.c.b16 %v1059, %v1051
          %v1332 = vpack.c.b16 %v1060, %v1052
          %v1333 = vpack.c.b16 %v1061, %v1053
          %v1334 = vpack.c.b16 %v1070, %v1062
          %v1335 = vpack.c.b16 %v1071, %v1063
          %v1336 = vpack.c.b16 %v1072, %v1064
          %v1337 = vpack.c.b16 %v1073, %v1065
          %v1338 = vpack.c.b16 %v1074, %v1066
          %v1339 = vpack.c.b16 %v1075, %v1067
          %v1340 = vpack.c.b16 %v1076, %v1068
          %v1341 = vpack.c.b16 %v1077, %v1069
          %v1342 = vpack.c.b16 %v1086, %v1078
          %v1343 = vpack.c.b16 %v1087, %v1079
          %v1344 = vpack.c.b16 %v1088, %v1080
          %v1345 = vpack.c.b16 %v1089, %v1081
          %v1346 = vpack.c.b16 %v1090, %v1082
          %v1347 = vpack.c.b16 %v1091, %v1083
          %v1348 = vpack.c.b16 %v1092, %v1084
          %v1349 = vpack.c.b16 %v1093, %v1085
          %v1350 = vpack.c.b16 %v1102, %v1094
          %v1351 = vpack.c.b16 %v1103, %v1095
          %v1352 = vpack.c.b16 %v1104, %v1096
          %v1353 = vpack.c.b16 %v1105, %v1097
          %v1354 = vpack.c.b16 %v1106, %v1098
          %v1355 = vpack.c.b16 %v1107, %v1099
          %v1356 = vpack.c.b16 %v1108, %v1100
          %v1357 = vpack.c.b16 %v1109, %v1101
          %v1358 = vpack.c.b16 %v1118, %v1110
          %v1359 = vpack.c.b16 %v1119, %v1111
          %v1360 = vpack.c.b16 %v1120, %v1112
          %v1361 = vpack.c.b16 %v1121, %v1113
          %v1362 = vpack.c.b16 %v1122, %v1114
          %v1363 = vpack.c.b16 %v1123, %v1115
          %v1364 = vpack.c.b16 %v1124, %v1116
          %v1365 = vpack.c.b16 %v1125, %v1117
          %v1366 = vpack.c.b16 %v1134, %v1126
          %v1367 = vpack.c.b16 %v1135, %v1127
          %v1368 = vpack.c.b16 %v1136, %v1128
          %v1369 = vpack.c.b16 %v1137, %v1129
          %v1370 = vpack.c.b16 %v1138, %v1130
          %v1371 = vpack.c.b16 %v1139, %v1131
          %v1372 = vpack.c.b16 %v1140, %v1132
          %v1373 = vpack.c.b16 %v1141, %v1133
          %v1374 = vpack.c.b16 %v1150, %v1142
          %v1375 = vpack.c.b16 %v1151, %v1143
          %v1376 = vpack.c.b16 %v1152, %v1144
          %v1377 = vpack.c.b16 %v1153, %v1145
          %v1378 = vpack.c.b16 %v1154, %v1146
          %v1379 = vpack.c.b16 %v1155, %v1147
          %v1380 = vpack.c.b16 %v1156, %v1148
          %v1381 = vpack.c.b16 %v1157, %v1149
          %v1382 = vpack.c.b16 %v1166, %v1158
          %v1383 = vpack.c.b16 %v1167, %v1159
          %v1384 = vpack.c.b16 %v1168, %v1160
          %v1385 = vpack.c.b16 %v1169, %v1161
          %v1386 = vpack.c.b16 %v1170, %v1162
          %v1387 = vpack.c.b16 %v1171, %v1163
          %v1388 = vpack.c.b16 %v1172, %v1164
          %v1389 = vpack.c.b16 %v1173, %v1165
          %v1390 = vpack.c.b16 %v1182, %v1174
          %v1391 = vpack.c.b16 %v1183, %v1175
          %v1392 = vpack.c.b16 %v1184, %v1176
          %v1393 = vpack.c.b16 %v1185, %v1177
          %v1394 = vpack.c.b16 %v1186, %v1178
          %v1395 = vpack.c.b16 %v1187, %v1179
          %v1396 = vpack.c.b16 %v1188, %v1180
          %v1397 = vpack.c.b16 %v1189, %v1181
          %v1398 = vpack.c.b16 %v1198, %v1190
          %v1399 = vpack.c.b16 %v1199, %v1191
          %v1400 = vpack.c.b16 %v1200, %v1192
          %v1401 = vpack.c.b16 %v1201, %v1193
          %v1402 = vpack.c.b16 %v1202, %v1194
          %v1403 = vpack.c.b16 %v1203, %v1195
          %v1404 = vpack.c.b16 %v1204, %v1196
          %v1405 = vpack.c.b16 %v1205, %v1197
          %v1406 = vpack.c.b16 %v1214, %v1206
          %v1407 = vpack.c.b16 %v1215, %v1207
          %v1408 = vpack.c.b16 %v1216, %v1208
          %v1409 = vpack.c.b16 %v1217, %v1209
          %v1410 = vpack.c.b16 %v1218, %v1210
          %v1411 = vpack.c.b16 %v1219, %v1211
          %v1412 = vpack.c.b16 %v1220, %v1212
          %v1413 = vpack.c.b16 %v1221, %v1213
          %1606 = vmatprep.subr.bf16.mxu0 %v1279
          %1607 = vmatpush1.bf16.msra.mxu0 %v1278
          %1608 = vmatprep.subr.bf16.mxu0 %v1271
          %1609 = vmatpush1.bf16.msra.mxu0 %v1270
          %1610 = vmatprep.subr.bf16.mxu0 %v1263
          %1611 = vmatpush1.bf16.msra.mxu0 %v1262
          %1612 = vmatprep.subr.bf16.mxu0 %v1255
          %1613 = vmatpush1.bf16.msra.mxu0 %v1254
          %1614 = vmatprep.subr.bf16.mxu0 %v1247
          %1615 = vmatpush1.bf16.msra.mxu0 %v1246
          %1616 = vmatprep.subr.bf16.mxu0 %v1239
          %1617 = vmatpush1.bf16.msra.mxu0 %v1238
          %1618 = vmatprep.subr.bf16.mxu0 %v1231
          %1619 = vmatpush1.bf16.msra.mxu0 %v1230
          %1620 = vmatprep.subr.bf16.mxu0 %v1223
          %1621 = vmatpush1.bf16.msra.mxu0 %v1222
          %1622 = vmatprep.subr.bf16.mxu0 %v1343
          %1623 = vmatpush2.bf16.msra.mxu0 %v1342
          %1624 = vmatprep.subr.bf16.mxu0 %v1335
          %1625 = vmatpush2.bf16.msra.mxu0 %v1334
          %1626 = vmatprep.subr.bf16.mxu0 %v1327
          %1627 = vmatpush2.bf16.msra.mxu0 %v1326
          %1628 = vmatprep.subr.bf16.mxu0 %v1319
          %1629 = vmatpush2.bf16.msra.mxu0 %v1318
          %1630 = vmatprep.subr.bf16.mxu0 %v1311
          %1631 = vmatpush2.bf16.msra.mxu0 %v1310
          %1632 = vmatprep.subr.bf16.mxu0 %v1303
          %1633 = vmatpush2.bf16.msra.mxu0 %v1302
          %1634 = vmatprep.subr.bf16.mxu0 %v1295
          %1635 = vmatpush2.bf16.msra.mxu0 %v1294
          %1636 = vmatprep.subr.bf16.mxu0 %v1287
          %1637 = vmatpush2.bf16.msra.mxu0 %v1286
          %1638 = vmatprep.mubr.bf16.mxu0 %v641
          %1639 = vmatmul.mubr.bf16.gmra.mxu0 %v640
          %v1640 = vpop.f32.mrf.mxu0
          %v1641 = vadd.f32 0.0, %v1640
          %v1642 = vpop.f32.mrf.mxu0
          %v1643 = vadd.f32 0.0, %v1642
          %v1644 = vpop.f32.mrf.mxu0
          %v1645 = vadd.f32 0.0, %v1644
          %v1646 = vpop.f32.mrf.mxu0
          %v1647 = vadd.f32 0.0, %v1646
          %1648 = vdwg.mxu0
          %1649 = vmatprep.subr.bf16.mxu0 %v1407
          %1650 = vmatpush1.bf16.msra.mxu0 %v1406
          %1651 = vmatprep.subr.bf16.mxu0 %v1399
          %1652 = vmatpush1.bf16.msra.mxu0 %v1398
          %1653 = vmatprep.subr.bf16.mxu0 %v1391
          %1654 = vmatpush1.bf16.msra.mxu0 %v1390
          %1655 = vmatprep.subr.bf16.mxu0 %v1383
          %1656 = vmatpush1.bf16.msra.mxu0 %v1382
          %1657 = vmatprep.subr.bf16.mxu0 %v1375
          %1658 = vmatpush1.bf16.msra.mxu0 %v1374
          %1659 = vmatprep.subr.bf16.mxu0 %v1367
          %1660 = vmatpush1.bf16.msra.mxu0 %v1366
          %1661 = vmatprep.subr.bf16.mxu0 %v1359
          %1662 = vmatpush1.bf16.msra.mxu0 %v1358
          %1663 = vmatprep.subr.bf16.mxu0 %v1351
          %1664 = vmatpush1.bf16.msra.mxu0 %v1350
          %1665 = vmatprep.subr.bf16.mxu0 0
          %1666 = vmatpush2.bf16.msra.mxu0 0
          %1667 = vmatprep.subr.bf16.mxu0 0
          %1668 = vmatpush2.bf16.msra.mxu0 0
          %1669 = vmatprep.subr.bf16.mxu0 0
          %1670 = vmatpush2.bf16.msra.mxu0 0
          %1671 = vmatprep.subr.bf16.mxu0 0
          %1672 = vmatpush2.bf16.msra.mxu0 0
          %1673 = vmatprep.subr.bf16.mxu0 0
          %1674 = vmatpush2.bf16.msra.mxu0 0
          %1675 = vmatprep.subr.bf16.mxu0 0
          %1676 = vmatpush2.bf16.msra.mxu0 0
          %1677 = vmatprep.subr.bf16.mxu0 0
          %1678 = vmatpush2.bf16.msra.mxu0 0
          %1679 = vmatprep.subr.bf16.mxu0 0
          %1680 = vmatpush2.bf16.msra.mxu0 0
          %1681 = vmatprep.mubr.bf16.mxu0 0
          %1682 = vmatmul.mubr.bf16.gmra.mxu0 %v642
          %v1683 = vpop.f32.mrf.mxu0
          %v1684 = vadd.f32 %v1641, %v1683
          %v1685 = vpop.f32.mrf.mxu0
          %v1686 = vadd.f32 %v1643, %v1685
          %v1687 = vpop.f32.mrf.mxu0
          %v1688 = vadd.f32 %v1645, %v1687
          %v1689 = vpop.f32.mrf.mxu0
          %v1690 = vadd.f32 %v1647, %v1689
          %1691 = vdwg.mxu0
          %1692 = vmatprep.subr.bf16.mxu0 %v1281
          %1693 = vmatpush1.bf16.msra.mxu0 %v1280
          %1694 = vmatprep.subr.bf16.mxu0 %v1273
          %1695 = vmatpush1.bf16.msra.mxu0 %v1272
          %1696 = vmatprep.subr.bf16.mxu0 %v1265
          %1697 = vmatpush1.bf16.msra.mxu0 %v1264
          %1698 = vmatprep.subr.bf16.mxu0 %v1257
          %1699 = vmatpush1.bf16.msra.mxu0 %v1256
          %1700 = vmatprep.subr.bf16.mxu0 %v1249
          %1701 = vmatpush1.bf16.msra.mxu0 %v1248
          %1702 = vmatprep.subr.bf16.mxu0 %v1241
          %1703 = vmatpush1.bf16.msra.mxu0 %v1240
          %1704 = vmatprep.subr.bf16.mxu0 %v1233
          %1705 = vmatpush1.bf16.msra.mxu0 %v1232
          %1706 = vmatprep.subr.bf16.mxu0 %v1225
          %1707 = vmatpush1.bf16.msra.mxu0 %v1224
          %1708 = vmatprep.subr.bf16.mxu0 %v1345
          %1709 = vmatpush2.bf16.msra.mxu0 %v1344
          %1710 = vmatprep.subr.bf16.mxu0 %v1337
          %1711 = vmatpush2.bf16.msra.mxu0 %v1336
          %1712 = vmatprep.subr.bf16.mxu0 %v1329
          %1713 = vmatpush2.bf16.msra.mxu0 %v1328
          %1714 = vmatprep.subr.bf16.mxu0 %v1321
          %1715 = vmatpush2.bf16.msra.mxu0 %v1320
          %1716 = vmatprep.subr.bf16.mxu0 %v1313
          %1717 = vmatpush2.bf16.msra.mxu0 %v1312
          %1718 = vmatprep.subr.bf16.mxu0 %v1305
          %1719 = vmatpush2.bf16.msra.mxu0 %v1304
          %1720 = vmatprep.subr.bf16.mxu0 %v1297
          %1721 = vmatpush2.bf16.msra.mxu0 %v1296
          %1722 = vmatprep.subr.bf16.mxu0 %v1289
          %1723 = vmatpush2.bf16.msra.mxu0 %v1288
          %1724 = vmatprep.mubr.bf16.mxu0 %v641
          %1725 = vmatmul.mubr.bf16.gmra.mxu0 %v640
          %v1726 = vpop.f32.mrf.mxu0
          %v1727 = vadd.f32 0.0, %v1726
          %v1728 = vpop.f32.mrf.mxu0
          %v1729 = vadd.f32 0.0, %v1728
          %v1730 = vpop.f32.mrf.mxu0
          %v1731 = vadd.f32 0.0, %v1730
          %v1732 = vpop.f32.mrf.mxu0
          %v1733 = vadd.f32 0.0, %v1732
          %1734 = vdwg.mxu0
          %1735 = vmatprep.subr.bf16.mxu0 %v1409
          %1736 = vmatpush1.bf16.msra.mxu0 %v1408
          %1737 = vmatprep.subr.bf16.mxu0 %v1401
          %1738 = vmatpush1.bf16.msra.mxu0 %v1400
          %1739 = vmatprep.subr.bf16.mxu0 %v1393
          %1740 = vmatpush1.bf16.msra.mxu0 %v1392
          %1741 = vmatprep.subr.bf16.mxu0 %v1385
          %1742 = vmatpush1.bf16.msra.mxu0 %v1384
          %1743 = vmatprep.subr.bf16.mxu0 %v1377
          %1744 = vmatpush1.bf16.msra.mxu0 %v1376
          %1745 = vmatprep.subr.bf16.mxu0 %v1369
          %1746 = vmatpush1.bf16.msra.mxu0 %v1368
          %1747 = vmatprep.subr.bf16.mxu0 %v1361
          %1748 = vmatpush1.bf16.msra.mxu0 %v1360
          %1749 = vmatprep.subr.bf16.mxu0 %v1353
          %1750 = vmatpush1.bf16.msra.mxu0 %v1352
          %1751 = vmatprep.subr.bf16.mxu0 0
          %1752 = vmatpush2.bf16.msra.mxu0 0
          %1753 = vmatprep.subr.bf16.mxu0 0
          %1754 = vmatpush2.bf16.msra.mxu0 0
          %1755 = vmatprep.subr.bf16.mxu0 0
          %1756 = vmatpush2.bf16.msra.mxu0 0
          %1757 = vmatprep.subr.bf16.mxu0 0
          %1758 = vmatpush2.bf16.msra.mxu0 0
          %1759 = vmatprep.subr.bf16.mxu0 0
          %1760 = vmatpush2.bf16.msra.mxu0 0
          %1761 = vmatprep.subr.bf16.mxu0 0
          %1762 = vmatpush2.bf16.msra.mxu0 0
          %1763 = vmatprep.subr.bf16.mxu0 0
          %1764 = vmatpush2.bf16.msra.mxu0 0
          %1765 = vmatprep.subr.bf16.mxu0 0
          %1766 = vmatpush2.bf16.msra.mxu0 0
          %1767 = vmatprep.mubr.bf16.mxu0 0
          %1768 = vmatmul.mubr.bf16.gmra.mxu0 %v642
          %v1769 = vpop.f32.mrf.mxu0
          %v1770 = vadd.f32 %v1727, %v1769
          %v1771 = vpop.f32.mrf.mxu0
          %v1772 = vadd.f32 %v1729, %v1771
          %v1773 = vpop.f32.mrf.mxu0
          %v1774 = vadd.f32 %v1731, %v1773
          %v1775 = vpop.f32.mrf.mxu0
          %v1776 = vadd.f32 %v1733, %v1775
          %1777 = vdwg.mxu0
          %1778 = vmatprep.subr.bf16.mxu0 %v1283
          %1779 = vmatpush1.bf16.msra.mxu0 %v1282
          %1780 = vmatprep.subr.bf16.mxu0 %v1275
          %1781 = vmatpush1.bf16.msra.mxu0 %v1274
          %1782 = vmatprep.subr.bf16.mxu0 %v1267
          %1783 = vmatpush1.bf16.msra.mxu0 %v1266
          %1784 = vmatprep.subr.bf16.mxu0 %v1259
          %1785 = vmatpush1.bf16.msra.mxu0 %v1258
          %1786 = vmatprep.subr.bf16.mxu0 %v1251
          %1787 = vmatpush1.bf16.msra.mxu0 %v1250
          %1788 = vmatprep.subr.bf16.mxu0 %v1243
          %1789 = vmatpush1.bf16.msra.mxu0 %v1242
          %1790 = vmatprep.subr.bf16.mxu0 %v1235
          %1791 = vmatpush1.bf16.msra.mxu0 %v1234
          %1792 = vmatprep.subr.bf16.mxu0 %v1227
          %1793 = vmatpush1.bf16.msra.mxu0 %v1226
          %1794 = vmatprep.subr.bf16.mxu0 %v1347
          %1795 = vmatpush2.bf16.msra.mxu0 %v1346
          %1796 = vmatprep.subr.bf16.mxu0 %v1339
          %1797 = vmatpush2.bf16.msra.mxu0 %v1338
          %1798 = vmatprep.subr.bf16.mxu0 %v1331
          %1799 = vmatpush2.bf16.msra.mxu0 %v1330
          %1800 = vmatprep.subr.bf16.mxu0 %v1323
          %1801 = vmatpush2.bf16.msra.mxu0 %v1322
          %1802 = vmatprep.subr.bf16.mxu0 %v1315
          %1803 = vmatpush2.bf16.msra.mxu0 %v1314
          %1804 = vmatprep.subr.bf16.mxu0 %v1307
          %1805 = vmatpush2.bf16.msra.mxu0 %v1306
          %1806 = vmatprep.subr.bf16.mxu0 %v1299
          %1807 = vmatpush2.bf16.msra.mxu0 %v1298
          %1808 = vmatprep.subr.bf16.mxu0 %v1291
          %1809 = vmatpush2.bf16.msra.mxu0 %v1290
          %1810 = vmatprep.mubr.bf16.mxu0 %v641
          %1811 = vmatmul.mubr.bf16.gmra.mxu0 %v640
          %v1812 = vpop.f32.mrf.mxu0
          %v1813 = vadd.f32 0.0, %v1812
          %v1814 = vpop.f32.mrf.mxu0
          %v1815 = vadd.f32 0.0, %v1814
          %v1816 = vpop.f32.mrf.mxu0
          %v1817 = vadd.f32 0.0, %v1816
          %v1818 = vpop.f32.mrf.mxu0
          %v1819 = vadd.f32 0.0, %v1818
          %1820 = vdwg.mxu0
          %1821 = vmatprep.subr.bf16.mxu0 %v1411
          %1822 = vmatpush1.bf16.msra.mxu0 %v1410
          %1823 = vmatprep.subr.bf16.mxu0 %v1403
          %1824 = vmatpush1.bf16.msra.mxu0 %v1402
          %1825 = vmatprep.subr.bf16.mxu0 %v1395
          %1826 = vmatpush1.bf16.msra.mxu0 %v1394
          %1827 = vmatprep.subr.bf16.mxu0 %v1387
          %1828 = vmatpush1.bf16.msra.mxu0 %v1386
          %1829 = vmatprep.subr.bf16.mxu0 %v1379
          %1830 = vmatpush1.bf16.msra.mxu0 %v1378
          %1831 = vmatprep.subr.bf16.mxu0 %v1371
          %1832 = vmatpush1.bf16.msra.mxu0 %v1370
          %1833 = vmatprep.subr.bf16.mxu0 %v1363
          %1834 = vmatpush1.bf16.msra.mxu0 %v1362
          %1835 = vmatprep.subr.bf16.mxu0 %v1355
          %1836 = vmatpush1.bf16.msra.mxu0 %v1354
          %1837 = vmatprep.subr.bf16.mxu0 0
          %1838 = vmatpush2.bf16.msra.mxu0 0
          %1839 = vmatprep.subr.bf16.mxu0 0
          %1840 = vmatpush2.bf16.msra.mxu0 0
          %1841 = vmatprep.subr.bf16.mxu0 0
          %1842 = vmatpush2.bf16.msra.mxu0 0
          %1843 = vmatprep.subr.bf16.mxu0 0
          %1844 = vmatpush2.bf16.msra.mxu0 0
          %1845 = vmatprep.subr.bf16.mxu0 0
          %1846 = vmatpush2.bf16.msra.mxu0 0
          %1847 = vmatprep.subr.bf16.mxu0 0
          %1848 = vmatpush2.bf16.msra.mxu0 0
          %1849 = vmatprep.subr.bf16.mxu0 0
          %1850 = vmatpush2.bf16.msra.mxu0 0
          %1851 = vmatprep.subr.bf16.mxu0 0
          %1852 = vmatpush2.bf16.msra.mxu0 0
          %1853 = vmatprep.mubr.bf16.mxu0 0
          %1854 = vmatmul.mubr.bf16.gmra.mxu0 %v642
          %v1855 = vpop.f32.mrf.mxu0
          %v1856 = vadd.f32 %v1813, %v1855
          %v1857 = vpop.f32.mrf.mxu0
          %v1858 = vadd.f32 %v1815, %v1857
          %v1859 = vpop.f32.mrf.mxu0
          %v1860 = vadd.f32 %v1817, %v1859
          %v1861 = vpop.f32.mrf.mxu0
          %v1862 = vadd.f32 %v1819, %v1861
          %1863 = vdwg.mxu0
          %1864 = vmatprep.subr.bf16.mxu0 %v1285
          %1865 = vmatpush1.bf16.msra.mxu0 %v1284
          %1866 = vmatprep.subr.bf16.mxu0 %v1277
          %1867 = vmatpush1.bf16.msra.mxu0 %v1276
          %1868 = vmatprep.subr.bf16.mxu0 %v1269
          %1869 = vmatpush1.bf16.msra.mxu0 %v1268
          %1870 = vmatprep.subr.bf16.mxu0 %v1261
          %1871 = vmatpush1.bf16.msra.mxu0 %v1260
          %1872 = vmatprep.subr.bf16.mxu0 %v1253
          %1873 = vmatpush1.bf16.msra.mxu0 %v1252
          %1874 = vmatprep.subr.bf16.mxu0 %v1245
          %1875 = vmatpush1.bf16.msra.mxu0 %v1244
          %1876 = vmatprep.subr.bf16.mxu0 %v1237
          %1877 = vmatpush1.bf16.msra.mxu0 %v1236
          %1878 = vmatprep.subr.bf16.mxu0 %v1229
          %1879 = vmatpush1.bf16.msra.mxu0 %v1228
          %1880 = vmatprep.subr.bf16.mxu0 %v1349
          %1881 = vmatpush2.bf16.msra.mxu0 %v1348
          %1882 = vmatprep.subr.bf16.mxu0 %v1341
          %1883 = vmatpush2.bf16.msra.mxu0 %v1340
          %1884 = vmatprep.subr.bf16.mxu0 %v1333
          %1885 = vmatpush2.bf16.msra.mxu0 %v1332
          %1886 = vmatprep.subr.bf16.mxu0 %v1325
          %1887 = vmatpush2.bf16.msra.mxu0 %v1324
          %1888 = vmatprep.subr.bf16.mxu0 %v1317
          %1889 = vmatpush2.bf16.msra.mxu0 %v1316
          %1890 = vmatprep.subr.bf16.mxu0 %v1309
          %1891 = vmatpush2.bf16.msra.mxu0 %v1308
          %1892 = vmatprep.subr.bf16.mxu0 %v1301
          %1893 = vmatpush2.bf16.msra.mxu0 %v1300
          %1894 = vmatprep.subr.bf16.mxu0 %v1293
          %1895 = vmatpush2.bf16.msra.mxu0 %v1292
          %1896 = vmatprep.mubr.bf16.mxu0 %v641
          %1897 = vmatmul.mubr.bf16.gmra.mxu0 %v640
          %v1898 = vpop.f32.mrf.mxu0
          %v1899 = vadd.f32 0.0, %v1898
          %v1900 = vpop.f32.mrf.mxu0
          %v1901 = vadd.f32 0.0, %v1900
          %v1902 = vpop.f32.mrf.mxu0
          %v1903 = vadd.f32 0.0, %v1902
          %v1904 = vpop.f32.mrf.mxu0
          %v1905 = vadd.f32 0.0, %v1904
          %1906 = vdwg.mxu0
          %1907 = vmatprep.subr.bf16.mxu0 %v1413
          %1908 = vmatpush1.bf16.msra.mxu0 %v1412
          %1909 = vmatprep.subr.bf16.mxu0 %v1405
          %1910 = vmatpush1.bf16.msra.mxu0 %v1404
          %1911 = vmatprep.subr.bf16.mxu0 %v1397
          %1912 = vmatpush1.bf16.msra.mxu0 %v1396
          %1913 = vmatprep.subr.bf16.mxu0 %v1389
          %1914 = vmatpush1.bf16.msra.mxu0 %v1388
          %1915 = vmatprep.subr.bf16.mxu0 %v1381
          %1916 = vmatpush1.bf16.msra.mxu0 %v1380
          %1917 = vmatprep.subr.bf16.mxu0 %v1373
          %1918 = vmatpush1.bf16.msra.mxu0 %v1372
          %1919 = vmatprep.subr.bf16.mxu0 %v1365
          %1920 = vmatpush1.bf16.msra.mxu0 %v1364
          %1921 = vmatprep.subr.bf16.mxu0 %v1357
          %1922 = vmatpush1.bf16.msra.mxu0 %v1356
          %1923 = vmatprep.subr.bf16.mxu0 0
          %1924 = vmatpush2.bf16.msra.mxu0 0
          %1925 = vmatprep.subr.bf16.mxu0 0
          %1926 = vmatpush2.bf16.msra.mxu0 0
          %1927 = vmatprep.subr.bf16.mxu0 0
          %1928 = vmatpush2.bf16.msra.mxu0 0
          %1929 = vmatprep.subr.bf16.mxu0 0
          %1930 = vmatpush2.bf16.msra.mxu0 0
          %1931 = vmatprep.subr.bf16.mxu0 0
          %1932 = vmatpush2.bf16.msra.mxu0 0
          %1933 = vmatprep.subr.bf16.mxu0 0
          %1934 = vmatpush2.bf16.msra.mxu0 0
          %1935 = vmatprep.subr.bf16.mxu0 0
          %1936 = vmatpush2.bf16.msra.mxu0 0
          %1937 = vmatprep.subr.bf16.mxu0 0
          %1938 = vmatpush2.bf16.msra.mxu0 0
          %1939 = vmatprep.mubr.bf16.mxu0 0
          %1940 = vmatmul.mubr.bf16.gmra.mxu0 %v642
          %v1941 = vpop.f32.mrf.mxu0
          %v1942 = vadd.f32 %v1899, %v1941
          %v1943 = vpop.f32.mrf.mxu0
          %v1944 = vadd.f32 %v1901, %v1943
          %v1945 = vpop.f32.mrf.mxu0
          %v1946 = vadd.f32 %v1903, %v1945
          %v1947 = vpop.f32.mrf.mxu0
          %v1948 = vadd.f32 %v1905, %v1947
          %1949 = vdwg.mxu0
          %v1950 = vld [vmem:[#allocation3] sm:$0xf]
          %v1951 = vld [vmem:[#allocation3 + $0x4] sm:$0xf]
          %v1952 = vpack.c.bf16 %v1688, %v1684
          %v1953 = vpack.c.bf16 %v1690, %v1686
          %v1954 = vpack.c.bf16 %v1774, %v1770
          %v1955 = vpack.c.bf16 %v1776, %v1772
          %v1956 = vpack.c.bf16 %v1860, %v1856
          %v1957 = vpack.c.bf16 %v1862, %v1858
          %v1958 = vpack.c.bf16 %v1946, %v1942
          %v1959 = vpack.c.bf16 %v1948, %v1944
          %v1962 = vunpack.c.l.b16 %v1950
          %v1963 = vunpack.c.l.b16 %v1951
          %v1964 = vpack.c.b16 %v1963, %v1962
          %vm1965 = vcmask 130048
          %v1967 = vsel %vm1965, %v1964, 0
          %1969 = vmatprep.subr.bf16.mxu0 0
          %1970 = vmatpush1.bf16.msra.mxu0 0
          %1971 = vmatprep.subr.bf16.mxu0 0
          %1972 = vmatpush1.bf16.msra.mxu0 0
          %1973 = vmatprep.subr.bf16.mxu0 0
          %1974 = vmatpush1.bf16.msra.mxu0 0
          %1975 = vmatprep.subr.bf16.mxu0 0
          %1976 = vmatpush1.bf16.msra.mxu0 0
          %1977 = vmatprep.subr.bf16.mxu0 0
          %1978 = vmatpush1.bf16.msra.mxu0 0
          %1979 = vmatprep.subr.bf16.mxu0 0
          %1980 = vmatpush1.bf16.msra.mxu0 0
          %1981 = vmatprep.subr.bf16.mxu0 0
          %1982 = vmatpush1.bf16.msra.mxu0 0
          %1983 = vmatprep.subr.bf16.mxu0 %v1953
          %1984 = vmatpush1.bf16.msra.mxu0 %v1952
          %1985 = vmatprep.subr.bf16.mxu0 0
          %1986 = vmatpush2.bf16.msra.mxu0 0
          %1987 = vmatprep.subr.bf16.mxu0 0
          %1988 = vmatpush2.bf16.msra.mxu0 0
          %1989 = vmatprep.subr.bf16.mxu0 0
          %1990 = vmatpush2.bf16.msra.mxu0 0
          %1991 = vmatprep.subr.bf16.mxu0 0
          %1992 = vmatpush2.bf16.msra.mxu0 0
          %1993 = vmatprep.subr.bf16.mxu0 0
          %1994 = vmatpush2.bf16.msra.mxu0 0
          %1995 = vmatprep.subr.bf16.mxu0 0
          %1996 = vmatpush2.bf16.msra.mxu0 0
          %1997 = vmatprep.subr.bf16.mxu0 0
          %1998 = vmatpush2.bf16.msra.mxu0 0
          %1999 = vmatprep.subr.bf16.mxu0 0
          %2000 = vmatpush2.bf16.msra.mxu0 0
          %2001 = vmatprep.mubr.bf16.mxu0 0
          %2002 = vmatmul.mubr.bf16.gmra.mxu0 %v1967
          %v2003 = vpop.f32.mrf.mxu0
          %v2004 = vadd.f32 0.0, %v2003
          %v2005 = vpop.f32.mrf.mxu0
          %v2006 = vadd.f32 0.0, %v2005
          %v2007 = vpop.f32.mrf.mxu0
          %v2008 = vadd.f32 0.0, %v2007
          %v2009 = vpop.f32.mrf.mxu0
          %v2010 = vadd.f32 0.0, %v2009
          %2011 = vdwg.mxu0
          %2012 = vmatprep.subr.bf16.mxu0 0
          %2013 = vmatpush1.bf16.msra.mxu0 0
          %2014 = vmatprep.subr.bf16.mxu0 0
          %2015 = vmatpush1.bf16.msra.mxu0 0
          %2016 = vmatprep.subr.bf16.mxu0 0
          %2017 = vmatpush1.bf16.msra.mxu0 0
          %2018 = vmatprep.subr.bf16.mxu0 0
          %2019 = vmatpush1.bf16.msra.mxu0 0
          %2020 = vmatprep.subr.bf16.mxu0 0
          %2021 = vmatpush1.bf16.msra.mxu0 0
          %2022 = vmatprep.subr.bf16.mxu0 0
          %2023 = vmatpush1.bf16.msra.mxu0 0
          %2024 = vmatprep.subr.bf16.mxu0 0
          %2025 = vmatpush1.bf16.msra.mxu0 0
          %2026 = vmatprep.subr.bf16.mxu0 %v1955
          %2027 = vmatpush1.bf16.msra.mxu0 %v1954
          %2028 = vmatprep.subr.bf16.mxu0 0
          %2029 = vmatpush2.bf16.msra.mxu0 0
          %2030 = vmatprep.subr.bf16.mxu0 0
          %2031 = vmatpush2.bf16.msra.mxu0 0
          %2032 = vmatprep.subr.bf16.mxu0 0
          %2033 = vmatpush2.bf16.msra.mxu0 0
          %2034 = vmatprep.subr.bf16.mxu0 0
          %2035 = vmatpush2.bf16.msra.mxu0 0
          %2036 = vmatprep.subr.bf16.mxu0 0
          %2037 = vmatpush2.bf16.msra.mxu0 0
          %2038 = vmatprep.subr.bf16.mxu0 0
          %2039 = vmatpush2.bf16.msra.mxu0 0
          %2040 = vmatprep.subr.bf16.mxu0 0
          %2041 = vmatpush2.bf16.msra.mxu0 0
          %2042 = vmatprep.subr.bf16.mxu0 0
          %2043 = vmatpush2.bf16.msra.mxu0 0
          %2044 = vmatprep.mubr.bf16.mxu0 0
          %2045 = vmatmul.mubr.bf16.gmra.mxu0 %v1967
          %v2046 = vpop.f32.mrf.mxu0
          %v2047 = vadd.f32 0.0, %v2046
          %v2048 = vpop.f32.mrf.mxu0
          %v2049 = vadd.f32 0.0, %v2048
          %v2050 = vpop.f32.mrf.mxu0
          %v2051 = vadd.f32 0.0, %v2050
          %v2052 = vpop.f32.mrf.mxu0
          %v2053 = vadd.f32 0.0, %v2052
          %2054 = vdwg.mxu0
          %2055 = vmatprep.subr.bf16.mxu0 0
          %2056 = vmatpush1.bf16.msra.mxu0 0
          %2057 = vmatprep.subr.bf16.mxu0 0
          %2058 = vmatpush1.bf16.msra.mxu0 0
          %2059 = vmatprep.subr.bf16.mxu0 0
          %2060 = vmatpush1.bf16.msra.mxu0 0
          %2061 = vmatprep.subr.bf16.mxu0 0
          %2062 = vmatpush1.bf16.msra.mxu0 0
          %2063 = vmatprep.subr.bf16.mxu0 0
          %2064 = vmatpush1.bf16.msra.mxu0 0
          %2065 = vmatprep.subr.bf16.mxu0 0
          %2066 = vmatpush1.bf16.msra.mxu0 0
          %2067 = vmatprep.subr.bf16.mxu0 0
          %2068 = vmatpush1.bf16.msra.mxu0 0
          %2069 = vmatprep.subr.bf16.mxu0 %v1957
          %2070 = vmatpush1.bf16.msra.mxu0 %v1956
          %2071 = vmatprep.subr.bf16.mxu0 0
          %2072 = vmatpush2.bf16.msra.mxu0 0
          %2073 = vmatprep.subr.bf16.mxu0 0
          %2074 = vmatpush2.bf16.msra.mxu0 0
          %2075 = vmatprep.subr.bf16.mxu0 0
          %2076 = vmatpush2.bf16.msra.mxu0 0
          %2077 = vmatprep.subr.bf16.mxu0 0
          %2078 = vmatpush2.bf16.msra.mxu0 0
          %2079 = vmatprep.subr.bf16.mxu0 0
          %2080 = vmatpush2.bf16.msra.mxu0 0
          %2081 = vmatprep.subr.bf16.mxu0 0
          %2082 = vmatpush2.bf16.msra.mxu0 0
          %2083 = vmatprep.subr.bf16.mxu0 0
          %2084 = vmatpush2.bf16.msra.mxu0 0
          %2085 = vmatprep.subr.bf16.mxu0 0
          %2086 = vmatpush2.bf16.msra.mxu0 0
          %2087 = vmatprep.mubr.bf16.mxu0 0
          %2088 = vmatmul.mubr.bf16.gmra.mxu0 %v1967
          %v2089 = vpop.f32.mrf.mxu0
          %v2090 = vadd.f32 0.0, %v2089
          %v2091 = vpop.f32.mrf.mxu0
          %v2092 = vadd.f32 0.0, %v2091
          %v2093 = vpop.f32.mrf.mxu0
          %v2094 = vadd.f32 0.0, %v2093
          %v2095 = vpop.f32.mrf.mxu0
          %v2096 = vadd.f32 0.0, %v2095
          %2097 = vdwg.mxu0
          %2098 = vmatprep.subr.bf16.mxu0 0
          %2099 = vmatpush1.bf16.msra.mxu0 0
          %2100 = vmatprep.subr.bf16.mxu0 0
          %2101 = vmatpush1.bf16.msra.mxu0 0
          %2102 = vmatprep.subr.bf16.mxu0 0
          %2103 = vmatpush1.bf16.msra.mxu0 0
          %2104 = vmatprep.subr.bf16.mxu0 0
          %2105 = vmatpush1.bf16.msra.mxu0 0
          %2106 = vmatprep.subr.bf16.mxu0 0
          %2107 = vmatpush1.bf16.msra.mxu0 0
          %2108 = vmatprep.subr.bf16.mxu0 0
          %2109 = vmatpush1.bf16.msra.mxu0 0
          %2110 = vmatprep.subr.bf16.mxu0 0
          %2111 = vmatpush1.bf16.msra.mxu0 0
          %2112 = vmatprep.subr.bf16.mxu0 %v1959
          %2113 = vmatpush1.bf16.msra.mxu0 %v1958
          %2114 = vmatprep.subr.bf16.mxu0 0
          %2115 = vmatpush2.bf16.msra.mxu0 0
          %2116 = vmatprep.subr.bf16.mxu0 0
          %2117 = vmatpush2.bf16.msra.mxu0 0
          %2118 = vmatprep.subr.bf16.mxu0 0
          %2119 = vmatpush2.bf16.msra.mxu0 0
          %2120 = vmatprep.subr.bf16.mxu0 0
          %2121 = vmatpush2.bf16.msra.mxu0 0
          %2122 = vmatprep.subr.bf16.mxu0 0
          %2123 = vmatpush2.bf16.msra.mxu0 0
          %2124 = vmatprep.subr.bf16.mxu0 0
          %2125 = vmatpush2.bf16.msra.mxu0 0
          %2126 = vmatprep.subr.bf16.mxu0 0
          %2127 = vmatpush2.bf16.msra.mxu0 0
          %2128 = vmatprep.subr.bf16.mxu0 0
          %2129 = vmatpush2.bf16.msra.mxu0 0
          %2130 = vmatprep.mubr.bf16.mxu0 0
          %2131 = vmatmul.mubr.bf16.gmra.mxu0 %v1967
          %v2132 = vpop.f32.mrf.mxu0
          %v2133 = vadd.f32 0.0, %v2132
          %v2134 = vpop.f32.mrf.mxu0
          %v2135 = vadd.f32 0.0, %v2134
          %v2136 = vpop.f32.mrf.mxu0
          %v2137 = vadd.f32 0.0, %v2136
          %v2138 = vpop.f32.mrf.mxu0
          %v2139 = vadd.f32 0.0, %v2138
          %2140 = vdwg.mxu0
          %vm2141 = vcmp.gt.f32.partialorder %v2004, 0.0
          %vm2142 = vcmp.gt.f32.partialorder %v2006, 0.0
          %vm2143 = vcmp.gt.f32.partialorder %v2047, 0.0
          %vm2144 = vcmp.gt.f32.partialorder %v2049, 0.0
          %vm2145 = vcmp.gt.f32.partialorder %v2090, 0.0
          %vm2146 = vcmp.gt.f32.partialorder %v2092, 0.0
          %vm2147 = vcmp.gt.f32.partialorder %v2133, 0.0
          %vm2148 = vcmp.gt.f32.partialorder %v2135, 0.0
          %vm2149 = vcmp.gt.f32.partialorder %v2008, 0.0
          %vm2150 = vcmp.gt.f32.partialorder %v2010, 0.0
          %vm2151 = vcmp.gt.f32.partialorder %v2051, 0.0
          %vm2152 = vcmp.gt.f32.partialorder %v2053, 0.0
          %vm2153 = vcmp.gt.f32.partialorder %v2094, 0.0
          %vm2154 = vcmp.gt.f32.partialorder %v2096, 0.0
          %vm2155 = vcmp.gt.f32.partialorder %v2137, 0.0
          %vm2156 = vcmp.gt.f32.partialorder %v2139, 0.0
          %v2157 = vmul.f32 %v2004, 0.2
          %v2158 = vmul.f32 %v2006, 0.2
          %v2159 = vmul.f32 %v2047, 0.2
          %v2160 = vmul.f32 %v2049, 0.2
          %v2161 = vmul.f32 %v2090, 0.2
          %v2162 = vmul.f32 %v2092, 0.2
          %v2163 = vmul.f32 %v2133, 0.2
          %v2164 = vmul.f32 %v2135, 0.2
          %v2165 = vmul.f32 %v2008, 0.2
          %v2166 = vmul.f32 %v2010, 0.2
          %v2167 = vmul.f32 %v2051, 0.2
          %v2168 = vmul.f32 %v2053, 0.2
          %v2169 = vmul.f32 %v2094, 0.2
          %v2170 = vmul.f32 %v2096, 0.2
          %v2171 = vmul.f32 %v2137, 0.2
          %v2172 = vmul.f32 %v2139, 0.2
          %v2173 = vsel %vm2141, %v2004, %v2157
          %v2174 = vsel %vm2142, %v2006, %v2158
          %v2175 = vsel %vm2143, %v2047, %v2159
          %v2176 = vsel %vm2144, %v2049, %v2160
          %v2177 = vsel %vm2145, %v2090, %v2161
          %v2178 = vsel %vm2146, %v2092, %v2162
          %v2179 = vsel %vm2147, %v2133, %v2163
          %v2180 = vsel %vm2148, %v2135, %v2164
          %v2181 = vsel %vm2149, %v2008, %v2165
          %v2182 = vsel %vm2150, %v2010, %v2166
          %v2183 = vsel %vm2151, %v2051, %v2167
          %v2184 = vsel %vm2152, %v2053, %v2168
          %v2185 = vsel %vm2153, %v2094, %v2169
          %v2186 = vsel %vm2154, %v2096, %v2170
          %v2187 = vsel %vm2155, %v2137, %v2171
          %v2188 = vsel %vm2156, %v2139, %v2172
          %v2189 = vpack.c.bf16 %v2181, %v2173
          %v2190 = vpack.c.bf16 %v2182, %v2174
          %v2191 = vpack.c.bf16 %v2183, %v2175
          %v2192 = vpack.c.bf16 %v2184, %v2176
          %v2193 = vpack.c.bf16 %v2185, %v2177
          %v2194 = vpack.c.bf16 %v2186, %v2178
          %v2195 = vpack.c.bf16 %v2187, %v2179
          %v2196 = vpack.c.bf16 %v2188, %v2180
          %v2205 = vunpack.c.l.b16 %v2189
          %v2206 = vunpack.c.l.b16 %v2190
          %v2207 = vunpack.c.l.b16 %v2191
          %v2208 = vunpack.c.l.b16 %v2192
          %v2209 = vunpack.c.l.b16 %v2193
          %v2210 = vunpack.c.l.b16 %v2194
          %v2211 = vunpack.c.l.b16 %v2195
          %v2212 = vunpack.c.l.b16 %v2196
          %v2213 = vunpack.c.h.b16 %v2189
          %v2214 = vunpack.c.h.b16 %v2190
          %v2215 = vunpack.c.h.b16 %v2191
          %v2216 = vunpack.c.h.b16 %v2192
          %v2217 = vunpack.c.h.b16 %v2193
          %v2218 = vunpack.c.h.b16 %v2194
          %v2219 = vunpack.c.h.b16 %v2195
          %v2220 = vunpack.c.h.b16 %v2196
          %v2221 = vpack.c.b16 %v2206, %v2205
          %v2222 = vpack.c.b16 %v2208, %v2207
          %v2223 = vpack.c.b16 %v2210, %v2209
          %v2224 = vpack.c.b16 %v2212, %v2211
          %v2225 = vpack.c.b16 %v2214, %v2213
          %v2226 = vpack.c.b16 %v2216, %v2215
          %v2227 = vpack.c.b16 %v2218, %v2217
          %v2228 = vpack.c.b16 %v2220, %v2219
          %2237 = vst [vmem:[#allocation2] sm:$0xff] %v2221
          %2238 = vst [vmem:[#allocation2 + $0x8] sm:$0xff] %v2222
          %2239 = vst [vmem:[#allocation2 + $0x10] sm:$0xff] %v2223
          %2240 = vst [vmem:[#allocation2 + $0x18] sm:$0xff] %v2224
          %2241 = vst [vmem:[#allocation2 + $0x20] sm:$0xff] %v2225
          %2242 = vst [vmem:[#allocation2 + $0x28] sm:$0xff] %v2226
          %2243 = vst [vmem:[#allocation2 + $0x30] sm:$0xff] %v2227
          %2244 = vst [vmem:[#allocation2 + $0x38] sm:$0xff] %v2228
          %2245 = vst [vmem:[%s419] sm:$0xff] 0.0
          %2246 = vst [vmem:[%s419 + $0x8] sm:$0xff] 0.0
          %2247 = vst [vmem:[%s419 + $0x10] sm:$0xff] 0.0
          %2248 = vst [vmem:[%s419 + $0x18] sm:$0xff] 0.0
          %2249 = vst [vmem:[%s419 + $0x20] sm:$0xff] 0.0
          %2250 = vst [vmem:[%s419 + $0x28] sm:$0xff] 0.0
          %2251 = vst [vmem:[%s419 + $0x30] sm:$0xff] 0.0
          %2252 = vst [vmem:[%s419 + $0x38] sm:$0xff] 0.0
        $region72: #{tpu_custom_call.1} parent=43 // pred_fallthru
          _
        %v2253 = vld [vmem:[#allocation2] sm:$0xff]
        %v2254 = vld [vmem:[#allocation2 + $0x8] sm:$0xff]
        %v2255 = vld [vmem:[#allocation2 + $0x10] sm:$0xff]
        %v2256 = vld [vmem:[#allocation2 + $0x18] sm:$0xff]
        %v2257 = vld [vmem:[#allocation2 + $0x20] sm:$0xff]
        %v2258 = vld [vmem:[#allocation2 + $0x28] sm:$0xff]
        %v2259 = vld [vmem:[#allocation2 + $0x30] sm:$0xff]
        %v2260 = vld [vmem:[#allocation2 + $0x38] sm:$0xff]
        %v2261 = vld [vmem:[%s363] sm:$0xff]
        %v2262 = vld [vmem:[%s363 + $0x8] sm:$0xff]
        %v2263 = vld [vmem:[%s363 + $0x10] sm:$0xff]
        %v2264 = vld [vmem:[%s363 + $0x18] sm:$0xff]
        %v2265 = vld [vmem:[%s363 + $0x20] sm:$0xff]
        %v2266 = vld [vmem:[%s363 + $0x28] sm:$0xff]
        %v2267 = vld [vmem:[%s363 + $0x30] sm:$0xff]
        %v2268 = vld [vmem:[%s363 + $0x38] sm:$0xff]
        %v2269 = vld [vmem:[%s363 + $0x40] sm:$0xff]
        %v2270 = vld [vmem:[%s363 + $0x48] sm:$0xff]
        %v2271 = vld [vmem:[%s363 + $0x50] sm:$0xff]
        %v2272 = vld [vmem:[%s363 + $0x58] sm:$0xff]
        %v2273 = vld [vmem:[%s363 + $0x60] sm:$0xff]
        %v2274 = vld [vmem:[%s363 + $0x68] sm:$0xff]
        %v2275 = vld [vmem:[%s363 + $0x70] sm:$0xff]
        %v2276 = vld [vmem:[%s363 + $0x78] sm:$0xff]
        %v2277 = vld [vmem:[%s363 + $0x80] sm:$0xff]
        %v2278 = vld [vmem:[%s363 + $0x88] sm:$0xff]
        %v2279 = vld [vmem:[%s363 + $0x90] sm:$0xff]
        %v2280 = vld [vmem:[%s363 + $0x98] sm:$0xff]
        %v2281 = vld [vmem:[%s363 + $0xa0] sm:$0xff]
        %v2282 = vld [vmem:[%s363 + $0xa8] sm:$0xff]
        %v2283 = vld [vmem:[%s363 + $0xb0] sm:$0xff]
        %v2284 = vld [vmem:[%s363 + $0xb8] sm:$0xff]
        %v2285 = vld [vmem:[%s363 + $0xc0] sm:$0xff]
        %v2286 = vld [vmem:[%s363 + $0xc8] sm:$0xff]
        %v2287 = vld [vmem:[%s363 + $0xd0] sm:$0xff]
        %v2288 = vld [vmem:[%s363 + $0xd8] sm:$0xff]
        %v2289 = vld [vmem:[%s363 + $0xe0] sm:$0xff]
        %v2290 = vld [vmem:[%s363 + $0xe8] sm:$0xff]
        %v2291 = vld [vmem:[%s363 + $0xf0] sm:$0xff]
        %v2292 = vld [vmem:[%s363 + $0xf8] sm:$0xff]
        %v2293 = vld [vmem:[%s363 + $0x100] sm:$0xff]
        %v2294 = vld [vmem:[%s363 + $0x108] sm:$0xff]
        %v2295 = vld [vmem:[%s363 + $0x110] sm:$0xff]
        %v2296 = vld [vmem:[%s363 + $0x118] sm:$0xff]
        %v2297 = vld [vmem:[%s363 + $0x120] sm:$0xff]
        %v2298 = vld [vmem:[%s363 + $0x128] sm:$0xff]
        %v2299 = vld [vmem:[%s363 + $0x130] sm:$0xff]
        %v2300 = vld [vmem:[%s363 + $0x138] sm:$0xff]
        %v2301 = vld [vmem:[%s363 + $0x140] sm:$0xff]
        %v2302 = vld [vmem:[%s363 + $0x148] sm:$0xff]
        %v2303 = vld [vmem:[%s363 + $0x150] sm:$0xff]
        %v2304 = vld [vmem:[%s363 + $0x158] sm:$0xff]
        %v2305 = vld [vmem:[%s363 + $0x160] sm:$0xff]
        %v2306 = vld [vmem:[%s363 + $0x168] sm:$0xff]
        %v2307 = vld [vmem:[%s363 + $0x170] sm:$0xff]
        %v2308 = vld [vmem:[%s363 + $0x178] sm:$0xff]
        %v2309 = vld [vmem:[%s363 + $0x180] sm:$0xff]
        %v2310 = vld [vmem:[%s363 + $0x188] sm:$0xff]
        %v2311 = vld [vmem:[%s363 + $0x190] sm:$0xff]
        %v2312 = vld [vmem:[%s363 + $0x198] sm:$0xff]
        %v2313 = vld [vmem:[%s363 + $0x1a0] sm:$0xff]
        %v2314 = vld [vmem:[%s363 + $0x1a8] sm:$0xff]
        %v2315 = vld [vmem:[%s363 + $0x1b0] sm:$0xff]
        %v2316 = vld [vmem:[%s363 + $0x1b8] sm:$0xff]
        %v2317 = vld [vmem:[%s363 + $0x1c0] sm:$0xff]
        %v2318 = vld [vmem:[%s363 + $0x1c8] sm:$0xff]
        %v2319 = vld [vmem:[%s363 + $0x1d0] sm:$0xff]
        %v2320 = vld [vmem:[%s363 + $0x1d8] sm:$0xff]
        %v2321 = vld [vmem:[%s363 + $0x1e0] sm:$0xff]
        %v2322 = vld [vmem:[%s363 + $0x1e8] sm:$0xff]
        %v2323 = vld [vmem:[%s363 + $0x1f0] sm:$0xff]
        %v2324 = vld [vmem:[%s363 + $0x1f8] sm:$0xff]
        %v2325 = vld [vmem:[%s363 + $0x200] sm:$0xff]
        %v2326 = vld [vmem:[%s363 + $0x208] sm:$0xff]
        %v2327 = vld [vmem:[%s363 + $0x210] sm:$0xff]
        %v2328 = vld [vmem:[%s363 + $0x218] sm:$0xff]
        %v2329 = vld [vmem:[%s363 + $0x220] sm:$0xff]
        %v2330 = vld [vmem:[%s363 + $0x228] sm:$0xff]
        %v2331 = vld [vmem:[%s363 + $0x230] sm:$0xff]
        %v2332 = vld [vmem:[%s363 + $0x238] sm:$0xff]
        %v2333 = vld [vmem:[%s363 + $0x240] sm:$0xff]
        %v2334 = vld [vmem:[%s363 + $0x248] sm:$0xff]
        %v2335 = vld [vmem:[%s363 + $0x250] sm:$0xff]
        %v2336 = vld [vmem:[%s363 + $0x258] sm:$0xff]
        %v2337 = vld [vmem:[%s363 + $0x260] sm:$0xff]
        %v2338 = vld [vmem:[%s363 + $0x268] sm:$0xff]
        %v2339 = vld [vmem:[%s363 + $0x270] sm:$0xff]
        %v2340 = vld [vmem:[%s363 + $0x278] sm:$0xff]
        %v2341 = vld [vmem:[%s363 + $0x280] sm:$0xff]
        %v2342 = vld [vmem:[%s363 + $0x288] sm:$0xff]
        %v2343 = vld [vmem:[%s363 + $0x290] sm:$0xff]
        %v2344 = vld [vmem:[%s363 + $0x298] sm:$0xff]
        %v2345 = vld [vmem:[%s363 + $0x2a0] sm:$0xff]
        %v2346 = vld [vmem:[%s363 + $0x2a8] sm:$0xff]
        %v2347 = vld [vmem:[%s363 + $0x2b0] sm:$0xff]
        %v2348 = vld [vmem:[%s363 + $0x2b8] sm:$0xff]
        %v2349 = vld [vmem:[%s363 + $0x2c0] sm:$0xff]
        %v2350 = vld [vmem:[%s363 + $0x2c8] sm:$0xff]
        %v2351 = vld [vmem:[%s363 + $0x2d0] sm:$0xff]
        %v2352 = vld [vmem:[%s363 + $0x2d8] sm:$0xff]
        %v2353 = vld [vmem:[%s363 + $0x2e0] sm:$0xff]
        %v2354 = vld [vmem:[%s363 + $0x2e8] sm:$0xff]
        %v2355 = vld [vmem:[%s363 + $0x2f0] sm:$0xff]
        %v2356 = vld [vmem:[%s363 + $0x2f8] sm:$0xff]
        %v2357 = vld [vmem:[%s363 + $0x300] sm:$0xff]
        %v2358 = vld [vmem:[%s363 + $0x308] sm:$0xff]
        %v2359 = vld [vmem:[%s363 + $0x310] sm:$0xff]
        %v2360 = vld [vmem:[%s363 + $0x318] sm:$0xff]
        %v2361 = vld [vmem:[%s363 + $0x320] sm:$0xff]
        %v2362 = vld [vmem:[%s363 + $0x328] sm:$0xff]
        %v2363 = vld [vmem:[%s363 + $0x330] sm:$0xff]
        %v2364 = vld [vmem:[%s363 + $0x338] sm:$0xff]
        %v2365 = vld [vmem:[%s363 + $0x340] sm:$0xff]
        %v2366 = vld [vmem:[%s363 + $0x348] sm:$0xff]
        %v2367 = vld [vmem:[%s363 + $0x350] sm:$0xff]
        %v2368 = vld [vmem:[%s363 + $0x358] sm:$0xff]
        %v2369 = vld [vmem:[%s363 + $0x360] sm:$0xff]
        %v2370 = vld [vmem:[%s363 + $0x368] sm:$0xff]
        %v2371 = vld [vmem:[%s363 + $0x370] sm:$0xff]
        %v2372 = vld [vmem:[%s363 + $0x378] sm:$0xff]
        %v2373 = vld [vmem:[%s363 + $0x380] sm:$0xff]
        %v2374 = vld [vmem:[%s363 + $0x388] sm:$0xff]
        %v2375 = vld [vmem:[%s363 + $0x390] sm:$0xff]
        %v2376 = vld [vmem:[%s363 + $0x398] sm:$0xff]
        %v2377 = vld [vmem:[%s363 + $0x3a0] sm:$0xff]
        %v2378 = vld [vmem:[%s363 + $0x3a8] sm:$0xff]
        %v2379 = vld [vmem:[%s363 + $0x3b0] sm:$0xff]
        %v2380 = vld [vmem:[%s363 + $0x3b8] sm:$0xff]
        %v2381 = vld [vmem:[%s363 + $0x3c0] sm:$0xff]
        %v2382 = vld [vmem:[%s363 + $0x3c8] sm:$0xff]
        %v2383 = vld [vmem:[%s363 + $0x3d0] sm:$0xff]
        %v2384 = vld [vmem:[%s363 + $0x3d8] sm:$0xff]
        %v2385 = vld [vmem:[%s363 + $0x3e0] sm:$0xff]
        %v2386 = vld [vmem:[%s363 + $0x3e8] sm:$0xff]
        %v2387 = vld [vmem:[%s363 + $0x3f0] sm:$0xff]
        %v2388 = vld [vmem:[%s363 + $0x3f8] sm:$0xff]
        %v2397 = vunpack.c.l.b16 %v2253
        %v2398 = vunpack.c.h.b16 %v2253
        %v2399 = vunpack.c.l.b16 %v2254
        %v2400 = vunpack.c.h.b16 %v2254
        %v2401 = vunpack.c.l.b16 %v2255
        %v2402 = vunpack.c.h.b16 %v2255
        %v2403 = vunpack.c.l.b16 %v2256
        %v2404 = vunpack.c.h.b16 %v2256
        %v2405 = vunpack.c.l.b16 %v2257
        %v2406 = vunpack.c.h.b16 %v2257
        %v2407 = vunpack.c.l.b16 %v2258
        %v2408 = vunpack.c.h.b16 %v2258
        %v2409 = vunpack.c.l.b16 %v2259
        %v2410 = vunpack.c.h.b16 %v2259
        %v2411 = vunpack.c.l.b16 %v2260
        %v2412 = vunpack.c.h.b16 %v2260
        %v2413 = vpack.c.b16 %v2405, %v2397
        %v2414 = vpack.c.b16 %v2406, %v2398
        %v2415 = vpack.c.b16 %v2407, %v2399
        %v2416 = vpack.c.b16 %v2408, %v2400
        %v2417 = vpack.c.b16 %v2409, %v2401
        %v2418 = vpack.c.b16 %v2410, %v2402
        %v2419 = vpack.c.b16 %v2411, %v2403
        %v2420 = vpack.c.b16 %v2412, %v2404
        %v2557 = vunpack.c.l.b16 %v2261
        %v2558 = vunpack.c.h.b16 %v2261
        %v2559 = vunpack.c.l.b16 %v2262
        %v2560 = vunpack.c.h.b16 %v2262
        %v2561 = vunpack.c.l.b16 %v2263
        %v2562 = vunpack.c.h.b16 %v2263
        %v2563 = vunpack.c.l.b16 %v2264
        %v2564 = vunpack.c.h.b16 %v2264
        %v2565 = vunpack.c.l.b16 %v2265
        %v2566 = vunpack.c.h.b16 %v2265
        %v2567 = vunpack.c.l.b16 %v2266
        %v2568 = vunpack.c.h.b16 %v2266
        %v2569 = vunpack.c.l.b16 %v2267
        %v2570 = vunpack.c.h.b16 %v2267
        %v2571 = vunpack.c.l.b16 %v2268
        %v2572 = vunpack.c.h.b16 %v2268
        %v2573 = vunpack.c.l.b16 %v2269
        %v2574 = vunpack.c.h.b16 %v2269
        %v2575 = vunpack.c.l.b16 %v2270
        %v2576 = vunpack.c.h.b16 %v2270
        %v2577 = vunpack.c.l.b16 %v2271
        %v2578 = vunpack.c.h.b16 %v2271
        %v2579 = vunpack.c.l.b16 %v2272
        %v2580 = vunpack.c.h.b16 %v2272
        %v2581 = vunpack.c.l.b16 %v2273
        %v2582 = vunpack.c.h.b16 %v2273
        %v2583 = vunpack.c.l.b16 %v2274
        %v2584 = vunpack.c.h.b16 %v2274
        %v2585 = vunpack.c.l.b16 %v2275
        %v2586 = vunpack.c.h.b16 %v2275
        %v2587 = vunpack.c.l.b16 %v2276
        %v2588 = vunpack.c.h.b16 %v2276
        %v2589 = vunpack.c.l.b16 %v2277
        %v2590 = vunpack.c.h.b16 %v2277
        %v2591 = vunpack.c.l.b16 %v2278
        %v2592 = vunpack.c.h.b16 %v2278
        %v2593 = vunpack.c.l.b16 %v2279
        %v2594 = vunpack.c.h.b16 %v2279
        %v2595 = vunpack.c.l.b16 %v2280
        %v2596 = vunpack.c.h.b16 %v2280
        %v2597 = vunpack.c.l.b16 %v2281
        %v2598 = vunpack.c.h.b16 %v2281
        %v2599 = vunpack.c.l.b16 %v2282
        %v2600 = vunpack.c.h.b16 %v2282
        %v2601 = vunpack.c.l.b16 %v2283
        %v2602 = vunpack.c.h.b16 %v2283
        %v2603 = vunpack.c.l.b16 %v2284
        %v2604 = vunpack.c.h.b16 %v2284
        %v2605 = vunpack.c.l.b16 %v2285
        %v2606 = vunpack.c.h.b16 %v2285
        %v2607 = vunpack.c.l.b16 %v2286
        %v2608 = vunpack.c.h.b16 %v2286
        %v2609 = vunpack.c.l.b16 %v2287
        %v2610 = vunpack.c.h.b16 %v2287
        %v2611 = vunpack.c.l.b16 %v2288
        %v2612 = vunpack.c.h.b16 %v2288
        %v2613 = vunpack.c.l.b16 %v2289
        %v2614 = vunpack.c.h.b16 %v2289
        %v2615 = vunpack.c.l.b16 %v2290
        %v2616 = vunpack.c.h.b16 %v2290
        %v2617 = vunpack.c.l.b16 %v2291
        %v2618 = vunpack.c.h.b16 %v2291
        %v2619 = vunpack.c.l.b16 %v2292
        %v2620 = vunpack.c.h.b16 %v2292
        %v2621 = vunpack.c.l.b16 %v2293
        %v2622 = vunpack.c.h.b16 %v2293
        %v2623 = vunpack.c.l.b16 %v2294
        %v2624 = vunpack.c.h.b16 %v2294
        %v2625 = vunpack.c.l.b16 %v2295
        %v2626 = vunpack.c.h.b16 %v2295
        %v2627 = vunpack.c.l.b16 %v2296
        %v2628 = vunpack.c.h.b16 %v2296
        %v2629 = vunpack.c.l.b16 %v2297
        %v2630 = vunpack.c.h.b16 %v2297
        %v2631 = vunpack.c.l.b16 %v2298
        %v2632 = vunpack.c.h.b16 %v2298
        %v2633 = vunpack.c.l.b16 %v2299
        %v2634 = vunpack.c.h.b16 %v2299
        %v2635 = vunpack.c.l.b16 %v2300
        %v2636 = vunpack.c.h.b16 %v2300
        %v2637 = vunpack.c.l.b16 %v2301
        %v2638 = vunpack.c.h.b16 %v2301
        %v2639 = vunpack.c.l.b16 %v2302
        %v2640 = vunpack.c.h.b16 %v2302
        %v2641 = vunpack.c.l.b16 %v2303
        %v2642 = vunpack.c.h.b16 %v2303
        %v2643 = vunpack.c.l.b16 %v2304
        %v2644 = vunpack.c.h.b16 %v2304
        %v2645 = vunpack.c.l.b16 %v2305
        %v2646 = vunpack.c.h.b16 %v2305
        %v2647 = vunpack.c.l.b16 %v2306
        %v2648 = vunpack.c.h.b16 %v2306
        %v2649 = vunpack.c.l.b16 %v2307
        %v2650 = vunpack.c.h.b16 %v2307
        %v2651 = vunpack.c.l.b16 %v2308
        %v2652 = vunpack.c.h.b16 %v2308
        %v2653 = vunpack.c.l.b16 %v2309
        %v2654 = vunpack.c.h.b16 %v2309
        %v2655 = vunpack.c.l.b16 %v2310
        %v2656 = vunpack.c.h.b16 %v2310
        %v2657 = vunpack.c.l.b16 %v2311
        %v2658 = vunpack.c.h.b16 %v2311
        %v2659 = vunpack.c.l.b16 %v2312
        %v2660 = vunpack.c.h.b16 %v2312
        %v2661 = vunpack.c.l.b16 %v2313
        %v2662 = vunpack.c.h.b16 %v2313
        %v2663 = vunpack.c.l.b16 %v2314
        %v2664 = vunpack.c.h.b16 %v2314
        %v2665 = vunpack.c.l.b16 %v2315
        %v2666 = vunpack.c.h.b16 %v2315
        %v2667 = vunpack.c.l.b16 %v2316
        %v2668 = vunpack.c.h.b16 %v2316
        %v2669 = vunpack.c.l.b16 %v2317
        %v2670 = vunpack.c.h.b16 %v2317
        %v2671 = vunpack.c.l.b16 %v2318
        %v2672 = vunpack.c.h.b16 %v2318
        %v2673 = vunpack.c.l.b16 %v2319
        %v2674 = vunpack.c.h.b16 %v2319
        %v2675 = vunpack.c.l.b16 %v2320
        %v2676 = vunpack.c.h.b16 %v2320
        %v2677 = vunpack.c.l.b16 %v2321
        %v2678 = vunpack.c.h.b16 %v2321
        %v2679 = vunpack.c.l.b16 %v2322
        %v2680 = vunpack.c.h.b16 %v2322
        %v2681 = vunpack.c.l.b16 %v2323
        %v2682 = vunpack.c.h.b16 %v2323
        %v2683 = vunpack.c.l.b16 %v2324
        %v2684 = vunpack.c.h.b16 %v2324
        %v2685 = vunpack.c.l.b16 %v2325
        %v2686 = vunpack.c.h.b16 %v2325
        %v2687 = vunpack.c.l.b16 %v2326
        %v2688 = vunpack.c.h.b16 %v2326
        %v2689 = vunpack.c.l.b16 %v2327
        %v2690 = vunpack.c.h.b16 %v2327
        %v2691 = vunpack.c.l.b16 %v2328
        %v2692 = vunpack.c.h.b16 %v2328
        %v2693 = vunpack.c.l.b16 %v2329
        %v2694 = vunpack.c.h.b16 %v2329
        %v2695 = vunpack.c.l.b16 %v2330
        %v2696 = vunpack.c.h.b16 %v2330
        %v2697 = vunpack.c.l.b16 %v2331
        %v2698 = vunpack.c.h.b16 %v2331
        %v2699 = vunpack.c.l.b16 %v2332
        %v2700 = vunpack.c.h.b16 %v2332
        %v2701 = vunpack.c.l.b16 %v2333
        %v2702 = vunpack.c.h.b16 %v2333
        %v2703 = vunpack.c.l.b16 %v2334
        %v2704 = vunpack.c.h.b16 %v2334
        %v2705 = vunpack.c.l.b16 %v2335
        %v2706 = vunpack.c.h.b16 %v2335
        %v2707 = vunpack.c.l.b16 %v2336
        %v2708 = vunpack.c.h.b16 %v2336
        %v2709 = vunpack.c.l.b16 %v2337
        %v2710 = vunpack.c.h.b16 %v2337
        %v2711 = vunpack.c.l.b16 %v2338
        %v2712 = vunpack.c.h.b16 %v2338
        %v2713 = vunpack.c.l.b16 %v2339
        %v2714 = vunpack.c.h.b16 %v2339
        %v2715 = vunpack.c.l.b16 %v2340
        %v2716 = vunpack.c.h.b16 %v2340
        %v2717 = vunpack.c.l.b16 %v2341
        %v2718 = vunpack.c.h.b16 %v2341
        %v2719 = vunpack.c.l.b16 %v2342
        %v2720 = vunpack.c.h.b16 %v2342
        %v2721 = vunpack.c.l.b16 %v2343
        %v2722 = vunpack.c.h.b16 %v2343
        %v2723 = vunpack.c.l.b16 %v2344
        %v2724 = vunpack.c.h.b16 %v2344
        %v2725 = vunpack.c.l.b16 %v2345
        %v2726 = vunpack.c.h.b16 %v2345
        %v2727 = vunpack.c.l.b16 %v2346
        %v2728 = vunpack.c.h.b16 %v2346
        %v2729 = vunpack.c.l.b16 %v2347
        %v2730 = vunpack.c.h.b16 %v2347
        %v2731 = vunpack.c.l.b16 %v2348
        %v2732 = vunpack.c.h.b16 %v2348
        %v2733 = vunpack.c.l.b16 %v2349
        %v2734 = vunpack.c.h.b16 %v2349
        %v2735 = vunpack.c.l.b16 %v2350
        %v2736 = vunpack.c.h.b16 %v2350
        %v2737 = vunpack.c.l.b16 %v2351
        %v2738 = vunpack.c.h.b16 %v2351
        %v2739 = vunpack.c.l.b16 %v2352
        %v2740 = vunpack.c.h.b16 %v2352
        %v2741 = vunpack.c.l.b16 %v2353
        %v2742 = vunpack.c.h.b16 %v2353
        %v2743 = vunpack.c.l.b16 %v2354
        %v2744 = vunpack.c.h.b16 %v2354
        %v2745 = vunpack.c.l.b16 %v2355
        %v2746 = vunpack.c.h.b16 %v2355
        %v2747 = vunpack.c.l.b16 %v2356
        %v2748 = vunpack.c.h.b16 %v2356
        %v2749 = vunpack.c.l.b16 %v2357
        %v2750 = vunpack.c.h.b16 %v2357
        %v2751 = vunpack.c.l.b16 %v2358
        %v2752 = vunpack.c.h.b16 %v2358
        %v2753 = vunpack.c.l.b16 %v2359
        %v2754 = vunpack.c.h.b16 %v2359
        %v2755 = vunpack.c.l.b16 %v2360
        %v2756 = vunpack.c.h.b16 %v2360
        %v2757 = vunpack.c.l.b16 %v2361
        %v2758 = vunpack.c.h.b16 %v2361
        %v2759 = vunpack.c.l.b16 %v2362
        %v2760 = vunpack.c.h.b16 %v2362
        %v2761 = vunpack.c.l.b16 %v2363
        %v2762 = vunpack.c.h.b16 %v2363
        %v2763 = vunpack.c.l.b16 %v2364
        %v2764 = vunpack.c.h.b16 %v2364
        %v2765 = vunpack.c.l.b16 %v2365
        %v2766 = vunpack.c.h.b16 %v2365
        %v2767 = vunpack.c.l.b16 %v2366
        %v2768 = vunpack.c.h.b16 %v2366
        %v2769 = vunpack.c.l.b16 %v2367
        %v2770 = vunpack.c.h.b16 %v2367
        %v2771 = vunpack.c.l.b16 %v2368
        %v2772 = vunpack.c.h.b16 %v2368
        %v2773 = vunpack.c.l.b16 %v2369
        %v2774 = vunpack.c.h.b16 %v2369
        %v2775 = vunpack.c.l.b16 %v2370
        %v2776 = vunpack.c.h.b16 %v2370
        %v2777 = vunpack.c.l.b16 %v2371
        %v2778 = vunpack.c.h.b16 %v2371
        %v2779 = vunpack.c.l.b16 %v2372
        %v2780 = vunpack.c.h.b16 %v2372
        %v2781 = vunpack.c.l.b16 %v2373
        %v2782 = vunpack.c.h.b16 %v2373
        %v2783 = vunpack.c.l.b16 %v2374
        %v2784 = vunpack.c.h.b16 %v2374
        %v2785 = vunpack.c.l.b16 %v2375
        %v2786 = vunpack.c.h.b16 %v2375
        %v2787 = vunpack.c.l.b16 %v2376
        %v2788 = vunpack.c.h.b16 %v2376
        %v2789 = vunpack.c.l.b16 %v2377
        %v2790 = vunpack.c.h.b16 %v2377
        %v2791 = vunpack.c.l.b16 %v2378
        %v2792 = vunpack.c.h.b16 %v2378
        %v2793 = vunpack.c.l.b16 %v2379
        %v2794 = vunpack.c.h.b16 %v2379
        %v2795 = vunpack.c.l.b16 %v2380
        %v2796 = vunpack.c.h.b16 %v2380
        %v2797 = vunpack.c.l.b16 %v2381
        %v2798 = vunpack.c.h.b16 %v2381
        %v2799 = vunpack.c.l.b16 %v2382
        %v2800 = vunpack.c.h.b16 %v2382
        %v2801 = vunpack.c.l.b16 %v2383
        %v2802 = vunpack.c.h.b16 %v2383
        %v2803 = vunpack.c.l.b16 %v2384
        %v2804 = vunpack.c.h.b16 %v2384
        %v2805 = vunpack.c.l.b16 %v2385
        %v2806 = vunpack.c.h.b16 %v2385
        %v2807 = vunpack.c.l.b16 %v2386
        %v2808 = vunpack.c.h.b16 %v2386
        %v2809 = vunpack.c.l.b16 %v2387
        %v2810 = vunpack.c.h.b16 %v2387
        %v2811 = vunpack.c.l.b16 %v2388
        %v2812 = vunpack.c.h.b16 %v2388
        %v2813 = vpack.c.b16 %v2559, %v2557
        %v2814 = vpack.c.b16 %v2560, %v2558
        %v2815 = vpack.c.b16 %v2563, %v2561
        %v2816 = vpack.c.b16 %v2564, %v2562
        %v2817 = vpack.c.b16 %v2567, %v2565
        %v2818 = vpack.c.b16 %v2568, %v2566
        %v2819 = vpack.c.b16 %v2571, %v2569
        %v2820 = vpack.c.b16 %v2572, %v2570
        %v2821 = vpack.c.b16 %v2575, %v2573
        %v2822 = vpack.c.b16 %v2576, %v2574
        %v2823 = vpack.c.b16 %v2579, %v2577
        %v2824 = vpack.c.b16 %v2580, %v2578
        %v2825 = vpack.c.b16 %v2583, %v2581
        %v2826 = vpack.c.b16 %v2584, %v2582
        %v2827 = vpack.c.b16 %v2587, %v2585
        %v2828 = vpack.c.b16 %v2588, %v2586
        %v2829 = vpack.c.b16 %v2591, %v2589
        %v2830 = vpack.c.b16 %v2592, %v2590
        %v2831 = vpack.c.b16 %v2595, %v2593
        %v2832 = vpack.c.b16 %v2596, %v2594
        %v2833 = vpack.c.b16 %v2599, %v2597
        %v2834 = vpack.c.b16 %v2600, %v2598
        %v2835 = vpack.c.b16 %v2603, %v2601
        %v2836 = vpack.c.b16 %v2604, %v2602
        %v2837 = vpack.c.b16 %v2607, %v2605
        %v2838 = vpack.c.b16 %v2608, %v2606
        %v2839 = vpack.c.b16 %v2611, %v2609
        %v2840 = vpack.c.b16 %v2612, %v2610
        %v2841 = vpack.c.b16 %v2615, %v2613
        %v2842 = vpack.c.b16 %v2616, %v2614
        %v2843 = vpack.c.b16 %v2619, %v2617
        %v2844 = vpack.c.b16 %v2620, %v2618
        %v2845 = vpack.c.b16 %v2623, %v2621
        %v2846 = vpack.c.b16 %v2624, %v2622
        %v2847 = vpack.c.b16 %v2627, %v2625
        %v2848 = vpack.c.b16 %v2628, %v2626
        %v2849 = vpack.c.b16 %v2631, %v2629
        %v2850 = vpack.c.b16 %v2632, %v2630
        %v2851 = vpack.c.b16 %v2635, %v2633
        %v2852 = vpack.c.b16 %v2636, %v2634
        %v2853 = vpack.c.b16 %v2639, %v2637
        %v2854 = vpack.c.b16 %v2640, %v2638
        %v2855 = vpack.c.b16 %v2643, %v2641
        %v2856 = vpack.c.b16 %v2644, %v2642
        %v2857 = vpack.c.b16 %v2647, %v2645
        %v2858 = vpack.c.b16 %v2648, %v2646
        %v2859 = vpack.c.b16 %v2651, %v2649
        %v2860 = vpack.c.b16 %v2652, %v2650
        %v2861 = vpack.c.b16 %v2655, %v2653
        %v2862 = vpack.c.b16 %v2656, %v2654
        %v2863 = vpack.c.b16 %v2659, %v2657
        %v2864 = vpack.c.b16 %v2660, %v2658
        %v2865 = vpack.c.b16 %v2663, %v2661
        %v2866 = vpack.c.b16 %v2664, %v2662
        %v2867 = vpack.c.b16 %v2667, %v2665
        %v2868 = vpack.c.b16 %v2668, %v2666
        %v2869 = vpack.c.b16 %v2671, %v2669
        %v2870 = vpack.c.b16 %v2672, %v2670
        %v2871 = vpack.c.b16 %v2675, %v2673
        %v2872 = vpack.c.b16 %v2676, %v2674
        %v2873 = vpack.c.b16 %v2679, %v2677
        %v2874 = vpack.c.b16 %v2680, %v2678
        %v2875 = vpack.c.b16 %v2683, %v2681
        %v2876 = vpack.c.b16 %v2684, %v2682
        %v2877 = vpack.c.b16 %v2687, %v2685
        %v2878 = vpack.c.b16 %v2688, %v2686
        %v2879 = vpack.c.b16 %v2691, %v2689
        %v2880 = vpack.c.b16 %v2692, %v2690
        %v2881 = vpack.c.b16 %v2695, %v2693
        %v2882 = vpack.c.b16 %v2696, %v2694
        %v2883 = vpack.c.b16 %v2699, %v2697
        %v2884 = vpack.c.b16 %v2700, %v2698
        %v2885 = vpack.c.b16 %v2703, %v2701
        %v2886 = vpack.c.b16 %v2704, %v2702
        %v2887 = vpack.c.b16 %v2707, %v2705
        %v2888 = vpack.c.b16 %v2708, %v2706
        %v2889 = vpack.c.b16 %v2711, %v2709
        %v2890 = vpack.c.b16 %v2712, %v2710
        %v2891 = vpack.c.b16 %v2715, %v2713
        %v2892 = vpack.c.b16 %v2716, %v2714
        %v2893 = vpack.c.b16 %v2719, %v2717
        %v2894 = vpack.c.b16 %v2720, %v2718
        %v2895 = vpack.c.b16 %v2723, %v2721
        %v2896 = vpack.c.b16 %v2724, %v2722
        %v2897 = vpack.c.b16 %v2727, %v2725
        %v2898 = vpack.c.b16 %v2728, %v2726
        %v2899 = vpack.c.b16 %v2731, %v2729
        %v2900 = vpack.c.b16 %v2732, %v2730
        %v2901 = vpack.c.b16 %v2735, %v2733
        %v2902 = vpack.c.b16 %v2736, %v2734
        %v2903 = vpack.c.b16 %v2739, %v2737
        %v2904 = vpack.c.b16 %v2740, %v2738
        %v2905 = vpack.c.b16 %v2743, %v2741
        %v2906 = vpack.c.b16 %v2744, %v2742
        %v2907 = vpack.c.b16 %v2747, %v2745
        %v2908 = vpack.c.b16 %v2748, %v2746
        %v2909 = vpack.c.b16 %v2751, %v2749
        %v2910 = vpack.c.b16 %v2752, %v2750
        %v2911 = vpack.c.b16 %v2755, %v2753
        %v2912 = vpack.c.b16 %v2756, %v2754
        %v2913 = vpack.c.b16 %v2759, %v2757
        %v2914 = vpack.c.b16 %v2760, %v2758
        %v2915 = vpack.c.b16 %v2763, %v2761
        %v2916 = vpack.c.b16 %v2764, %v2762
        %v2917 = vpack.c.b16 %v2767, %v2765
        %v2918 = vpack.c.b16 %v2768, %v2766
        %v2919 = vpack.c.b16 %v2771, %v2769
        %v2920 = vpack.c.b16 %v2772, %v2770
        %v2921 = vpack.c.b16 %v2775, %v2773
        %v2922 = vpack.c.b16 %v2776, %v2774
        %v2923 = vpack.c.b16 %v2779, %v2777
        %v2924 = vpack.c.b16 %v2780, %v2778
        %v2925 = vpack.c.b16 %v2783, %v2781
        %v2926 = vpack.c.b16 %v2784, %v2782
        %v2927 = vpack.c.b16 %v2787, %v2785
        %v2928 = vpack.c.b16 %v2788, %v2786
        %v2929 = vpack.c.b16 %v2791, %v2789
        %v2930 = vpack.c.b16 %v2792, %v2790
        %v2931 = vpack.c.b16 %v2795, %v2793
        %v2932 = vpack.c.b16 %v2796, %v2794
        %v2933 = vpack.c.b16 %v2799, %v2797
        %v2934 = vpack.c.b16 %v2800, %v2798
        %v2935 = vpack.c.b16 %v2803, %v2801
        %v2936 = vpack.c.b16 %v2804, %v2802
        %v2937 = vpack.c.b16 %v2807, %v2805
        %v2938 = vpack.c.b16 %v2808, %v2806
        %v2939 = vpack.c.b16 %v2811, %v2809
        %v2940 = vpack.c.b16 %v2812, %v2810
        %3069 = vmatprep.subr.bf16.mxu0 %v2828
        %3070 = vmatpush1.bf16.msra.mxu0 %v2827
        %3071 = vmatprep.subr.bf16.mxu0 %v2826
        %3072 = vmatpush1.bf16.msra.mxu0 %v2825
        %3073 = vmatprep.subr.bf16.mxu0 %v2824
        %3074 = vmatpush1.bf16.msra.mxu0 %v2823
        %3075 = vmatprep.subr.bf16.mxu0 %v2822
        %3076 = vmatpush1.bf16.msra.mxu0 %v2821
        %3077 = vmatprep.subr.bf16.mxu0 %v2820
        %3078 = vmatpush1.bf16.msra.mxu0 %v2819
        %3079 = vmatprep.subr.bf16.mxu0 %v2818
        %3080 = vmatpush1.bf16.msra.mxu0 %v2817
        %3081 = vmatprep.subr.bf16.mxu0 %v2816
        %3082 = vmatpush1.bf16.msra.mxu0 %v2815
        %3083 = vmatprep.subr.bf16.mxu0 %v2814
        %3084 = vmatpush1.bf16.msra.mxu0 %v2813
        %3085 = vmatprep.subr.bf16.mxu0 %v2844
        %3086 = vmatpush2.bf16.msra.mxu0 %v2843
        %3087 = vmatprep.subr.bf16.mxu0 %v2842
        %3088 = vmatpush2.bf16.msra.mxu0 %v2841
        %3089 = vmatprep.subr.bf16.mxu0 %v2840
        %3090 = vmatpush2.bf16.msra.mxu0 %v2839
        %3091 = vmatprep.subr.bf16.mxu0 %v2838
        %3092 = vmatpush2.bf16.msra.mxu0 %v2837
        %3093 = vmatprep.subr.bf16.mxu0 %v2836
        %3094 = vmatpush2.bf16.msra.mxu0 %v2835
        %3095 = vmatprep.subr.bf16.mxu0 %v2834
        %3096 = vmatpush2.bf16.msra.mxu0 %v2833
        %3097 = vmatprep.subr.bf16.mxu0 %v2832
        %3098 = vmatpush2.bf16.msra.mxu0 %v2831
        %3099 = vmatprep.subr.bf16.mxu0 %v2830
        %3100 = vmatpush2.bf16.msra.mxu0 %v2829
        %3101 = vmatprep.mubr.bf16.mxu0 %v2414
        %3102 = vmatmul.mubr.bf16.gmra.mxu0 %v2413
        %v3103 = vpop.f32.mrf.mxu0
        %v3104 = vadd.f32 0.0, %v3103
        %v3105 = vpop.f32.mrf.mxu0
        %v3106 = vadd.f32 0.0, %v3105
        %v3107 = vpop.f32.mrf.mxu0
        %v3108 = vadd.f32 0.0, %v3107
        %v3109 = vpop.f32.mrf.mxu0
        %v3110 = vadd.f32 0.0, %v3109
        %3111 = vdwg.mxu0
        %3112 = vmatprep.subr.bf16.mxu0 %v2860
        %3113 = vmatpush1.bf16.msra.mxu0 %v2859
        %3114 = vmatprep.subr.bf16.mxu0 %v2858
        %3115 = vmatpush1.bf16.msra.mxu0 %v2857
        %3116 = vmatprep.subr.bf16.mxu0 %v2856
        %3117 = vmatpush1.bf16.msra.mxu0 %v2855
        %3118 = vmatprep.subr.bf16.mxu0 %v2854
        %3119 = vmatpush1.bf16.msra.mxu0 %v2853
        %3120 = vmatprep.subr.bf16.mxu0 %v2852
        %3121 = vmatpush1.bf16.msra.mxu0 %v2851
        %3122 = vmatprep.subr.bf16.mxu0 %v2850
        %3123 = vmatpush1.bf16.msra.mxu0 %v2849
        %3124 = vmatprep.subr.bf16.mxu0 %v2848
        %3125 = vmatpush1.bf16.msra.mxu0 %v2847
        %3126 = vmatprep.subr.bf16.mxu0 %v2846
        %3127 = vmatpush1.bf16.msra.mxu0 %v2845
        %3128 = vmatprep.subr.bf16.mxu0 %v2876
        %3129 = vmatpush2.bf16.msra.mxu0 %v2875
        %3130 = vmatprep.subr.bf16.mxu0 %v2874
        %3131 = vmatpush2.bf16.msra.mxu0 %v2873
        %3132 = vmatprep.subr.bf16.mxu0 %v2872
        %3133 = vmatpush2.bf16.msra.mxu0 %v2871
        %3134 = vmatprep.subr.bf16.mxu0 %v2870
        %3135 = vmatpush2.bf16.msra.mxu0 %v2869
        %3136 = vmatprep.subr.bf16.mxu0 %v2868
        %3137 = vmatpush2.bf16.msra.mxu0 %v2867
        %3138 = vmatprep.subr.bf16.mxu0 %v2866
        %3139 = vmatpush2.bf16.msra.mxu0 %v2865
        %3140 = vmatprep.subr.bf16.mxu0 %v2864
        %3141 = vmatpush2.bf16.msra.mxu0 %v2863
        %3142 = vmatprep.subr.bf16.mxu0 %v2862
        %3143 = vmatpush2.bf16.msra.mxu0 %v2861
        %3144 = vmatprep.mubr.bf16.mxu0 %v2416
        %3145 = vmatmul.mubr.bf16.gmra.mxu0 %v2415
        %v3146 = vpop.f32.mrf.mxu0
        %v3147 = vadd.f32 %v3104, %v3146
        %v3148 = vpop.f32.mrf.mxu0
        %v3149 = vadd.f32 %v3106, %v3148
        %v3150 = vpop.f32.mrf.mxu0
        %v3151 = vadd.f32 %v3108, %v3150
        %v3152 = vpop.f32.mrf.mxu0
        %v3153 = vadd.f32 %v3110, %v3152
        %3154 = vdwg.mxu0
        %3155 = vmatprep.subr.bf16.mxu0 %v2892
        %3156 = vmatpush1.bf16.msra.mxu0 %v2891
        %3157 = vmatprep.subr.bf16.mxu0 %v2890
        %3158 = vmatpush1.bf16.msra.mxu0 %v2889
        %3159 = vmatprep.subr.bf16.mxu0 %v2888
        %3160 = vmatpush1.bf16.msra.mxu0 %v2887
        %3161 = vmatprep.subr.bf16.mxu0 %v2886
        %3162 = vmatpush1.bf16.msra.mxu0 %v2885
        %3163 = vmatprep.subr.bf16.mxu0 %v2884
        %3164 = vmatpush1.bf16.msra.mxu0 %v2883
        %3165 = vmatprep.subr.bf16.mxu0 %v2882
        %3166 = vmatpush1.bf16.msra.mxu0 %v2881
        %3167 = vmatprep.subr.bf16.mxu0 %v2880
        %3168 = vmatpush1.bf16.msra.mxu0 %v2879
        %3169 = vmatprep.subr.bf16.mxu0 %v2878
        %3170 = vmatpush1.bf16.msra.mxu0 %v2877
        %3171 = vmatprep.subr.bf16.mxu0 %v2908
        %3172 = vmatpush2.bf16.msra.mxu0 %v2907
        %3173 = vmatprep.subr.bf16.mxu0 %v2906
        %3174 = vmatpush2.bf16.msra.mxu0 %v2905
        %3175 = vmatprep.subr.bf16.mxu0 %v2904
        %3176 = vmatpush2.bf16.msra.mxu0 %v2903
        %3177 = vmatprep.subr.bf16.mxu0 %v2902
        %3178 = vmatpush2.bf16.msra.mxu0 %v2901
        %3179 = vmatprep.subr.bf16.mxu0 %v2900
        %3180 = vmatpush2.bf16.msra.mxu0 %v2899
        %3181 = vmatprep.subr.bf16.mxu0 %v2898
        %3182 = vmatpush2.bf16.msra.mxu0 %v2897
        %3183 = vmatprep.subr.bf16.mxu0 %v2896
        %3184 = vmatpush2.bf16.msra.mxu0 %v2895
        %3185 = vmatprep.subr.bf16.mxu0 %v2894
        %3186 = vmatpush2.bf16.msra.mxu0 %v2893
        %3187 = vmatprep.mubr.bf16.mxu0 %v2418
        %3188 = vmatmul.mubr.bf16.gmra.mxu0 %v2417
        %v3189 = vpop.f32.mrf.mxu0
        %v3190 = vadd.f32 %v3147, %v3189
        %v3191 = vpop.f32.mrf.mxu0
        %v3192 = vadd.f32 %v3149, %v3191
        %v3193 = vpop.f32.mrf.mxu0
        %v3194 = vadd.f32 %v3151, %v3193
        %v3195 = vpop.f32.mrf.mxu0
        %v3196 = vadd.f32 %v3153, %v3195
        %3197 = vdwg.mxu0
        %3198 = vmatprep.subr.bf16.mxu0 %v2924
        %3199 = vmatpush1.bf16.msra.mxu0 %v2923
        %3200 = vmatprep.subr.bf16.mxu0 %v2922
        %3201 = vmatpush1.bf16.msra.mxu0 %v2921
        %3202 = vmatprep.subr.bf16.mxu0 %v2920
        %3203 = vmatpush1.bf16.msra.mxu0 %v2919
        %3204 = vmatprep.subr.bf16.mxu0 %v2918
        %3205 = vmatpush1.bf16.msra.mxu0 %v2917
        %3206 = vmatprep.subr.bf16.mxu0 %v2916
        %3207 = vmatpush1.bf16.msra.mxu0 %v2915
        %3208 = vmatprep.subr.bf16.mxu0 %v2914
        %3209 = vmatpush1.bf16.msra.mxu0 %v2913
        %3210 = vmatprep.subr.bf16.mxu0 %v2912
        %3211 = vmatpush1.bf16.msra.mxu0 %v2911
        %3212 = vmatprep.subr.bf16.mxu0 %v2910
        %3213 = vmatpush1.bf16.msra.mxu0 %v2909
        %3214 = vmatprep.subr.bf16.mxu0 %v2940
        %3215 = vmatpush2.bf16.msra.mxu0 %v2939
        %3216 = vmatprep.subr.bf16.mxu0 %v2938
        %3217 = vmatpush2.bf16.msra.mxu0 %v2937
        %3218 = vmatprep.subr.bf16.mxu0 %v2936
        %3219 = vmatpush2.bf16.msra.mxu0 %v2935
        %3220 = vmatprep.subr.bf16.mxu0 %v2934
        %3221 = vmatpush2.bf16.msra.mxu0 %v2933
        %3222 = vmatprep.subr.bf16.mxu0 %v2932
        %3223 = vmatpush2.bf16.msra.mxu0 %v2931
        %3224 = vmatprep.subr.bf16.mxu0 %v2930
        %3225 = vmatpush2.bf16.msra.mxu0 %v2929
        %3226 = vmatprep.subr.bf16.mxu0 %v2928
        %3227 = vmatpush2.bf16.msra.mxu0 %v2927
        %3228 = vmatprep.subr.bf16.mxu0 %v2926
        %3229 = vmatpush2.bf16.msra.mxu0 %v2925
        %3230 = vmatprep.mubr.bf16.mxu0 %v2420
        %3231 = vmatmul.mubr.bf16.gmra.mxu0 %v2419
        %v3232 = vpop.f32.mrf.mxu0
        %v3233 = vadd.f32 %v3190, %v3232
        %v3234 = vpop.f32.mrf.mxu0
        %v3235 = vadd.f32 %v3192, %v3234
        %v3236 = vpop.f32.mrf.mxu0
        %v3237 = vadd.f32 %v3194, %v3236
        %v3238 = vpop.f32.mrf.mxu0
        %v3239 = vadd.f32 %v3196, %v3238
        %3240 = vdwg.mxu0
        %v3241 = vld [vmem:[#allocation3] sm:$0xf]
        %v3242 = vld [vmem:[#allocation3 + $0x4] sm:$0xf]
        %v3243 = vpack.c.bf16 %v3237, %v3233
        %v3244 = vpack.c.bf16 %v3239, %v3235
        %v3245 = vld [vmem:[%s381] sm:$0x3]
        %v3247 = vlaneseq
        %v3248 = vshrl.u32 %v3247, 7
        %v3249 = vsub.s32 0, %v3248
        %v3250 = vrot.slane %v3245, %v3249
        %v3251 = vlaneseq
        %v3252 = vshrl.u32 %v3251, 7
        %v3253 = vsub.s32 1, %v3252
        %v3254 = vrot.slane %v3245, %v3253
        %v3259 = vunpack.c.l.b16 %v3241
        %v3260 = vunpack.c.l.b16 %v3242
        %v3261 = vpack.c.b16 %v3260, %v3259
        %vm3262 = vcmask 130048
        %v3264 = vsel %vm3262, %v3261, 0
        %3266 = vmatprep.subr.bf16.mxu0 0
        %3267 = vmatpush1.bf16.msra.mxu0 0
        %3268 = vmatprep.subr.bf16.mxu0 0
        %3269 = vmatpush1.bf16.msra.mxu0 0
        %3270 = vmatprep.subr.bf16.mxu0 0
        %3271 = vmatpush1.bf16.msra.mxu0 0
        %3272 = vmatprep.subr.bf16.mxu0 0
        %3273 = vmatpush1.bf16.msra.mxu0 0
        %3274 = vmatprep.subr.bf16.mxu0 0
        %3275 = vmatpush1.bf16.msra.mxu0 0
        %3276 = vmatprep.subr.bf16.mxu0 0
        %3277 = vmatpush1.bf16.msra.mxu0 0
        %3278 = vmatprep.subr.bf16.mxu0 0
        %3279 = vmatpush1.bf16.msra.mxu0 0
        %3280 = vmatprep.subr.bf16.mxu0 %v3244
        %3281 = vmatpush1.bf16.msra.mxu0 %v3243
        %3282 = vmatprep.subr.bf16.mxu0 0
        %3283 = vmatpush2.bf16.msra.mxu0 0
        %3284 = vmatprep.subr.bf16.mxu0 0
        %3285 = vmatpush2.bf16.msra.mxu0 0
        %3286 = vmatprep.subr.bf16.mxu0 0
        %3287 = vmatpush2.bf16.msra.mxu0 0
        %3288 = vmatprep.subr.bf16.mxu0 0
        %3289 = vmatpush2.bf16.msra.mxu0 0
        %3290 = vmatprep.subr.bf16.mxu0 0
        %3291 = vmatpush2.bf16.msra.mxu0 0
        %3292 = vmatprep.subr.bf16.mxu0 0
        %3293 = vmatpush2.bf16.msra.mxu0 0
        %3294 = vmatprep.subr.bf16.mxu0 0
        %3295 = vmatpush2.bf16.msra.mxu0 0
        %3296 = vmatprep.subr.bf16.mxu0 0
        %3297 = vmatpush2.bf16.msra.mxu0 0
        %3298 = vmatprep.mubr.bf16.mxu0 0
        %3299 = vmatmul.mubr.bf16.gmra.mxu0 %v3264
        %v3300 = vpop.f32.mrf.mxu0
        %v3301 = vadd.f32 %v3250, %v3300
        %v3302 = vpop.f32.mrf.mxu0
        %v3303 = vadd.f32 %v3254, %v3302
        %v3304 = vpop.f32.mrf.mxu0
        %v3305 = vadd.f32 %v3250, %v3304
        %v3306 = vpop.f32.mrf.mxu0
        %v3307 = vadd.f32 %v3254, %v3306
        %3308 = vdwg.mxu0
        %vm3309 = vcmp.gt.f32.partialorder %v3301, 0.0
        %vm3310 = vcmp.gt.f32.partialorder %v3303, 0.0
        %vm3311 = vcmp.gt.f32.partialorder %v3305, 0.0
        %vm3312 = vcmp.gt.f32.partialorder %v3307, 0.0
        %v3313 = vmul.f32 %v3301, 0.2
        %v3314 = vmul.f32 %v3303, 0.2
        %v3315 = vmul.f32 %v3305, 0.2
        %v3316 = vmul.f32 %v3307, 0.2
        %v3317 = vsel %vm3309, %v3301, %v3313
        %v3318 = vsel %vm3310, %v3303, %v3314
        %v3319 = vsel %vm3311, %v3305, %v3315
        %v3320 = vsel %vm3312, %v3307, %v3316
        %v3321 = vld [vmem:[%s419] sm:$0xff]
        %v3322 = vld [vmem:[%s419 + $0x8] sm:$0xff]
        %v3323 = vld [vmem:[%s419 + $0x10] sm:$0xff]
        %v3324 = vld [vmem:[%s419 + $0x18] sm:$0xff]
        %v3325 = vld [vmem:[%s419 + $0x20] sm:$0xff]
        %v3326 = vld [vmem:[%s419 + $0x28] sm:$0xff]
        %v3327 = vld [vmem:[%s419 + $0x30] sm:$0xff]
        %v3328 = vld [vmem:[%s419 + $0x38] sm:$0xff]
        %v3329 = vpack.c.bf16 %v3319, %v3317
        %v3330 = vpack.c.bf16 %v3320, %v3318
        %v3331 = vld [vmem:[%s372] sm:$0xff]
        %v3332 = vld [vmem:[%s372 + $0x8] sm:$0xff]
        %v3333 = vld [vmem:[%s372 + $0x10] sm:$0xff]
        %v3334 = vld [vmem:[%s372 + $0x18] sm:$0xff]
        %v3335 = vld [vmem:[%s372 + $0x20] sm:$0xff]
        %v3336 = vld [vmem:[%s372 + $0x28] sm:$0xff]
        %v3337 = vld [vmem:[%s372 + $0x30] sm:$0xff]
        %v3338 = vld [vmem:[%s372 + $0x38] sm:$0xff]
        %v3339 = vld [vmem:[%s372 + $0x40] sm:$0xff]
        %v3340 = vld [vmem:[%s372 + $0x48] sm:$0xff]
        %v3341 = vld [vmem:[%s372 + $0x50] sm:$0xff]
        %v3342 = vld [vmem:[%s372 + $0x58] sm:$0xff]
        %v3343 = vld [vmem:[%s372 + $0x60] sm:$0xff]
        %v3344 = vld [vmem:[%s372 + $0x68] sm:$0xff]
        %v3345 = vld [vmem:[%s372 + $0x70] sm:$0xff]
        %v3346 = vld [vmem:[%s372 + $0x78] sm:$0xff]
        %v3347 = vld [vmem:[%s372 + $0x80] sm:$0xff]
        %v3348 = vld [vmem:[%s372 + $0x88] sm:$0xff]
        %v3349 = vld [vmem:[%s372 + $0x90] sm:$0xff]
        %v3350 = vld [vmem:[%s372 + $0x98] sm:$0xff]
        %v3351 = vld [vmem:[%s372 + $0xa0] sm:$0xff]
        %v3352 = vld [vmem:[%s372 + $0xa8] sm:$0xff]
        %v3353 = vld [vmem:[%s372 + $0xb0] sm:$0xff]
        %v3354 = vld [vmem:[%s372 + $0xb8] sm:$0xff]
        %v3355 = vld [vmem:[%s372 + $0xc0] sm:$0xff]
        %v3356 = vld [vmem:[%s372 + $0xc8] sm:$0xff]
        %v3357 = vld [vmem:[%s372 + $0xd0] sm:$0xff]
        %v3358 = vld [vmem:[%s372 + $0xd8] sm:$0xff]
        %v3359 = vld [vmem:[%s372 + $0xe0] sm:$0xff]
        %v3360 = vld [vmem:[%s372 + $0xe8] sm:$0xff]
        %v3361 = vld [vmem:[%s372 + $0xf0] sm:$0xff]
        %v3362 = vld [vmem:[%s372 + $0xf8] sm:$0xff]
        %v3363 = vld [vmem:[%s372 + $0x100] sm:$0xff]
        %v3364 = vld [vmem:[%s372 + $0x108] sm:$0xff]
        %v3365 = vld [vmem:[%s372 + $0x110] sm:$0xff]
        %v3366 = vld [vmem:[%s372 + $0x118] sm:$0xff]
        %v3367 = vld [vmem:[%s372 + $0x120] sm:$0xff]
        %v3368 = vld [vmem:[%s372 + $0x128] sm:$0xff]
        %v3369 = vld [vmem:[%s372 + $0x130] sm:$0xff]
        %v3370 = vld [vmem:[%s372 + $0x138] sm:$0xff]
        %v3371 = vld [vmem:[%s372 + $0x140] sm:$0xff]
        %v3372 = vld [vmem:[%s372 + $0x148] sm:$0xff]
        %v3373 = vld [vmem:[%s372 + $0x150] sm:$0xff]
        %v3374 = vld [vmem:[%s372 + $0x158] sm:$0xff]
        %v3375 = vld [vmem:[%s372 + $0x160] sm:$0xff]
        %v3376 = vld [vmem:[%s372 + $0x168] sm:$0xff]
        %v3377 = vld [vmem:[%s372 + $0x170] sm:$0xff]
        %v3378 = vld [vmem:[%s372 + $0x178] sm:$0xff]
        %v3379 = vld [vmem:[%s372 + $0x180] sm:$0xff]
        %v3380 = vld [vmem:[%s372 + $0x188] sm:$0xff]
        %v3381 = vld [vmem:[%s372 + $0x190] sm:$0xff]
        %v3382 = vld [vmem:[%s372 + $0x198] sm:$0xff]
        %v3383 = vld [vmem:[%s372 + $0x1a0] sm:$0xff]
        %v3384 = vld [vmem:[%s372 + $0x1a8] sm:$0xff]
        %v3385 = vld [vmem:[%s372 + $0x1b0] sm:$0xff]
        %v3386 = vld [vmem:[%s372 + $0x1b8] sm:$0xff]
        %v3387 = vld [vmem:[%s372 + $0x1c0] sm:$0xff]
        %v3388 = vld [vmem:[%s372 + $0x1c8] sm:$0xff]
        %v3389 = vld [vmem:[%s372 + $0x1d0] sm:$0xff]
        %v3390 = vld [vmem:[%s372 + $0x1d8] sm:$0xff]
        %v3391 = vld [vmem:[%s372 + $0x1e0] sm:$0xff]
        %v3392 = vld [vmem:[%s372 + $0x1e8] sm:$0xff]
        %v3393 = vld [vmem:[%s372 + $0x1f0] sm:$0xff]
        %v3394 = vld [vmem:[%s372 + $0x1f8] sm:$0xff]
        %v3459 = vunpack.c.l.b16 %v3331
        %v3460 = vunpack.c.h.b16 %v3331
        %v3461 = vunpack.c.l.b16 %v3332
        %v3462 = vunpack.c.h.b16 %v3332
        %v3463 = vunpack.c.l.b16 %v3333
        %v3464 = vunpack.c.h.b16 %v3333
        %v3465 = vunpack.c.l.b16 %v3334
        %v3466 = vunpack.c.h.b16 %v3334
        %v3467 = vunpack.c.l.b16 %v3335
        %v3468 = vunpack.c.h.b16 %v3335
        %v3469 = vunpack.c.l.b16 %v3336
        %v3470 = vunpack.c.h.b16 %v3336
        %v3471 = vunpack.c.l.b16 %v3337
        %v3472 = vunpack.c.h.b16 %v3337
        %v3473 = vunpack.c.l.b16 %v3338
        %v3474 = vunpack.c.h.b16 %v3338
        %v3475 = vunpack.c.l.b16 %v3339
        %v3476 = vunpack.c.h.b16 %v3339
        %v3477 = vunpack.c.l.b16 %v3340
        %v3478 = vunpack.c.h.b16 %v3340
        %v3479 = vunpack.c.l.b16 %v3341
        %v3480 = vunpack.c.h.b16 %v3341
        %v3481 = vunpack.c.l.b16 %v3342
        %v3482 = vunpack.c.h.b16 %v3342
        %v3483 = vunpack.c.l.b16 %v3343
        %v3484 = vunpack.c.h.b16 %v3343
        %v3485 = vunpack.c.l.b16 %v3344
        %v3486 = vunpack.c.h.b16 %v3344
        %v3487 = vunpack.c.l.b16 %v3345
        %v3488 = vunpack.c.h.b16 %v3345
        %v3489 = vunpack.c.l.b16 %v3346
        %v3490 = vunpack.c.h.b16 %v3346
        %v3491 = vunpack.c.l.b16 %v3347
        %v3492 = vunpack.c.h.b16 %v3347
        %v3493 = vunpack.c.l.b16 %v3348
        %v3494 = vunpack.c.h.b16 %v3348
        %v3495 = vunpack.c.l.b16 %v3349
        %v3496 = vunpack.c.h.b16 %v3349
        %v3497 = vunpack.c.l.b16 %v3350
        %v3498 = vunpack.c.h.b16 %v3350
        %v3499 = vunpack.c.l.b16 %v3351
        %v3500 = vunpack.c.h.b16 %v3351
        %v3501 = vunpack.c.l.b16 %v3352
        %v3502 = vunpack.c.h.b16 %v3352
        %v3503 = vunpack.c.l.b16 %v3353
        %v3504 = vunpack.c.h.b16 %v3353
        %v3505 = vunpack.c.l.b16 %v3354
        %v3506 = vunpack.c.h.b16 %v3354
        %v3507 = vunpack.c.l.b16 %v3355
        %v3508 = vunpack.c.h.b16 %v3355
        %v3509 = vunpack.c.l.b16 %v3356
        %v3510 = vunpack.c.h.b16 %v3356
        %v3511 = vunpack.c.l.b16 %v3357
        %v3512 = vunpack.c.h.b16 %v3357
        %v3513 = vunpack.c.l.b16 %v3358
        %v3514 = vunpack.c.h.b16 %v3358
        %v3515 = vunpack.c.l.b16 %v3359
        %v3516 = vunpack.c.h.b16 %v3359
        %v3517 = vunpack.c.l.b16 %v3360
        %v3518 = vunpack.c.h.b16 %v3360
        %v3519 = vunpack.c.l.b16 %v3361
        %v3520 = vunpack.c.h.b16 %v3361
        %v3521 = vunpack.c.l.b16 %v3362
        %v3522 = vunpack.c.h.b16 %v3362
        %v3523 = vunpack.c.l.b16 %v3363
        %v3524 = vunpack.c.h.b16 %v3363
        %v3525 = vunpack.c.l.b16 %v3364
        %v3526 = vunpack.c.h.b16 %v3364
        %v3527 = vunpack.c.l.b16 %v3365
        %v3528 = vunpack.c.h.b16 %v3365
        %v3529 = vunpack.c.l.b16 %v3366
        %v3530 = vunpack.c.h.b16 %v3366
        %v3531 = vunpack.c.l.b16 %v3367
        %v3532 = vunpack.c.h.b16 %v3367
        %v3533 = vunpack.c.l.b16 %v3368
        %v3534 = vunpack.c.h.b16 %v3368
        %v3535 = vunpack.c.l.b16 %v3369
        %v3536 = vunpack.c.h.b16 %v3369
        %v3537 = vunpack.c.l.b16 %v3370
        %v3538 = vunpack.c.h.b16 %v3370
        %v3539 = vunpack.c.l.b16 %v3371
        %v3540 = vunpack.c.h.b16 %v3371
        %v3541 = vunpack.c.l.b16 %v3372
        %v3542 = vunpack.c.h.b16 %v3372
        %v3543 = vunpack.c.l.b16 %v3373
        %v3544 = vunpack.c.h.b16 %v3373
        %v3545 = vunpack.c.l.b16 %v3374
        %v3546 = vunpack.c.h.b16 %v3374
        %v3547 = vunpack.c.l.b16 %v3375
        %v3548 = vunpack.c.h.b16 %v3375
        %v3549 = vunpack.c.l.b16 %v3376
        %v3550 = vunpack.c.h.b16 %v3376
        %v3551 = vunpack.c.l.b16 %v3377
        %v3552 = vunpack.c.h.b16 %v3377
        %v3553 = vunpack.c.l.b16 %v3378
        %v3554 = vunpack.c.h.b16 %v3378
        %v3555 = vunpack.c.l.b16 %v3379
        %v3556 = vunpack.c.h.b16 %v3379
        %v3557 = vunpack.c.l.b16 %v3380
        %v3558 = vunpack.c.h.b16 %v3380
        %v3559 = vunpack.c.l.b16 %v3381
        %v3560 = vunpack.c.h.b16 %v3381
        %v3561 = vunpack.c.l.b16 %v3382
        %v3562 = vunpack.c.h.b16 %v3382
        %v3563 = vunpack.c.l.b16 %v3383
        %v3564 = vunpack.c.h.b16 %v3383
        %v3565 = vunpack.c.l.b16 %v3384
        %v3566 = vunpack.c.h.b16 %v3384
        %v3567 = vunpack.c.l.b16 %v3385
        %v3568 = vunpack.c.h.b16 %v3385
        %v3569 = vunpack.c.l.b16 %v3386
        %v3570 = vunpack.c.h.b16 %v3386
        %v3571 = vunpack.c.l.b16 %v3387
        %v3572 = vunpack.c.h.b16 %v3387
        %v3573 = vunpack.c.l.b16 %v3388
        %v3574 = vunpack.c.h.b16 %v3388
        %v3575 = vunpack.c.l.b16 %v3389
        %v3576 = vunpack.c.h.b16 %v3389
        %v3577 = vunpack.c.l.b16 %v3390
        %v3578 = vunpack.c.h.b16 %v3390
        %v3579 = vunpack.c.l.b16 %v3391
        %v3580 = vunpack.c.h.b16 %v3391
        %v3581 = vunpack.c.l.b16 %v3392
        %v3582 = vunpack.c.h.b16 %v3392
        %v3583 = vunpack.c.l.b16 %v3393
        %v3584 = vunpack.c.h.b16 %v3393
        %v3585 = vunpack.c.l.b16 %v3394
        %v3586 = vunpack.c.h.b16 %v3394
        %v3587 = vpack.c.b16 %v3463, %v3459
        %v3588 = vpack.c.b16 %v3464, %v3460
        %v3589 = vpack.c.b16 %v3465, %v3461
        %v3590 = vpack.c.b16 %v3466, %v3462
        %v3591 = vpack.c.b16 %v3471, %v3467
        %v3592 = vpack.c.b16 %v3472, %v3468
        %v3593 = vpack.c.b16 %v3473, %v3469
        %v3594 = vpack.c.b16 %v3474, %v3470
        %v3595 = vpack.c.b16 %v3479, %v3475
        %v3596 = vpack.c.b16 %v3480, %v3476
        %v3597 = vpack.c.b16 %v3481, %v3477
        %v3598 = vpack.c.b16 %v3482, %v3478
        %v3599 = vpack.c.b16 %v3487, %v3483
        %v3600 = vpack.c.b16 %v3488, %v3484
        %v3601 = vpack.c.b16 %v3489, %v3485
        %v3602 = vpack.c.b16 %v3490, %v3486
        %v3603 = vpack.c.b16 %v3495, %v3491
        %v3604 = vpack.c.b16 %v3496, %v3492
        %v3605 = vpack.c.b16 %v3497, %v3493
        %v3606 = vpack.c.b16 %v3498, %v3494
        %v3607 = vpack.c.b16 %v3503, %v3499
        %v3608 = vpack.c.b16 %v3504, %v3500
        %v3609 = vpack.c.b16 %v3505, %v3501
        %v3610 = vpack.c.b16 %v3506, %v3502
        %v3611 = vpack.c.b16 %v3511, %v3507
        %v3612 = vpack.c.b16 %v3512, %v3508
        %v3613 = vpack.c.b16 %v3513, %v3509
        %v3614 = vpack.c.b16 %v3514, %v3510
        %v3615 = vpack.c.b16 %v3519, %v3515
        %v3616 = vpack.c.b16 %v3520, %v3516
        %v3617 = vpack.c.b16 %v3521, %v3517
        %v3618 = vpack.c.b16 %v3522, %v3518
        %v3619 = vpack.c.b16 %v3527, %v3523
        %v3620 = vpack.c.b16 %v3528, %v3524
        %v3621 = vpack.c.b16 %v3529, %v3525
        %v3622 = vpack.c.b16 %v3530, %v3526
        %v3623 = vpack.c.b16 %v3535, %v3531
        %v3624 = vpack.c.b16 %v3536, %v3532
        %v3625 = vpack.c.b16 %v3537, %v3533
        %v3626 = vpack.c.b16 %v3538, %v3534
        %v3627 = vpack.c.b16 %v3543, %v3539
        %v3628 = vpack.c.b16 %v3544, %v3540
        %v3629 = vpack.c.b16 %v3545, %v3541
        %v3630 = vpack.c.b16 %v3546, %v3542
        %v3631 = vpack.c.b16 %v3551, %v3547
        %v3632 = vpack.c.b16 %v3552, %v3548
        %v3633 = vpack.c.b16 %v3553, %v3549
        %v3634 = vpack.c.b16 %v3554, %v3550
        %v3635 = vpack.c.b16 %v3559, %v3555
        %v3636 = vpack.c.b16 %v3560, %v3556
        %v3637 = vpack.c.b16 %v3561, %v3557
        %v3638 = vpack.c.b16 %v3562, %v3558
        %v3639 = vpack.c.b16 %v3567, %v3563
        %v3640 = vpack.c.b16 %v3568, %v3564
        %v3641 = vpack.c.b16 %v3569, %v3565
        %v3642 = vpack.c.b16 %v3570, %v3566
        %v3643 = vpack.c.b16 %v3575, %v3571
        %v3644 = vpack.c.b16 %v3576, %v3572
        %v3645 = vpack.c.b16 %v3577, %v3573
        %v3646 = vpack.c.b16 %v3578, %v3574
        %v3647 = vpack.c.b16 %v3583, %v3579
        %v3648 = vpack.c.b16 %v3584, %v3580
        %v3649 = vpack.c.b16 %v3585, %v3581
        %v3650 = vpack.c.b16 %v3586, %v3582
        %3715 = vmatprep.subr.bf16.mxu0 %v3616
        %3716 = vmatpush1.bf16.msra.mxu0 %v3615
        %3717 = vmatprep.subr.bf16.mxu0 %v3612
        %3718 = vmatpush1.bf16.msra.mxu0 %v3611
        %3719 = vmatprep.subr.bf16.mxu0 %v3608
        %3720 = vmatpush1.bf16.msra.mxu0 %v3607
        %3721 = vmatprep.subr.bf16.mxu0 %v3604
        %3722 = vmatpush1.bf16.msra.mxu0 %v3603
        %3723 = vmatprep.subr.bf16.mxu0 %v3600
        %3724 = vmatpush1.bf16.msra.mxu0 %v3599
        %3725 = vmatprep.subr.bf16.mxu0 %v3596
        %3726 = vmatpush1.bf16.msra.mxu0 %v3595
        %3727 = vmatprep.subr.bf16.mxu0 %v3592
        %3728 = vmatpush1.bf16.msra.mxu0 %v3591
        %3729 = vmatprep.subr.bf16.mxu0 %v3588
        %3730 = vmatpush1.bf16.msra.mxu0 %v3587
        %3731 = vmatprep.subr.bf16.mxu0 %v3648
        %3732 = vmatpush2.bf16.msra.mxu0 %v3647
        %3733 = vmatprep.subr.bf16.mxu0 %v3644
        %3734 = vmatpush2.bf16.msra.mxu0 %v3643
        %3735 = vmatprep.subr.bf16.mxu0 %v3640
        %3736 = vmatpush2.bf16.msra.mxu0 %v3639
        %3737 = vmatprep.subr.bf16.mxu0 %v3636
        %3738 = vmatpush2.bf16.msra.mxu0 %v3635
        %3739 = vmatprep.subr.bf16.mxu0 %v3632
        %3740 = vmatpush2.bf16.msra.mxu0 %v3631
        %3741 = vmatprep.subr.bf16.mxu0 %v3628
        %3742 = vmatpush2.bf16.msra.mxu0 %v3627
        %3743 = vmatprep.subr.bf16.mxu0 %v3624
        %3744 = vmatpush2.bf16.msra.mxu0 %v3623
        %3745 = vmatprep.subr.bf16.mxu0 %v3620
        %3746 = vmatpush2.bf16.msra.mxu0 %v3619
        %3747 = vmatprep.mubr.bf16.mxu0 %v3330
        %3748 = vmatmul.mubr.bf16.gmra.mxu0 %v3329
        %v3749 = vpop.f32.mrf.mxu0
        %v3750 = vadd.f32 0.0, %v3749
        %v3751 = vpop.f32.mrf.mxu0
        %v3752 = vadd.f32 0.0, %v3751
        %v3753 = vpop.f32.mrf.mxu0
        %v3754 = vadd.f32 0.0, %v3753
        %v3755 = vpop.f32.mrf.mxu0
        %v3756 = vadd.f32 0.0, %v3755
        %3757 = vdwg.mxu0
        %3758 = vmatprep.subr.bf16.mxu0 %v3618
        %3759 = vmatpush1.bf16.msra.mxu0 %v3617
        %3760 = vmatprep.subr.bf16.mxu0 %v3614
        %3761 = vmatpush1.bf16.msra.mxu0 %v3613
        %3762 = vmatprep.subr.bf16.mxu0 %v3610
        %3763 = vmatpush1.bf16.msra.mxu0 %v3609
        %3764 = vmatprep.subr.bf16.mxu0 %v3606
        %3765 = vmatpush1.bf16.msra.mxu0 %v3605
        %3766 = vmatprep.subr.bf16.mxu0 %v3602
        %3767 = vmatpush1.bf16.msra.mxu0 %v3601
        %3768 = vmatprep.subr.bf16.mxu0 %v3598
        %3769 = vmatpush1.bf16.msra.mxu0 %v3597
        %3770 = vmatprep.subr.bf16.mxu0 %v3594
        %3771 = vmatpush1.bf16.msra.mxu0 %v3593
        %3772 = vmatprep.subr.bf16.mxu0 %v3590
        %3773 = vmatpush1.bf16.msra.mxu0 %v3589
        %3774 = vmatprep.subr.bf16.mxu0 %v3650
        %3775 = vmatpush2.bf16.msra.mxu0 %v3649
        %3776 = vmatprep.subr.bf16.mxu0 %v3646
        %3777 = vmatpush2.bf16.msra.mxu0 %v3645
        %3778 = vmatprep.subr.bf16.mxu0 %v3642
        %3779 = vmatpush2.bf16.msra.mxu0 %v3641
        %3780 = vmatprep.subr.bf16.mxu0 %v3638
        %3781 = vmatpush2.bf16.msra.mxu0 %v3637
        %3782 = vmatprep.subr.bf16.mxu0 %v3634
        %3783 = vmatpush2.bf16.msra.mxu0 %v3633
        %3784 = vmatprep.subr.bf16.mxu0 %v3630
        %3785 = vmatpush2.bf16.msra.mxu0 %v3629
        %3786 = vmatprep.subr.bf16.mxu0 %v3626
        %3787 = vmatpush2.bf16.msra.mxu0 %v3625
        %3788 = vmatprep.subr.bf16.mxu0 %v3622
        %3789 = vmatpush2.bf16.msra.mxu0 %v3621
        %3790 = vmatprep.mubr.bf16.mxu0 %v3330
        %3791 = vmatmul.mubr.bf16.gmra.mxu0 %v3329
        %v3792 = vpop.f32.mrf.mxu0
        %v3793 = vadd.f32 0.0, %v3792
        %v3794 = vpop.f32.mrf.mxu0
        %v3795 = vadd.f32 0.0, %v3794
        %v3796 = vpop.f32.mrf.mxu0
        %v3797 = vadd.f32 0.0, %v3796
        %v3798 = vpop.f32.mrf.mxu0
        %v3799 = vadd.f32 0.0, %v3798
        %3800 = vdwg.mxu0
        %v3801 = vadd.f32 %v3321, %v3750
        %v3802 = vadd.f32 %v3322, %v3752
        %v3803 = vadd.f32 %v3323, %v3793
        %v3804 = vadd.f32 %v3324, %v3795
        %v3805 = vadd.f32 %v3325, %v3754
        %v3806 = vadd.f32 %v3326, %v3756
        %v3807 = vadd.f32 %v3327, %v3797
        %v3808 = vadd.f32 %v3328, %v3799
        %3809 = vst [vmem:[%s419] sm:$0xff] %v3801
        %3810 = vst [vmem:[%s419 + $0x8] sm:$0xff] %v3802
        %3811 = vst [vmem:[%s419 + $0x10] sm:$0xff] %v3803
        %3812 = vst [vmem:[%s419 + $0x18] sm:$0xff] %v3804
        %3813 = vst [vmem:[%s419 + $0x20] sm:$0xff] %v3805
        %3814 = vst [vmem:[%s419 + $0x28] sm:$0xff] %v3806
        %3815 = vst [vmem:[%s419 + $0x30] sm:$0xff] %v3807
        %3816 = vst [vmem:[%s419 + $0x38] sm:$0xff] %v3808
        %s3817 = sand.u32 %s201, 1
        %s3818 = scalar_lea.sflag [#allocation5], %s3817
        %s3819 = sand.u32 %s201, 1
        %s3820 = smul.addr %s3819, 64
        %s3821 = scalar_lea.vmem [#allocation14], %s3820
        // Predicated region
        $region73: #{tpu_custom_call.1} parent=43 // pred_check
          %p3822 = pneg %p211
        $region74: #{tpu_custom_call.1} parent=43 // pred_check_branch
          %3824 = sbr.rel (%p3822) target = $region76
        $region75: #{tpu_custom_call.1} parent=43 // pred_region
          %s3826 = ssub.s32 1024, 1024
          %3827 = vsyncadd %s3818, %s3826
          %s3828 = smul.addr %s32, 8
          %s3829 = smul.addr %s3828, 128
          %s3830 = scalar_lea.hbm %s6, %s3829
          %s3831 = sshll.u32 %s3821, 4
          %s3832 = int_to_ptr.vmem [resolvable:$true] %s3831
          %3837 = dma.vmem_to_hbm [thread:$0]  %s3832, 1024, %s3830, %s3818, 512, 512, 32
        $region76: #{tpu_custom_call.1} parent=43 // pred_fallthru
          _
      $region44: #{tpu_custom_call.1} parent=5 // pred_fallthru
        _
      %p3838 = scmp.le.s32.totalorder 2, %s23
      // Predicated region
      $region77: #{tpu_custom_call.1} parent=5 // pred_check
        %p3839 = pneg %p3838
      $region78: #{tpu_custom_call.1} parent=5 // pred_check_branch
        %3841 = sbr.rel (%p3839) target = $region80
      $region79: #{tpu_custom_call.1} parent=5 // pred_region
        %s3842 = ssub.s32 %s23, 2
        // Predicated region
        $region81: #{tpu_custom_call.1} parent=79 // pred_check
          %p3843 = pneg %p217
        $region82: #{tpu_custom_call.1} parent=79 // pred_check_branch
          %3845 = sbr.rel (%p3843) target = $region84
        $region83: #{tpu_custom_call.1} parent=79 // pred_region
          %s3846 = sand.u32 %s202, 1
          %s3847 = scalar_lea.sflag [#allocation5], %s3846
          %s3848 = sand.u32 %s202, 1
          %s3849 = smul.addr %s3848, 64
          %s3850 = scalar_lea.vmem [#allocation14], %s3849
          %3851 = dma.done %s3847, 1024
        $region84: #{tpu_custom_call.1} parent=79 // pred_fallthru
          _
      $region80: #{tpu_custom_call.1} parent=5 // pred_fallthru
        _
    $region6: #{tpu_custom_call.1} parent=1 // loop_footer
      %s27 = sadd.s32 1, %s23
    $region7: #{tpu_custom_call.1} parent=1 // loop_footer_branch
      %22 = sbr.rel target = $region3
    $region8: #{tpu_custom_call.1} parent=1 // loop_exit
      _
    %3852 = vsyncpa [#allocation4], 1
    %s3853 = scalar_lea.sflag [#allocation4], 1
    %3854 = vsyncpa %s3853, 1
    %3855 = vsyncpa [#allocation7], 1
    %3856 = vsyncpa [#allocation10], 1
    %s3857 = scalar_lea.sflag [#allocation10], 1
    %3858 = vsyncpa %s3857, 1
    %3859 = vsyncpa [#allocation13], 1
    %s3860 = scalar_lea.sflag [#allocation13], 1
    %3861 = vsyncpa %s3860, 1
    %3862 = vsyncpa [#allocation5], 1
    %s3863 = scalar_lea.sflag [#allocation5], 1
    %3864 = vsyncpa %s3863, 1

</llo_original>
